<compile_context>
chip_gen: v7x
topology: tpu7x:2x2x1
jax: 0.10.0
libtpu: 0.0.40
codegen_flags: <defaults>
</compile_context>

<pallas_src>
import functools

import jax
import jax.numpy as jnp
from jax import lax
from jax.experimental import pallas as pl
from jax.experimental.pallas import tpu as pltpu

KSIZE = 4
LEAKY_SLOPE = 0.2
IN_EPS = 1e-5

# (stride, padding, instance_norm, leaky_relu) for the 5 conv blocks.
_LAYER_SPECS = (
    (2, 1, False, True),
    (2, 1, True, True),
    (2, 1, True, True),
    (2, 1, True, True),
    (1, 0, False, False),
)


# ----------------------------------------------------------------------------
# Pallas kernel: one conv block on one sample (im2col GEMM + fused epilogue)
# ----------------------------------------------------------------------------
def _conv_block_kernel(p_ref, w_ref, b_ref, o_ref, *, do_norm, do_act):
    """p_ref: (N, K) bf16 patches, w_ref: (K, Cout) bf16, b_ref: (1, Cout) f32."""
    # MXU matmul, f32 accumulation.
    y = jnp.dot(p_ref[...], w_ref[...], preferred_element_type=jnp.float32)
    y = y + b_ref[...]                               # bias broadcasts over rows

    if do_norm:                                      # InstanceNorm2d(affine=False)
        mean = jnp.mean(y, axis=0, keepdims=True)    # per-channel over spatial rows
        var = jnp.mean(jnp.square(y - mean), axis=0, keepdims=True)
        y = (y - mean) * lax.rsqrt(var + IN_EPS)

    if do_act:                                       # LeakyReLU(0.2)
        y = jnp.where(y >= 0.0, y, LEAKY_SLOPE * y)

    o_ref[...] = y.astype(o_ref.dtype)


# ----------------------------------------------------------------------------
# Wrapper helpers
# ----------------------------------------------------------------------------
def _im2col(x, stride, padding):
    """x: (B, H, W, C) -> patches (B, OH*OW, 16*C); pure layout transform."""
    B, H, W, C = x.shape
    if padding:
        x = jnp.pad(x, ((0, 0), (padding, padding), (padding, padding), (0, 0)))
    Hp, Wp = H + 2 * padding, W + 2 * padding
    OH = (Hp - KSIZE) // stride + 1
    OW = (Wp - KSIZE) // stride + 1
    cols = []
    for kh in range(KSIZE):
        for kw in range(KSIZE):
            cols.append(x[:, kh:kh + stride * (OH - 1) + 1:stride,
                          kw:kw + stride * (OW - 1) + 1:stride, :])
    p = jnp.stack(cols, axis=3)                      # (B, OH, OW, 16, C)
    return p.reshape(B, OH * OW, KSIZE * KSIZE * C), OH, OW


def _conv_block(x, w_pt, b, stride, padding, do_norm, do_act,
                compute_dtype=jnp.bfloat16, out_dtype=jnp.float32):
    """x: (B, H, W, Cin) -> (B, OH, OW, Cout). w_pt in PyTorch layout (Cout, Cin, 4, 4)."""
    B = x.shape[0]
    cout = w_pt.shape[0]
    patches, OH, OW = _im2col(x, stride, padding)
    N, K = patches.shape[1], patches.shape[2]

    # (Cout, Cin, kh, kw) -> (kh, kw, Cin, Cout) -> (K, Cout); matches patch K order.
    w_mat = jnp.transpose(w_pt, (2, 3, 1, 0)).reshape(K, cout)

    patches = patches.astype(compute_dtype)          # bf16 operands: half the HBM bytes,
    w_mat = w_mat.astype(compute_dtype)              # MXU-native; accumulate in f32.
    bias = b.reshape(1, cout).astype(jnp.float32)

    kernel = functools.partial(_conv_block_kernel, do_norm=do_norm, do_act=do_act)
    out = pl.pallas_call(
        kernel,
        out_shape=jax.ShapeDtypeStruct((B, N, cout), out_dtype),
        grid=(B,),                                   # one sample per grid step
        in_specs=[
            pl.BlockSpec((None, N, K), lambda i: (i, 0, 0)),    # streamed activations
            pl.BlockSpec((K, cout), lambda i: (0, 0)),          # VMEM-resident weight
            pl.BlockSpec((1, cout), lambda i: (0, 0)),          # VMEM-resident bias
        ],
        out_specs=pl.BlockSpec((None, N, cout), lambda i: (i, 0, 0)),
        compiler_params=pltpu.CompilerParams(
            dimension_semantics=("parallel",)),      # megacore on v7x
    )(patches, w_mat, bias)
    return out.reshape(B, OH, OW, cout)


def image_encoder_forward(x_nchw, params, compute_dtype=jnp.bfloat16):
    """Forward of _ImageEncoder: x (B, Cin, 64, 64) -> (B, out_channels)."""
    assert x_nchw.ndim == 4
    y = jnp.transpose(x_nchw, (0, 2, 3, 1)).astype(jnp.float32)  # NCHW -> NHWC
    n_layers = len(_LAYER_SPECS)
    for i, (stride, padding, norm, actv) in enumerate(_LAYER_SPECS):
        last = i == n_layers - 1
        y = _conv_block(
            y, params[f"w{i}"], params[f"b{i}"], stride, padding, norm, actv,
            compute_dtype=compute_dtype,
            # Intermediates are only re-consumed as bf16 dot operands, so store
            # them bf16 (halves writeback+readback); final output stays f32.
            out_dtype=jnp.float32 if last else compute_dtype)
    B, OH, OW, C = y.shape
    assert OH == 1 and OW == 1, f"output has wrong shape: {y.shape}"
    return y.reshape(B, C)                           # == z[:, :, 0, 0]


# ----------------------------------------------------------------------------
# Parameters (PyTorch Conv2d layout + default init) and pure-JAX reference
# ----------------------------------------------------------------------------
def init_params(key, in_channels, out_channels, first_channels):
    nfc = first_channels
    chans = [in_channels, nfc, nfc * 2, nfc * 4, nfc * 8, out_channels]
    params = {}
    for i in range(5):
        cin, cout = chans[i], chans[i + 1]
        key, kw_, kb_ = jax.random.split(key, 3)
        bound = 1.0 / float(cin * KSIZE * KSIZE) ** 0.5
        params[f"w{i}"] = jax.random.uniform(
            kw_, (cout, cin, KSIZE, KSIZE), jnp.float32, -bound, bound)
        params[f"b{i}"] = jax.random.uniform(
            kb_, (cout,), jnp.float32, -bound, bound)
    return params


def reference_forward(x_nchw, params, compute_dtype=jnp.bfloat16):
    """Independent reference using lax.conv (same bf16-operand / f32-accum precision)."""
    y = x_nchw.astype(jnp.float32)
    for i, (stride, padding, norm, actv) in enumerate(_LAYER_SPECS):
        w = params[f"w{i}"]
        b = params[f"b{i}"]
        y = lax.conv_general_dilated(
            y.astype(compute_dtype), w.astype(compute_dtype),
            window_strides=(stride, stride),
            padding=[(padding, padding), (padding, padding)],
            dimension_numbers=("NCHW", "OIHW", "NCHW"),
            preferred_element_type=jnp.float32)
        y = y + b.reshape(1, -1, 1, 1)
        if norm:
            mean = jnp.mean(y, axis=(2, 3), keepdims=True)
            var = jnp.mean(jnp.square(y - mean), axis=(2, 3), keepdims=True)
            y = (y - mean) * lax.rsqrt(var + IN_EPS)
        if actv:
            y = jnp.where(y >= 0.0, y, LEAKY_SLOPE * y)
        if i < len(_LAYER_SPECS) - 1:
            y = y.astype(compute_dtype).astype(jnp.float32)  # mirror bf16 intermediates
    assert y.shape[2] == 1 and y.shape[3] == 1
    return y[:, :, 0, 0]


if __name__ == "__main__":
    key = jax.random.PRNGKey(0)
    k_x, k_p = jax.random.split(key)

    batch, in_channels, first_channels, out_channels = 2, 3, 4, 8
    H = W = 64  # forward implies 64x64: four stride-2 halvings -> 4x4, then 4x4 valid conv -> 1x1

    x = jax.random.normal(k_x, (batch, in_channels, H, W), jnp.float32)
    params = init_params(k_p, in_channels, out_channels, first_channels)

    z = jax.jit(image_encoder_forward)(x, params)
    z = jax.block_until_ready(z)

    z_ref = reference_forward(x, params)
    assert z.shape == (batch, out_channels), z.shape
    max_err = float(jnp.max(jnp.abs(z - z_ref)))
    assert jnp.allclose(z, z_ref, atol=1e-2, rtol=1e-2), \
        f"mismatch vs reference (max abs err {max_err})"

    print("KERNEL_OK")
</pallas_src>

<mosaic_0001>
module attributes {stable_mosaic.version = 11 : i64} {
  func.func @_conv_block_kernel(%arg0: i32, %arg1: memref<1x1024x48xbf16, #tpu.memory_space<vmem>>, %arg2: memref<48x4xbf16, #tpu.memory_space<vmem>>, %arg3: memref<1x4xf32, #tpu.memory_space<vmem>>, %arg4: memref<1x1024x4xbf16, #tpu.memory_space<vmem>>) attributes {dimension_semantics = [#tpu.dimension_semantics<parallel>], iteration_bounds = array<i64: 2>, scalar_prefetch = 0 : i64, scratch_operands = 0 : i64, tpu.core_type = #tpu.core_type<tc>, window_params = [{transform_indices = @transform_0, window_bounds = array<i64: 1, 1024, 48>}, {pipeline_mode = #tpu.pipeline_mode<synchronous>, transform_indices = @transform_1, window_bounds = array<i64: 48, 4>}, {pipeline_mode = #tpu.pipeline_mode<synchronous>, transform_indices = @transform_2, window_bounds = array<i64: 1, 4>}, {transform_indices = @transform_3, window_bounds = array<i64: 1, 1024, 4>}]} {
    %c0 = arith.constant 0 : index
    %c0_0 = arith.constant 0 : index
    %c0_1 = arith.constant 0 : index
    %0 = vector.load %arg1[%c0, %c0_0, %c0_1] : memref<1x1024x48xbf16, #tpu.memory_space<vmem>>, vector<1x1024x48xbf16>
    %1 = vector.shape_cast %0 : vector<1x1024x48xbf16> to vector<1024x48xbf16>
    %c0_2 = arith.constant 0 : index
    %c0_3 = arith.constant 0 : index
    %2 = vector.load %arg2[%c0_2, %c0_3] : memref<48x4xbf16, #tpu.memory_space<vmem>>, vector<48x4xbf16>
    %cst = arith.constant dense<0.000000e+00> : vector<1024x4xf32>
    %3 = tpu.matmul %1, %2, %cst {dimension_numbers = #tpu.dot_dimension_numbers<[1], [0], [0], [1], [0, 0, 1, 1], [], []>} : vector<1024x48xbf16>, vector<48x4xbf16>, vector<1024x4xf32> -> vector<1024x4xf32>
    %c0_4 = arith.constant 0 : index
    %c0_5 = arith.constant 0 : index
    %4 = vector.load %arg3[%c0_4, %c0_5] : memref<1x4xf32, #tpu.memory_space<vmem>>, vector<1x4xf32>
    %5 = vector.broadcast %4 : vector<1x4xf32> to vector<1024x4xf32>
    %6 = arith.addf %3, %5 : vector<1024x4xf32>
    %cst_6 = arith.constant 0.000000e+00 : f32
    %7 = vector.broadcast %cst_6 : f32 to vector<1024x4xf32>
    %8 = arith.cmpf oge, %6, %7 : vector<1024x4xf32>
    %cst_7 = arith.constant 2.000000e-01 : f32
    %9 = vector.broadcast %cst_7 : f32 to vector<1024x4xf32>
    %10 = arith.mulf %9, %6 : vector<1024x4xf32>
    %11 = arith.select %8, %6, %10 : vector<1024x4xi1>, vector<1024x4xf32>
    %12 = arith.truncf %11 : vector<1024x4xf32> to vector<1024x4xbf16>
    %c0_8 = arith.constant 0 : index
    %c0_9 = arith.constant 0 : index
    %c0_10 = arith.constant 0 : index
    %13 = vector.load %arg4[%c0_8, %c0_9, %c0_10] : memref<1x1024x4xbf16, #tpu.memory_space<vmem>>, vector<1x1024x4xbf16>
    %14 = vector.shape_cast %13 : vector<1x1024x4xbf16> to vector<1024x4xbf16>
    %15 = vector.shape_cast %12 : vector<1024x4xbf16> to vector<1x1024x4xbf16>
    tpu.vector_store %arg4[%c0_8, %c0_9, %c0_10], %15 {strides = array<i32>} : memref<1x1024x4xbf16, #tpu.memory_space<vmem>>, vector<1x1024x4xbf16>,
    return
  }
  func.func @transform_0(%arg0: i32) -> (i32, i32, i32) {
    %c0_i32 = arith.constant 0 : i32
    %c0_i32_0 = arith.constant 0 : i32
    %c0_i32_1 = arith.constant 0 : i32
    return %arg0, %c0_i32, %c0_i32_0 : i32, i32, i32
  }
  func.func @transform_1(%arg0: i32) -> (i32, i32) {
    %c0_i32 = arith.constant 0 : i32
    %c0_i32_0 = arith.constant 0 : i32
    %c0_i32_1 = arith.constant 0 : i32
    return %c0_i32, %c0_i32_0 : i32, i32
  }
  func.func @transform_2(%arg0: i32) -> (i32, i32) {
    %c0_i32 = arith.constant 0 : i32
    %c0_i32_0 = arith.constant 0 : i32
    %c0_i32_1 = arith.constant 0 : i32
    return %c0_i32, %c0_i32_0 : i32, i32
  }
  func.func @transform_3(%arg0: i32) -> (i32, i32, i32) {
    %c0_i32 = arith.constant 0 : i32
    %c0_i32_0 = arith.constant 0 : i32
    %c0_i32_1 = arith.constant 0 : i32
    return %arg0, %c0_i32, %c0_i32_0 : i32, i32, i32
  }
}

module attributes {stable_mosaic.version = 11 : i64} {
  func.func @_conv_block_kernel(%arg0: i32, %arg1: memref<1x256x64xbf16, #tpu.memory_space<vmem>>, %arg2: memref<64x8xbf16, #tpu.memory_space<vmem>>, %arg3: memref<1x8xf32, #tpu.memory_space<vmem>>, %arg4: memref<1x256x8xbf16, #tpu.memory_space<vmem>>) attributes {dimension_semantics = [#tpu.dimension_semantics<parallel>], iteration_bounds = array<i64: 2>, scalar_prefetch = 0 : i64, scratch_operands = 0 : i64, tpu.core_type = #tpu.core_type<tc>, window_params = [{transform_indices = @transform_0, window_bounds = array<i64: 1, 256, 64>}, {pipeline_mode = #tpu.pipeline_mode<synchronous>, transform_indices = @transform_1, window_bounds = array<i64: 64, 8>}, {pipeline_mode = #tpu.pipeline_mode<synchronous>, transform_indices = @transform_2, window_bounds = array<i64: 1, 8>}, {transform_indices = @transform_3, window_bounds = array<i64: 1, 256, 8>}]} {
    %c0 = arith.constant 0 : index
    %c0_0 = arith.constant 0 : index
    %c0_1 = arith.constant 0 : index
    %0 = vector.load %arg1[%c0, %c0_0, %c0_1] : memref<1x256x64xbf16, #tpu.memory_space<vmem>>, vector<1x256x64xbf16>
    %1 = vector.shape_cast %0 : vector<1x256x64xbf16> to vector<256x64xbf16>
    %c0_2 = arith.constant 0 : index
    %c0_3 = arith.constant 0 : index
    %2 = vector.load %arg2[%c0_2, %c0_3] : memref<64x8xbf16, #tpu.memory_space<vmem>>, vector<64x8xbf16>
    %cst = arith.constant dense<0.000000e+00> : vector<256x8xf32>
    %3 = tpu.matmul %1, %2, %cst {dimension_numbers = #tpu.dot_dimension_numbers<[1], [0], [0], [1], [0, 0, 1, 1], [], []>} : vector<256x64xbf16>, vector<64x8xbf16>, vector<256x8xf32> -> vector<256x8xf32>
    %c0_4 = arith.constant 0 : index
    %c0_5 = arith.constant 0 : index
    %4 = vector.load %arg3[%c0_4, %c0_5] : memref<1x8xf32, #tpu.memory_space<vmem>>, vector<1x8xf32>
    %5 = vector.broadcast %4 : vector<1x8xf32> to vector<256x8xf32>
    %6 = arith.addf %3, %5 : vector<256x8xf32>
    %cst_6 = arith.constant dense<0.000000e+00> : vector<8xf32>
    %7 = vector.multi_reduction <add>, %6, %cst_6 [0] : vector<256x8xf32> to vector<8xf32>
    %8 = vector.shape_cast %7 : vector<8xf32> to vector<1x8xf32>
    %cst_7 = arith.constant 2.560000e+02 : f32
    %9 = vector.broadcast %cst_7 : f32 to vector<1x8xf32>
    %10 = arith.divf %8, %9 : vector<1x8xf32>
    %11 = vector.broadcast %10 : vector<1x8xf32> to vector<256x8xf32>
    %12 = arith.subf %6, %11 : vector<256x8xf32>
    %13 = arith.mulf %12, %12 : vector<256x8xf32>
    %cst_8 = arith.constant dense<0.000000e+00> : vector<8xf32>
    %14 = vector.multi_reduction <add>, %13, %cst_8 [0] : vector<256x8xf32> to vector<8xf32>
    %15 = vector.shape_cast %14 : vector<8xf32> to vector<1x8xf32>
    %cst_9 = arith.constant 2.560000e+02 : f32
    %16 = vector.broadcast %cst_9 : f32 to vector<1x8xf32>
    %17 = arith.divf %15, %16 : vector<1x8xf32>
    %18 = vector.broadcast %10 : vector<1x8xf32> to vector<256x8xf32>
    %19 = arith.subf %6, %18 : vector<256x8xf32>
    %cst_10 = arith.constant 9.99999974E-6 : f32
    %20 = vector.broadcast %cst_10 : f32 to vector<1x8xf32>
    %21 = arith.addf %17, %20 : vector<1x8xf32>
    %22 = math.rsqrt %21 : vector<1x8xf32>
    %23 = vector.broadcast %22 : vector<1x8xf32> to vector<256x8xf32>
    %24 = arith.mulf %19, %23 : vector<256x8xf32>
    %cst_11 = arith.constant 0.000000e+00 : f32
    %25 = vector.broadcast %cst_11 : f32 to vector<256x8xf32>
    %26 = arith.cmpf oge, %24, %25 : vector<256x8xf32>
    %cst_12 = arith.constant 2.000000e-01 : f32
    %27 = vector.broadcast %cst_12 : f32 to vector<256x8xf32>
    %28 = arith.mulf %27, %24 : vector<256x8xf32>
    %29 = arith.select %26, %24, %28 : vector<256x8xi1>, vector<256x8xf32>
    %30 = arith.truncf %29 : vector<256x8xf32> to vector<256x8xbf16>
    %c0_13 = arith.constant 0 : index
    %c0_14 = arith.constant 0 : index
    %c0_15 = arith.constant 0 : index
    %31 = vector.load %arg4[%c0_13, %c0_14, %c0_15] : memref<1x256x8xbf16, #tpu.memory_space<vmem>>, vector<1x256x8xbf16>
    %32 = vector.shape_cast %31 : vector<1x256x8xbf16> to vector<256x8xbf16>
    %33 = vector.shape_cast %30 : vector<256x8xbf16> to vector<1x256x8xbf16>
    tpu.vector_store %arg4[%c0_13, %c0_14, %c0_15], %33 {strides = array<i32>} : memref<1x256x8xbf16, #tpu.memory_space<vmem>>, vector<1x256x8xbf16>,
    return
  }
  func.func @transform_0(%arg0: i32) -> (i32, i32, i32) {
    %c0_i32 = arith.constant 0 : i32
    %c0_i32_0 = arith.constant 0 : i32
    %c0_i32_1 = arith.constant 0 : i32
    return %arg0, %c0_i32, %c0_i32_0 : i32, i32, i32
  }
  func.func @transform_1(%arg0: i32) -> (i32, i32) {
    %c0_i32 = arith.constant 0 : i32
    %c0_i32_0 = arith.constant 0 : i32
    %c0_i32_1 = arith.constant 0 : i32
    return %c0_i32, %c0_i32_0 : i32, i32
  }
  func.func @transform_2(%arg0: i32) -> (i32, i32) {
    %c0_i32 = arith.constant 0 : i32
    %c0_i32_0 = arith.constant 0 : i32
    %c0_i32_1 = arith.constant 0 : i32
    return %c0_i32, %c0_i32_0 : i32, i32
  }
  func.func @transform_3(%arg0: i32) -> (i32, i32, i32) {
    %c0_i32 = arith.constant 0 : i32
    %c0_i32_0 = arith.constant 0 : i32
    %c0_i32_1 = arith.constant 0 : i32
    return %arg0, %c0_i32, %c0_i32_0 : i32, i32, i32
  }
}

module attributes {stable_mosaic.version = 11 : i64} {
  func.func @_conv_block_kernel(%arg0: i32, %arg1: memref<1x64x128xbf16, #tpu.memory_space<vmem>>, %arg2: memref<128x16xbf16, #tpu.memory_space<vmem>>, %arg3: memref<1x16xf32, #tpu.memory_space<vmem>>, %arg4: memref<1x64x16xbf16, #tpu.memory_space<vmem>>) attributes {dimension_semantics = [#tpu.dimension_semantics<parallel>], iteration_bounds = array<i64: 2>, scalar_prefetch = 0 : i64, scratch_operands = 0 : i64, tpu.core_type = #tpu.core_type<tc>, window_params = [{transform_indices = @transform_0, window_bounds = array<i64: 1, 64, 128>}, {pipeline_mode = #tpu.pipeline_mode<synchronous>, transform_indices = @transform_1, window_bounds = array<i64: 128, 16>}, {pipeline_mode = #tpu.pipeline_mode<synchronous>, transform_indices = @transform_2, window_bounds = array<i64: 1, 16>}, {transform_indices = @transform_3, window_bounds = array<i64: 1, 64, 16>}]} {
    %c0 = arith.constant 0 : index
    %c0_0 = arith.constant 0 : index
    %c0_1 = arith.constant 0 : index
    %0 = vector.load %arg1[%c0, %c0_0, %c0_1] : memref<1x64x128xbf16, #tpu.memory_space<vmem>>, vector<1x64x128xbf16>
    %1 = vector.shape_cast %0 : vector<1x64x128xbf16> to vector<64x128xbf16>
    %c0_2 = arith.constant 0 : index
    %c0_3 = arith.constant 0 : index
    %2 = vector.load %arg2[%c0_2, %c0_3] : memref<128x16xbf16, #tpu.memory_space<vmem>>, vector<128x16xbf16>
    %cst = arith.constant dense<0.000000e+00> : vector<64x16xf32>
    %3 = tpu.matmul %1, %2, %cst {dimension_numbers = #tpu.dot_dimension_numbers<[1], [0], [0], [1], [0, 0, 1, 1], [], []>} : vector<64x128xbf16>, vector<128x16xbf16>, vector<64x16xf32> -> vector<64x16xf32>
    %c0_4 = arith.constant 0 : index
    %c0_5 = arith.constant 0 : index
    %4 = vector.load %arg3[%c0_4, %c0_5] : memref<1x16xf32, #tpu.memory_space<vmem>>, vector<1x16xf32>
    %5 = vector.broadcast %4 : vector<1x16xf32> to vector<64x16xf32>
    %6 = arith.addf %3, %5 : vector<64x16xf32>
    %cst_6 = arith.constant dense<0.000000e+00> : vector<16xf32>
    %7 = vector.multi_reduction <add>, %6, %cst_6 [0] : vector<64x16xf32> to vector<16xf32>
    %8 = vector.shape_cast %7 : vector<16xf32> to vector<1x16xf32>
    %cst_7 = arith.constant 6.400000e+01 : f32
    %9 = vector.broadcast %cst_7 : f32 to vector<1x16xf32>
    %10 = arith.divf %8, %9 : vector<1x16xf32>
    %11 = vector.broadcast %10 : vector<1x16xf32> to vector<64x16xf32>
    %12 = arith.subf %6, %11 : vector<64x16xf32>
    %13 = arith.mulf %12, %12 : vector<64x16xf32>
    %cst_8 = arith.constant dense<0.000000e+00> : vector<16xf32>
    %14 = vector.multi_reduction <add>, %13, %cst_8 [0] : vector<64x16xf32> to vector<16xf32>
    %15 = vector.shape_cast %14 : vector<16xf32> to vector<1x16xf32>
    %cst_9 = arith.constant 6.400000e+01 : f32
    %16 = vector.broadcast %cst_9 : f32 to vector<1x16xf32>
    %17 = arith.divf %15, %16 : vector<1x16xf32>
    %18 = vector.broadcast %10 : vector<1x16xf32> to vector<64x16xf32>
    %19 = arith.subf %6, %18 : vector<64x16xf32>
    %cst_10 = arith.constant 9.99999974E-6 : f32
    %20 = vector.broadcast %cst_10 : f32 to vector<1x16xf32>
    %21 = arith.addf %17, %20 : vector<1x16xf32>
    %22 = math.rsqrt %21 : vector<1x16xf32>
    %23 = vector.broadcast %22 : vector<1x16xf32> to vector<64x16xf32>
    %24 = arith.mulf %19, %23 : vector<64x16xf32>
    %cst_11 = arith.constant 0.000000e+00 : f32
    %25 = vector.broadcast %cst_11 : f32 to vector<64x16xf32>
    %26 = arith.cmpf oge, %24, %25 : vector<64x16xf32>
    %cst_12 = arith.constant 2.000000e-01 : f32
    %27 = vector.broadcast %cst_12 : f32 to vector<64x16xf32>
    %28 = arith.mulf %27, %24 : vector<64x16xf32>
    %29 = arith.select %26, %24, %28 : vector<64x16xi1>, vector<64x16xf32>
    %30 = arith.truncf %29 : vector<64x16xf32> to vector<64x16xbf16>
    %c0_13 = arith.constant 0 : index
    %c0_14 = arith.constant 0 : index
    %c0_15 = arith.constant 0 : index
    %31 = vector.load %arg4[%c0_13, %c0_14, %c0_15] : memref<1x64x16xbf16, #tpu.memory_space<vmem>>, vector<1x64x16xbf16>
    %32 = vector.shape_cast %31 : vector<1x64x16xbf16> to vector<64x16xbf16>
    %33 = vector.shape_cast %30 : vector<64x16xbf16> to vector<1x64x16xbf16>
    tpu.vector_store %arg4[%c0_13, %c0_14, %c0_15], %33 {strides = array<i32>} : memref<1x64x16xbf16, #tpu.memory_space<vmem>>, vector<1x64x16xbf16>,
    return
  }
  func.func @transform_0(%arg0: i32) -> (i32, i32, i32) {
    %c0_i32 = arith.constant 0 : i32
    %c0_i32_0 = arith.constant 0 : i32
    %c0_i32_1 = arith.constant 0 : i32
    return %arg0, %c0_i32, %c0_i32_0 : i32, i32, i32
  }
  func.func @transform_1(%arg0: i32) -> (i32, i32) {
    %c0_i32 = arith.constant 0 : i32
    %c0_i32_0 = arith.constant 0 : i32
    %c0_i32_1 = arith.constant 0 : i32
    return %c0_i32, %c0_i32_0 : i32, i32
  }
  func.func @transform_2(%arg0: i32) -> (i32, i32) {
    %c0_i32 = arith.constant 0 : i32
    %c0_i32_0 = arith.constant 0 : i32
    %c0_i32_1 = arith.constant 0 : i32
    return %c0_i32, %c0_i32_0 : i32, i32
  }
  func.func @transform_3(%arg0: i32) -> (i32, i32, i32) {
    %c0_i32 = arith.constant 0 : i32
    %c0_i32_0 = arith.constant 0 : i32
    %c0_i32_1 = arith.constant 0 : i32
    return %arg0, %c0_i32, %c0_i32_0 : i32, i32, i32
  }
}

module attributes {stable_mosaic.version = 11 : i64} {
  func.func @_conv_block_kernel(%arg0: i32, %arg1: memref<1x16x256xbf16, #tpu.memory_space<vmem>>, %arg2: memref<256x32xbf16, #tpu.memory_space<vmem>>, %arg3: memref<1x32xf32, #tpu.memory_space<vmem>>, %arg4: memref<1x16x32xbf16, #tpu.memory_space<vmem>>) attributes {dimension_semantics = [#tpu.dimension_semantics<parallel>], iteration_bounds = array<i64: 2>, scalar_prefetch = 0 : i64, scratch_operands = 0 : i64, tpu.core_type = #tpu.core_type<tc>, window_params = [{transform_indices = @transform_0, window_bounds = array<i64: 1, 16, 256>}, {pipeline_mode = #tpu.pipeline_mode<synchronous>, transform_indices = @transform_1, window_bounds = array<i64: 256, 32>}, {pipeline_mode = #tpu.pipeline_mode<synchronous>, transform_indices = @transform_2, window_bounds = array<i64: 1, 32>}, {transform_indices = @transform_3, window_bounds = array<i64: 1, 16, 32>}]} {
    %c0 = arith.constant 0 : index
    %c0_0 = arith.constant 0 : index
    %c0_1 = arith.constant 0 : index
    %0 = vector.load %arg1[%c0, %c0_0, %c0_1] : memref<1x16x256xbf16, #tpu.memory_space<vmem>>, vector<1x16x256xbf16>
    %1 = vector.shape_cast %0 : vector<1x16x256xbf16> to vector<16x256xbf16>
    %c0_2 = arith.constant 0 : index
    %c0_3 = arith.constant 0 : index
    %2 = vector.load %arg2[%c0_2, %c0_3] : memref<256x32xbf16, #tpu.memory_space<vmem>>, vector<256x32xbf16>
    %cst = arith.constant dense<0.000000e+00> : vector<16x32xf32>
    %3 = tpu.matmul %1, %2, %cst {dimension_numbers = #tpu.dot_dimension_numbers<[1], [0], [0], [1], [0, 0, 1, 1], [], []>} : vector<16x256xbf16>, vector<256x32xbf16>, vector<16x32xf32> -> vector<16x32xf32>
    %c0_4 = arith.constant 0 : index
    %c0_5 = arith.constant 0 : index
    %4 = vector.load %arg3[%c0_4, %c0_5] : memref<1x32xf32, #tpu.memory_space<vmem>>, vector<1x32xf32>
    %5 = vector.broadcast %4 : vector<1x32xf32> to vector<16x32xf32>
    %6 = arith.addf %3, %5 : vector<16x32xf32>
    %cst_6 = arith.constant dense<0.000000e+00> : vector<32xf32>
    %7 = vector.multi_reduction <add>, %6, %cst_6 [0] : vector<16x32xf32> to vector<32xf32>
    %8 = vector.shape_cast %7 : vector<32xf32> to vector<1x32xf32>
    %cst_7 = arith.constant 1.600000e+01 : f32
    %9 = vector.broadcast %cst_7 : f32 to vector<1x32xf32>
    %10 = arith.divf %8, %9 : vector<1x32xf32>
    %11 = vector.broadcast %10 : vector<1x32xf32> to vector<16x32xf32>
    %12 = arith.subf %6, %11 : vector<16x32xf32>
    %13 = arith.mulf %12, %12 : vector<16x32xf32>
    %cst_8 = arith.constant dense<0.000000e+00> : vector<32xf32>
    %14 = vector.multi_reduction <add>, %13, %cst_8 [0] : vector<16x32xf32> to vector<32xf32>
    %15 = vector.shape_cast %14 : vector<32xf32> to vector<1x32xf32>
    %cst_9 = arith.constant 1.600000e+01 : f32
    %16 = vector.broadcast %cst_9 : f32 to vector<1x32xf32>
    %17 = arith.divf %15, %16 : vector<1x32xf32>
    %18 = vector.broadcast %10 : vector<1x32xf32> to vector<16x32xf32>
    %19 = arith.subf %6, %18 : vector<16x32xf32>
    %cst_10 = arith.constant 9.99999974E-6 : f32
    %20 = vector.broadcast %cst_10 : f32 to vector<1x32xf32>
    %21 = arith.addf %17, %20 : vector<1x32xf32>
    %22 = math.rsqrt %21 : vector<1x32xf32>
    %23 = vector.broadcast %22 : vector<1x32xf32> to vector<16x32xf32>
    %24 = arith.mulf %19, %23 : vector<16x32xf32>
    %cst_11 = arith.constant 0.000000e+00 : f32
    %25 = vector.broadcast %cst_11 : f32 to vector<16x32xf32>
    %26 = arith.cmpf oge, %24, %25 : vector<16x32xf32>
    %cst_12 = arith.constant 2.000000e-01 : f32
    %27 = vector.broadcast %cst_12 : f32 to vector<16x32xf32>
    %28 = arith.mulf %27, %24 : vector<16x32xf32>
    %29 = arith.select %26, %24, %28 : vector<16x32xi1>, vector<16x32xf32>
    %30 = arith.truncf %29 : vector<16x32xf32> to vector<16x32xbf16>
    %c0_13 = arith.constant 0 : index
    %c0_14 = arith.constant 0 : index
    %c0_15 = arith.constant 0 : index
    %31 = vector.load %arg4[%c0_13, %c0_14, %c0_15] : memref<1x16x32xbf16, #tpu.memory_space<vmem>>, vector<1x16x32xbf16>
    %32 = vector.shape_cast %31 : vector<1x16x32xbf16> to vector<16x32xbf16>
    %33 = vector.shape_cast %30 : vector<16x32xbf16> to vector<1x16x32xbf16>
    tpu.vector_store %arg4[%c0_13, %c0_14, %c0_15], %33 {strides = array<i32>} : memref<1x16x32xbf16, #tpu.memory_space<vmem>>, vector<1x16x32xbf16>,
    return
  }
  func.func @transform_0(%arg0: i32) -> (i32, i32, i32) {
    %c0_i32 = arith.constant 0 : i32
    %c0_i32_0 = arith.constant 0 : i32
    %c0_i32_1 = arith.constant 0 : i32
    return %arg0, %c0_i32, %c0_i32_0 : i32, i32, i32
  }
  func.func @transform_1(%arg0: i32) -> (i32, i32) {
    %c0_i32 = arith.constant 0 : i32
    %c0_i32_0 = arith.constant 0 : i32
    %c0_i32_1 = arith.constant 0 : i32
    return %c0_i32, %c0_i32_0 : i32, i32
  }
  func.func @transform_2(%arg0: i32) -> (i32, i32) {
    %c0_i32 = arith.constant 0 : i32
    %c0_i32_0 = arith.constant 0 : i32
    %c0_i32_1 = arith.constant 0 : i32
    return %c0_i32, %c0_i32_0 : i32, i32
  }
  func.func @transform_3(%arg0: i32) -> (i32, i32, i32) {
    %c0_i32 = arith.constant 0 : i32
    %c0_i32_0 = arith.constant 0 : i32
    %c0_i32_1 = arith.constant 0 : i32
    return %arg0, %c0_i32, %c0_i32_0 : i32, i32, i32
  }
}

module attributes {stable_mosaic.version = 11 : i64} {
  func.func @_conv_block_kernel(%arg0: i32, %arg1: memref<1x1x512xbf16, #tpu.memory_space<vmem>>, %arg2: memref<512x8xbf16, #tpu.memory_space<vmem>>, %arg3: memref<1x8xf32, #tpu.memory_space<vmem>>, %arg4: memref<1x1x8xf32, #tpu.memory_space<vmem>>) attributes {dimension_semantics = [#tpu.dimension_semantics<parallel>], iteration_bounds = array<i64: 2>, scalar_prefetch = 0 : i64, scratch_operands = 0 : i64, tpu.core_type = #tpu.core_type<tc>, window_params = [{transform_indices = @transform_0, window_bounds = array<i64: 1, 1, 512>}, {pipeline_mode = #tpu.pipeline_mode<synchronous>, transform_indices = @transform_1, window_bounds = array<i64: 512, 8>}, {pipeline_mode = #tpu.pipeline_mode<synchronous>, transform_indices = @transform_2, window_bounds = array<i64: 1, 8>}, {transform_indices = @transform_3, window_bounds = array<i64: 1, 1, 8>}]} {
    %c0 = arith.constant 0 : index
    %c0_0 = arith.constant 0 : index
    %c0_1 = arith.constant 0 : index
    %0 = vector.load %arg1[%c0, %c0_0, %c0_1] : memref<1x1x512xbf16, #tpu.memory_space<vmem>>, vector<1x1x512xbf16>
    %1 = vector.shape_cast %0 : vector<1x1x512xbf16> to vector<1x512xbf16>
    %c0_2 = arith.constant 0 : index
    %c0_3 = arith.constant 0 : index
    %2 = vector.load %arg2[%c0_2, %c0_3] : memref<512x8xbf16, #tpu.memory_space<vmem>>, vector<512x8xbf16>
    %cst = arith.constant dense<0.000000e+00> : vector<1x8xf32>
    %3 = tpu.matmul %1, %2, %cst {dimension_numbers = #tpu.dot_dimension_numbers<[1], [0], [0], [1], [0, 0, 1, 1], [], []>} : vector<1x512xbf16>, vector<512x8xbf16>, vector<1x8xf32> -> vector<1x8xf32>
    %c0_4 = arith.constant 0 : index
    %c0_5 = arith.constant 0 : index
    %4 = vector.load %arg3[%c0_4, %c0_5] : memref<1x8xf32, #tpu.memory_space<vmem>>, vector<1x8xf32>
    %5 = arith.addf %3, %4 : vector<1x8xf32>
    %c0_6 = arith.constant 0 : index
    %c0_7 = arith.constant 0 : index
    %c0_8 = arith.constant 0 : index
    %6 = vector.load %arg4[%c0_6, %c0_7, %c0_8] : memref<1x1x8xf32, #tpu.memory_space<vmem>>, vector<1x1x8xf32>
    %7 = vector.shape_cast %6 : vector<1x1x8xf32> to vector<1x8xf32>
    %8 = vector.shape_cast %5 : vector<1x8xf32> to vector<1x1x8xf32>
    tpu.vector_store %arg4[%c0_6, %c0_7, %c0_8], %8 {strides = array<i32>} : memref<1x1x8xf32, #tpu.memory_space<vmem>>, vector<1x1x8xf32>,
    return
  }
  func.func @transform_0(%arg0: i32) -> (i32, i32, i32) {
    %c0_i32 = arith.constant 0 : i32
    %c0_i32_0 = arith.constant 0 : i32
    %c0_i32_1 = arith.constant 0 : i32
    return %arg0, %c0_i32, %c0_i32_0 : i32, i32, i32
  }
  func.func @transform_1(%arg0: i32) -> (i32, i32) {
    %c0_i32 = arith.constant 0 : i32
    %c0_i32_0 = arith.constant 0 : i32
    %c0_i32_1 = arith.constant 0 : i32
    return %c0_i32, %c0_i32_0 : i32, i32
  }
  func.func @transform_2(%arg0: i32) -> (i32, i32) {
    %c0_i32 = arith.constant 0 : i32
    %c0_i32_0 = arith.constant 0 : i32
    %c0_i32_1 = arith.constant 0 : i32
    return %c0_i32, %c0_i32_0 : i32, i32
  }
  func.func @transform_3(%arg0: i32) -> (i32, i32, i32) {
    %c0_i32 = arith.constant 0 : i32
    %c0_i32_0 = arith.constant 0 : i32
    %c0_i32_1 = arith.constant 0 : i32
    return %arg0, %c0_i32, %c0_i32_0 : i32, i32, i32
  }
}

</mosaic_0001>

<llo_original>
// kernel: image_encoder_forward.5
$region0: #{image_encoder_forward.5}
  #allocation0 [shape = 'u32[]', space=smem, size = 0x4, offset = 0x4, fixed_abs, tag = 'smem constant byte address 0x4 - core index']
  #allocation1 [shape = 'u32[144,128]{1,0:T(1,128)}', space=vmem, size = 0x12000, scoped, tag = 'internal scratch']
  %s0 = inlined_call_operand.vmem [shape: bf16[2,1024,48], index: 0, kind: input, shape index: {}]
  %s1 = inlined_call_operand.vmem [shape: bf16[48,4], index: 1, kind: input, shape index: {}]
  %s2 = inlined_call_operand.vmem [shape: f32[1,4], index: 2, kind: input, shape index: {}]
  %s3 = inlined_call_operand.vmem [shape: bf16[2,1024,4], index: 3, kind: output, shape index: {}]
  %s4 = sld [smem:[#allocation0]]
  $region45: #{image_encoder_forward.5} parent=0
    _
  %s6 = ssub.s32 1, %s4
  %s7 = scalar_select 0, %s6, %s4
  loop: start=0, step=1, limit=4
  $region2: #{image_encoder_forward.5} parent=0 // loop_pre_header
    _
  $region3: #{image_encoder_forward.5} parent=0 // loop_header
    %s9 = sphi 0, %s13
    %p10 = scmp.ge.s32.totalorder %s9, 4
    %s19 = sphi 0, %s21
    %s22 = sphi 0, %s19
    %s23 = sphi 0, %s22
    %s39 = sphi 0, %s23
    %s43 = sphi 0, %s43
    %s45 = sphi 0, %s43
    %s46 = sphi 0, %s45
    %s60 = sphi 0, %s46
    %s64 = sphi 0, %s64
    %s66 = sphi 0, %s64
    %s67 = sphi 0, %s66
    %s81 = sphi 0, %s67
    %s87 = sphi 0, %s89
    %s90 = sphi 0, %s87
    %s91 = sphi 0, %s90
    %s107 = sphi 0, %s91
  $region4: #{image_encoder_forward.5} parent=0 // loop_header_branch
    %12 = sbr.rel (%p10) target = $region8
  $region5: #{image_encoder_forward.5} parent=0 // loop_body
    %s14 = ssub.s32 %s9, 1
    %s15 = ssub.s32 %s9, 2
    %s16 = sadd.s32 %s9, 1
    %s17 = ssub.s32 %s9, %s16
    %p18 = scmp.eq.s32.totalorder %s17, 0
    %s20 = sadd.s32 %s19, 1
    %s21 = scalar_select %p18, %s19, %s20
    %p24 = pneg %p18
    %p25 = scmp.eq.s32.totalorder %s9, 1
    %p26 = por %p24, %p25
    %p27 = scmp.ne.s32.totalorder %s19, %s22
    %p28 = scmp.eq.s32.totalorder %s9, 0
    %p29 = por %p27, %p28
    %p30 = scmp.ne.s32.totalorder %s19, %s22
    %p31 = scmp.eq.s32.totalorder %s14, 1
    %p32 = por %p30, %p31
    %p33 = scmp.ne.s32.totalorder %s22, %s23
    %p34 = scmp.eq.s32.totalorder %s14, 0
    %p35 = por %p33, %p34
    %p36 = scmp.ne.s32.totalorder %s22, %s23
    %p37 = scmp.eq.s32.totalorder %s15, 1
    %p38 = por %p36, %p37
    %p40 = scmp.ne.s32.totalorder %s23, %s39
    %p41 = scmp.eq.s32.totalorder %s15, 0
    %p42 = por %p40, %p41
    %s44 = sadd.s32 %s43, 1
    %p47 = scmp.eq.s32.totalorder %s9, 1
    %p48 = scmp.ne.s32.totalorder %s43, %s45
    %p49 = scmp.eq.s32.totalorder %s9, 0
    %p50 = por %p48, %p49
    %p51 = scmp.ne.s32.totalorder %s43, %s45
    %p52 = scmp.eq.s32.totalorder %s14, 1
    %p53 = por %p51, %p52
    %p54 = scmp.ne.s32.totalorder %s45, %s46
    %p55 = scmp.eq.s32.totalorder %s14, 0
    %p56 = por %p54, %p55
    %p57 = scmp.ne.s32.totalorder %s45, %s46
    %p58 = scmp.eq.s32.totalorder %s15, 1
    %p59 = por %p57, %p58
    %p61 = scmp.ne.s32.totalorder %s46, %s60
    %p62 = scmp.eq.s32.totalorder %s15, 0
    %p63 = por %p61, %p62
    %s65 = sadd.s32 %s64, 1
    %p68 = scmp.eq.s32.totalorder %s9, 1
    %p69 = scmp.ne.s32.totalorder %s64, %s66
    %p70 = scmp.eq.s32.totalorder %s9, 0
    %p71 = por %p69, %p70
    %p72 = scmp.ne.s32.totalorder %s64, %s66
    %p73 = scmp.eq.s32.totalorder %s14, 1
    %p74 = por %p72, %p73
    %p75 = scmp.ne.s32.totalorder %s66, %s67
    %p76 = scmp.eq.s32.totalorder %s14, 0
    %p77 = por %p75, %p76
    %p78 = scmp.ne.s32.totalorder %s66, %s67
    %p79 = scmp.eq.s32.totalorder %s15, 1
    %p80 = por %p78, %p79
    %p82 = scmp.ne.s32.totalorder %s67, %s81
    %p83 = scmp.eq.s32.totalorder %s15, 0
    %p84 = por %p82, %p83
    %s85 = ssub.s32 %s9, %s16
    %p86 = scmp.eq.s32.totalorder %s85, 0
    %s88 = sadd.s32 %s87, 1
    %s89 = scalar_select %p86, %s87, %s88
    %p92 = pneg %p86
    %p93 = scmp.eq.s32.totalorder %s9, 1
    %p94 = por %p92, %p93
    %p95 = scmp.ne.s32.totalorder %s87, %s90
    %p96 = scmp.eq.s32.totalorder %s9, 0
    %p97 = por %p95, %p96
    %p98 = scmp.ne.s32.totalorder %s87, %s90
    %p99 = scmp.eq.s32.totalorder %s14, 1
    %p100 = por %p98, %p99
    %p101 = scmp.ne.s32.totalorder %s90, %s91
    %p102 = scmp.eq.s32.totalorder %s14, 0
    %p103 = por %p101, %p102
    %p104 = scmp.ne.s32.totalorder %s90, %s91
    %p105 = scmp.eq.s32.totalorder %s15, 1
    %p106 = por %p104, %p105
    %p108 = scmp.ne.s32.totalorder %s91, %s107
    %p109 = scmp.eq.s32.totalorder %s15, 0
    %p110 = por %p108, %p109
    %p111 = scmp.le.s32.totalorder 1, %s9
    %p112 = scmp.lt.s32.totalorder %s9, 3
    %p113 = pnand %p111, %p112
    %p114 = pneg %p113
    // Predicated region
    $region9: #{image_encoder_forward.5} parent=5 // pred_check
      _
    $region10: #{image_encoder_forward.5} parent=5 // pred_check_branch
      %116 = sbr.rel (%p113) target = $region12
    $region11: #{image_encoder_forward.5} parent=5 // pred_region
      %s117 = ssub.s32 %s9, 1
      // Predicated region
      $region13: #{image_encoder_forward.5} parent=11 // pred_check
        %p118 = pneg %p56
      $region14: #{image_encoder_forward.5} parent=11 // pred_check_branch
        %120 = sbr.rel (%p118) target = $region16
      $region15: #{image_encoder_forward.5} parent=11 // pred_region
        _
      $region16: #{image_encoder_forward.5} parent=11 // pred_fallthru
        _
      // Predicated region
      $region17: #{image_encoder_forward.5} parent=11 // pred_check
        %p121 = pneg %p77
      $region18: #{image_encoder_forward.5} parent=11 // pred_check_branch
        %123 = sbr.rel (%p121) target = $region20
      $region19: #{image_encoder_forward.5} parent=11 // pred_region
        _
      $region20: #{image_encoder_forward.5} parent=11 // pred_fallthru
        _
    $region12: #{image_encoder_forward.5} parent=5 // pred_fallthru
      _
    %p124 = scmp.lt.s32.totalorder %s9, 2
    // Predicated region
    $region21: #{image_encoder_forward.5} parent=5 // pred_check
      %p125 = pneg %p124
    $region22: #{image_encoder_forward.5} parent=5 // pred_check_branch
      %127 = sbr.rel (%p125) target = $region24
    $region23: #{image_encoder_forward.5} parent=5 // pred_region
      // Predicated region
      $region25: #{image_encoder_forward.5} parent=23 // pred_check
        %p128 = pneg %p29
      $region26: #{image_encoder_forward.5} parent=23 // pred_check_branch
        %130 = sbr.rel (%p128) target = $region28
      $region27: #{image_encoder_forward.5} parent=23 // pred_region
        %p131 = scmp.lt.s32.totalorder %s9, 1
        %s132 = scalar_select %p131, %s9, 1
        %s133 = smul.addr %s132, 128
        %s134 = smul.addr %s133, 4
        %s135 = scalar_lea.vmem %s0, %s134
      $region28: #{image_encoder_forward.5} parent=23 // pred_fallthru
        _
    $region24: #{image_encoder_forward.5} parent=5 // pred_fallthru
      _
    %p136 = scmp.le.s32.totalorder 1, %s9
    %p137 = scmp.lt.s32.totalorder %s9, 3
    %p138 = pnand %p136, %p137
    %p139 = pneg %p138
    // Predicated region
    $region29: #{image_encoder_forward.5} parent=5 // pred_check
      _
    $region30: #{image_encoder_forward.5} parent=5 // pred_check_branch
      %141 = sbr.rel (%p138) target = $region32
    $region31: #{image_encoder_forward.5} parent=5 // pred_region
      %s142 = ssub.s32 %s9, 1
      %p143 = scmp.lt.s32.totalorder %s14, 1
      %s144 = scalar_select %p143, %s14, 1
      %s145 = smul.addr %s144, 128
      %s146 = smul.addr %s145, 4
      %s147 = scalar_lea.vmem %s0, %s146
      %p148 = pneg %p35
      %p149 = pneg %p32
      %p150 = pneg %p56
      %p151 = pneg %p53
      %p152 = pneg %p77
      %p153 = pneg %p74
      %p154 = pneg %p103
      %p155 = pneg %p100
      %p156 = scmp.lt.s32.totalorder %s14, 1
      %s157 = scalar_select %p156, %s14, 1
      %s158 = smul.addr %s157, 128
      %s159 = smul.addr %s158, 4
      %s160 = scalar_lea.vmem %s3, %s159
      %p161 = scmp.lt.s32.totalorder %s14, 1
      %s162 = scalar_select %p161, %s14, 1
      %s163 = smul.addr %s162, 128
      %s164 = smul.addr %s163, 4
      %s165 = scalar_lea.vmem %s0, %s164
      %p166 = scmp.lt.s32.totalorder %s14, 1
      %s167 = scalar_select %p166, %s14, 1
      %s168 = smul.addr %s167, 128
      %s169 = smul.addr %s168, 4
      %s170 = scalar_lea.vmem %s3, %s169
      %v172 = vld [vmem:[%s165] sm:$0xf]
      %v173 = vld [vmem:[%s165 + $0x4] sm:$0xf]
      %v174 = vld [vmem:[%s165 + $0x8] sm:$0xf]
      %v175 = vld [vmem:[%s165 + $0xc] sm:$0xf]
      %v176 = vld [vmem:[%s165 + $0x10] sm:$0xf]
      %v177 = vld [vmem:[%s165 + $0x14] sm:$0xf]
      %v178 = vld [vmem:[%s165 + $0x18] sm:$0xf]
      %v179 = vld [vmem:[%s165 + $0x1c] sm:$0xf]
      %v180 = vld [vmem:[%s165 + $0x20] sm:$0xf]
      %v181 = vld [vmem:[%s165 + $0x24] sm:$0xf]
      %v182 = vld [vmem:[%s165 + $0x28] sm:$0xf]
      %v183 = vld [vmem:[%s165 + $0x2c] sm:$0xf]
      %v184 = vld [vmem:[%s165 + $0x30] sm:$0xf]
      %v185 = vld [vmem:[%s165 + $0x34] sm:$0xf]
      %v186 = vld [vmem:[%s165 + $0x38] sm:$0xf]
      %v187 = vld [vmem:[%s165 + $0x3c] sm:$0xf]
      %v188 = vld [vmem:[%s165 + $0x40] sm:$0xf]
      %v189 = vld [vmem:[%s165 + $0x44] sm:$0xf]
      %v190 = vld [vmem:[%s165 + $0x48] sm:$0xf]
      %v191 = vld [vmem:[%s165 + $0x4c] sm:$0xf]
      %v192 = vld [vmem:[%s165 + $0x50] sm:$0xf]
      %v193 = vld [vmem:[%s165 + $0x54] sm:$0xf]
      %v194 = vld [vmem:[%s165 + $0x58] sm:$0xf]
      %v195 = vld [vmem:[%s165 + $0x5c] sm:$0xf]
      %v196 = vld [vmem:[%s165 + $0x60] sm:$0xf]
      %v197 = vld [vmem:[%s165 + $0x64] sm:$0xf]
      %v198 = vld [vmem:[%s165 + $0x68] sm:$0xf]
      %v199 = vld [vmem:[%s165 + $0x6c] sm:$0xf]
      %v200 = vld [vmem:[%s165 + $0x70] sm:$0xf]
      %v201 = vld [vmem:[%s165 + $0x74] sm:$0xf]
      %v202 = vld [vmem:[%s165 + $0x78] sm:$0xf]
      %v203 = vld [vmem:[%s165 + $0x7c] sm:$0xf]
      %v204 = vld [vmem:[%s165 + $0x80] sm:$0xf]
      %v205 = vld [vmem:[%s165 + $0x84] sm:$0xf]
      %v206 = vld [vmem:[%s165 + $0x88] sm:$0xf]
      %v207 = vld [vmem:[%s165 + $0x8c] sm:$0xf]
      %v208 = vld [vmem:[%s165 + $0x90] sm:$0xf]
      %v209 = vld [vmem:[%s165 + $0x94] sm:$0xf]
      %v210 = vld [vmem:[%s165 + $0x98] sm:$0xf]
      %v211 = vld [vmem:[%s165 + $0x9c] sm:$0xf]
      %v212 = vld [vmem:[%s165 + $0xa0] sm:$0xf]
      %v213 = vld [vmem:[%s165 + $0xa4] sm:$0xf]
      %v214 = vld [vmem:[%s165 + $0xa8] sm:$0xf]
      %v215 = vld [vmem:[%s165 + $0xac] sm:$0xf]
      %v216 = vld [vmem:[%s165 + $0xb0] sm:$0xf]
      %v217 = vld [vmem:[%s165 + $0xb4] sm:$0xf]
      %v218 = vld [vmem:[%s165 + $0xb8] sm:$0xf]
      %v219 = vld [vmem:[%s165 + $0xbc] sm:$0xf]
      %v220 = vld [vmem:[%s165 + $0xc0] sm:$0xf]
      %v221 = vld [vmem:[%s165 + $0xc4] sm:$0xf]
      %v222 = vld [vmem:[%s165 + $0xc8] sm:$0xf]
      %v223 = vld [vmem:[%s165 + $0xcc] sm:$0xf]
      %v224 = vld [vmem:[%s165 + $0xd0] sm:$0xf]
      %v225 = vld [vmem:[%s165 + $0xd4] sm:$0xf]
      %v226 = vld [vmem:[%s165 + $0xd8] sm:$0xf]
      %v227 = vld [vmem:[%s165 + $0xdc] sm:$0xf]
      %v228 = vld [vmem:[%s165 + $0xe0] sm:$0xf]
      %v229 = vld [vmem:[%s165 + $0xe4] sm:$0xf]
      %v230 = vld [vmem:[%s165 + $0xe8] sm:$0xf]
      %v231 = vld [vmem:[%s165 + $0xec] sm:$0xf]
      %v232 = vld [vmem:[%s165 + $0xf0] sm:$0xf]
      %v233 = vld [vmem:[%s165 + $0xf4] sm:$0xf]
      %v234 = vld [vmem:[%s165 + $0xf8] sm:$0xf]
      %v235 = vld [vmem:[%s165 + $0xfc] sm:$0xf]
      %v236 = vld [vmem:[%s165 + $0x100] sm:$0xf]
      %v237 = vld [vmem:[%s165 + $0x104] sm:$0xf]
      %v238 = vld [vmem:[%s165 + $0x108] sm:$0xf]
      %v239 = vld [vmem:[%s165 + $0x10c] sm:$0xf]
      %v240 = vld [vmem:[%s165 + $0x110] sm:$0xf]
      %v241 = vld [vmem:[%s165 + $0x114] sm:$0xf]
      %v242 = vld [vmem:[%s165 + $0x118] sm:$0xf]
      %v243 = vld [vmem:[%s165 + $0x11c] sm:$0xf]
      %v244 = vld [vmem:[%s165 + $0x120] sm:$0xf]
      %v245 = vld [vmem:[%s165 + $0x124] sm:$0xf]
      %v246 = vld [vmem:[%s165 + $0x128] sm:$0xf]
      %v247 = vld [vmem:[%s165 + $0x12c] sm:$0xf]
      %v248 = vld [vmem:[%s165 + $0x130] sm:$0xf]
      %v249 = vld [vmem:[%s165 + $0x134] sm:$0xf]
      %v250 = vld [vmem:[%s165 + $0x138] sm:$0xf]
      %v251 = vld [vmem:[%s165 + $0x13c] sm:$0xf]
      %v252 = vld [vmem:[%s165 + $0x140] sm:$0xf]
      %v253 = vld [vmem:[%s165 + $0x144] sm:$0xf]
      %v254 = vld [vmem:[%s165 + $0x148] sm:$0xf]
      %v255 = vld [vmem:[%s165 + $0x14c] sm:$0xf]
      %v256 = vld [vmem:[%s165 + $0x150] sm:$0xf]
      %v257 = vld [vmem:[%s165 + $0x154] sm:$0xf]
      %v258 = vld [vmem:[%s165 + $0x158] sm:$0xf]
      %v259 = vld [vmem:[%s165 + $0x15c] sm:$0xf]
      %v260 = vld [vmem:[%s165 + $0x160] sm:$0xf]
      %v261 = vld [vmem:[%s165 + $0x164] sm:$0xf]
      %v262 = vld [vmem:[%s165 + $0x168] sm:$0xf]
      %v263 = vld [vmem:[%s165 + $0x16c] sm:$0xf]
      %v264 = vld [vmem:[%s165 + $0x170] sm:$0xf]
      %v265 = vld [vmem:[%s165 + $0x174] sm:$0xf]
      %v266 = vld [vmem:[%s165 + $0x178] sm:$0xf]
      %v267 = vld [vmem:[%s165 + $0x17c] sm:$0xf]
      %v268 = vld [vmem:[%s165 + $0x180] sm:$0xf]
      %v269 = vld [vmem:[%s165 + $0x184] sm:$0xf]
      %v270 = vld [vmem:[%s165 + $0x188] sm:$0xf]
      %v271 = vld [vmem:[%s165 + $0x18c] sm:$0xf]
      %v272 = vld [vmem:[%s165 + $0x190] sm:$0xf]
      %v273 = vld [vmem:[%s165 + $0x194] sm:$0xf]
      %v274 = vld [vmem:[%s165 + $0x198] sm:$0xf]
      %v275 = vld [vmem:[%s165 + $0x19c] sm:$0xf]
      %v276 = vld [vmem:[%s165 + $0x1a0] sm:$0xf]
      %v277 = vld [vmem:[%s165 + $0x1a4] sm:$0xf]
      %v278 = vld [vmem:[%s165 + $0x1a8] sm:$0xf]
      %v279 = vld [vmem:[%s165 + $0x1ac] sm:$0xf]
      %v280 = vld [vmem:[%s165 + $0x1b0] sm:$0xf]
      %v281 = vld [vmem:[%s165 + $0x1b4] sm:$0xf]
      %v282 = vld [vmem:[%s165 + $0x1b8] sm:$0xf]
      %v283 = vld [vmem:[%s165 + $0x1bc] sm:$0xf]
      %v284 = vld [vmem:[%s165 + $0x1c0] sm:$0xf]
      %v285 = vld [vmem:[%s165 + $0x1c4] sm:$0xf]
      %v286 = vld [vmem:[%s165 + $0x1c8] sm:$0xf]
      %v287 = vld [vmem:[%s165 + $0x1cc] sm:$0xf]
      %v288 = vld [vmem:[%s165 + $0x1d0] sm:$0xf]
      %v289 = vld [vmem:[%s165 + $0x1d4] sm:$0xf]
      %v290 = vld [vmem:[%s165 + $0x1d8] sm:$0xf]
      %v291 = vld [vmem:[%s165 + $0x1dc] sm:$0xf]
      %v292 = vld [vmem:[%s165 + $0x1e0] sm:$0xf]
      %v293 = vld [vmem:[%s165 + $0x1e4] sm:$0xf]
      %v294 = vld [vmem:[%s165 + $0x1e8] sm:$0xf]
      %v295 = vld [vmem:[%s165 + $0x1ec] sm:$0xf]
      %v296 = vld [vmem:[%s165 + $0x1f0] sm:$0xf]
      %v297 = vld [vmem:[%s165 + $0x1f4] sm:$0xf]
      %v298 = vld [vmem:[%s165 + $0x1f8] sm:$0xf]
      %v299 = vld [vmem:[%s165 + $0x1fc] sm:$0xf]
      %v300 = vld [vmem:[%s1] sm:$0xf]
      %v301 = vld [vmem:[%s1 + $0x4] sm:$0xf]
      %v302 = vld [vmem:[%s1 + $0x8] sm:$0xf]
      %v303 = vld [vmem:[%s1 + $0xc] sm:$0xf]
      %v304 = vld [vmem:[%s1 + $0x10] sm:$0xf]
      %v305 = vld [vmem:[%s1 + $0x14] sm:$0xf]
      %v306 = vld [vmem:[%s2] sm:$0x1]
      %v308 = vlaneseq
      %v309 = vshrl.u32 %v308, 7
      %v310 = vsub.s32 0, %v309
      %v311 = vrot.slane %v306, %v310
      %v441 = vunpack.c.l.b16 %v172
      %v442 = vunpack.c.l.b16 %v173
      %v443 = vunpack.c.l.b16 %v174
      %v444 = vunpack.c.l.b16 %v175
      %v445 = vunpack.c.l.b16 %v176
      %v446 = vunpack.c.l.b16 %v177
      %v447 = vunpack.c.l.b16 %v178
      %v448 = vunpack.c.l.b16 %v179
      %v449 = vunpack.c.l.b16 %v180
      %v450 = vunpack.c.l.b16 %v181
      %v451 = vunpack.c.l.b16 %v182
      %v452 = vunpack.c.l.b16 %v183
      %v453 = vunpack.c.l.b16 %v184
      %v454 = vunpack.c.l.b16 %v185
      %v455 = vunpack.c.l.b16 %v186
      %v456 = vunpack.c.l.b16 %v187
      %v457 = vunpack.c.l.b16 %v188
      %v458 = vunpack.c.l.b16 %v189
      %v459 = vunpack.c.l.b16 %v190
      %v460 = vunpack.c.l.b16 %v191
      %v461 = vunpack.c.l.b16 %v192
      %v462 = vunpack.c.l.b16 %v193
      %v463 = vunpack.c.l.b16 %v194
      %v464 = vunpack.c.l.b16 %v195
      %v465 = vunpack.c.l.b16 %v196
      %v466 = vunpack.c.l.b16 %v197
      %v467 = vunpack.c.l.b16 %v198
      %v468 = vunpack.c.l.b16 %v199
      %v469 = vunpack.c.l.b16 %v200
      %v470 = vunpack.c.l.b16 %v201
      %v471 = vunpack.c.l.b16 %v202
      %v472 = vunpack.c.l.b16 %v203
      %v473 = vunpack.c.l.b16 %v204
      %v474 = vunpack.c.l.b16 %v205
      %v475 = vunpack.c.l.b16 %v206
      %v476 = vunpack.c.l.b16 %v207
      %v477 = vunpack.c.l.b16 %v208
      %v478 = vunpack.c.l.b16 %v209
      %v479 = vunpack.c.l.b16 %v210
      %v480 = vunpack.c.l.b16 %v211
      %v481 = vunpack.c.l.b16 %v212
      %v482 = vunpack.c.l.b16 %v213
      %v483 = vunpack.c.l.b16 %v214
      %v484 = vunpack.c.l.b16 %v215
      %v485 = vunpack.c.l.b16 %v216
      %v486 = vunpack.c.l.b16 %v217
      %v487 = vunpack.c.l.b16 %v218
      %v488 = vunpack.c.l.b16 %v219
      %v489 = vunpack.c.l.b16 %v220
      %v490 = vunpack.c.l.b16 %v221
      %v491 = vunpack.c.l.b16 %v222
      %v492 = vunpack.c.l.b16 %v223
      %v493 = vunpack.c.l.b16 %v224
      %v494 = vunpack.c.l.b16 %v225
      %v495 = vunpack.c.l.b16 %v226
      %v496 = vunpack.c.l.b16 %v227
      %v497 = vunpack.c.l.b16 %v228
      %v498 = vunpack.c.l.b16 %v229
      %v499 = vunpack.c.l.b16 %v230
      %v500 = vunpack.c.l.b16 %v231
      %v501 = vunpack.c.l.b16 %v232
      %v502 = vunpack.c.l.b16 %v233
      %v503 = vunpack.c.l.b16 %v234
      %v504 = vunpack.c.l.b16 %v235
      %v505 = vunpack.c.l.b16 %v236
      %v506 = vunpack.c.l.b16 %v237
      %v507 = vunpack.c.l.b16 %v238
      %v508 = vunpack.c.l.b16 %v239
      %v509 = vunpack.c.l.b16 %v240
      %v510 = vunpack.c.l.b16 %v241
      %v511 = vunpack.c.l.b16 %v242
      %v512 = vunpack.c.l.b16 %v243
      %v513 = vunpack.c.l.b16 %v244
      %v514 = vunpack.c.l.b16 %v245
      %v515 = vunpack.c.l.b16 %v246
      %v516 = vunpack.c.l.b16 %v247
      %v517 = vunpack.c.l.b16 %v248
      %v518 = vunpack.c.l.b16 %v249
      %v519 = vunpack.c.l.b16 %v250
      %v520 = vunpack.c.l.b16 %v251
      %v521 = vunpack.c.l.b16 %v252
      %v522 = vunpack.c.l.b16 %v253
      %v523 = vunpack.c.l.b16 %v254
      %v524 = vunpack.c.l.b16 %v255
      %v525 = vunpack.c.l.b16 %v256
      %v526 = vunpack.c.l.b16 %v257
      %v527 = vunpack.c.l.b16 %v258
      %v528 = vunpack.c.l.b16 %v259
      %v529 = vunpack.c.l.b16 %v260
      %v530 = vunpack.c.l.b16 %v261
      %v531 = vunpack.c.l.b16 %v262
      %v532 = vunpack.c.l.b16 %v263
      %v533 = vunpack.c.l.b16 %v264
      %v534 = vunpack.c.l.b16 %v265
      %v535 = vunpack.c.l.b16 %v266
      %v536 = vunpack.c.l.b16 %v267
      %v537 = vunpack.c.l.b16 %v268
      %v538 = vunpack.c.l.b16 %v269
      %v539 = vunpack.c.l.b16 %v270
      %v540 = vunpack.c.l.b16 %v271
      %v541 = vunpack.c.l.b16 %v272
      %v542 = vunpack.c.l.b16 %v273
      %v543 = vunpack.c.l.b16 %v274
      %v544 = vunpack.c.l.b16 %v275
      %v545 = vunpack.c.l.b16 %v276
      %v546 = vunpack.c.l.b16 %v277
      %v547 = vunpack.c.l.b16 %v278
      %v548 = vunpack.c.l.b16 %v279
      %v549 = vunpack.c.l.b16 %v280
      %v550 = vunpack.c.l.b16 %v281
      %v551 = vunpack.c.l.b16 %v282
      %v552 = vunpack.c.l.b16 %v283
      %v553 = vunpack.c.l.b16 %v284
      %v554 = vunpack.c.l.b16 %v285
      %v555 = vunpack.c.l.b16 %v286
      %v556 = vunpack.c.l.b16 %v287
      %v557 = vunpack.c.l.b16 %v288
      %v558 = vunpack.c.l.b16 %v289
      %v559 = vunpack.c.l.b16 %v290
      %v560 = vunpack.c.l.b16 %v291
      %v561 = vunpack.c.l.b16 %v292
      %v562 = vunpack.c.l.b16 %v293
      %v563 = vunpack.c.l.b16 %v294
      %v564 = vunpack.c.l.b16 %v295
      %v565 = vunpack.c.l.b16 %v296
      %v566 = vunpack.c.l.b16 %v297
      %v567 = vunpack.c.l.b16 %v298
      %v568 = vunpack.c.l.b16 %v299
      %v569 = vpack.c.b16 %v442, %v441
      %v570 = vpack.c.b16 %v444, %v443
      %v571 = vpack.c.b16 %v446, %v445
      %v572 = vpack.c.b16 %v448, %v447
      %v573 = vpack.c.b16 %v450, %v449
      %v574 = vpack.c.b16 %v452, %v451
      %v575 = vpack.c.b16 %v454, %v453
      %v576 = vpack.c.b16 %v456, %v455
      %v577 = vpack.c.b16 %v458, %v457
      %v578 = vpack.c.b16 %v460, %v459
      %v579 = vpack.c.b16 %v462, %v461
      %v580 = vpack.c.b16 %v464, %v463
      %v581 = vpack.c.b16 %v466, %v465
      %v582 = vpack.c.b16 %v468, %v467
      %v583 = vpack.c.b16 %v470, %v469
      %v584 = vpack.c.b16 %v472, %v471
      %v585 = vpack.c.b16 %v474, %v473
      %v586 = vpack.c.b16 %v476, %v475
      %v587 = vpack.c.b16 %v478, %v477
      %v588 = vpack.c.b16 %v480, %v479
      %v589 = vpack.c.b16 %v482, %v481
      %v590 = vpack.c.b16 %v484, %v483
      %v591 = vpack.c.b16 %v486, %v485
      %v592 = vpack.c.b16 %v488, %v487
      %v593 = vpack.c.b16 %v490, %v489
      %v594 = vpack.c.b16 %v492, %v491
      %v595 = vpack.c.b16 %v494, %v493
      %v596 = vpack.c.b16 %v496, %v495
      %v597 = vpack.c.b16 %v498, %v497
      %v598 = vpack.c.b16 %v500, %v499
      %v599 = vpack.c.b16 %v502, %v501
      %v600 = vpack.c.b16 %v504, %v503
      %v601 = vpack.c.b16 %v506, %v505
      %v602 = vpack.c.b16 %v508, %v507
      %v603 = vpack.c.b16 %v510, %v509
      %v604 = vpack.c.b16 %v512, %v511
      %v605 = vpack.c.b16 %v514, %v513
      %v606 = vpack.c.b16 %v516, %v515
      %v607 = vpack.c.b16 %v518, %v517
      %v608 = vpack.c.b16 %v520, %v519
      %v609 = vpack.c.b16 %v522, %v521
      %v610 = vpack.c.b16 %v524, %v523
      %v611 = vpack.c.b16 %v526, %v525
      %v612 = vpack.c.b16 %v528, %v527
      %v613 = vpack.c.b16 %v530, %v529
      %v614 = vpack.c.b16 %v532, %v531
      %v615 = vpack.c.b16 %v534, %v533
      %v616 = vpack.c.b16 %v536, %v535
      %v617 = vpack.c.b16 %v538, %v537
      %v618 = vpack.c.b16 %v540, %v539
      %v619 = vpack.c.b16 %v542, %v541
      %v620 = vpack.c.b16 %v544, %v543
      %v621 = vpack.c.b16 %v546, %v545
      %v622 = vpack.c.b16 %v548, %v547
      %v623 = vpack.c.b16 %v550, %v549
      %v624 = vpack.c.b16 %v552, %v551
      %v625 = vpack.c.b16 %v554, %v553
      %v626 = vpack.c.b16 %v556, %v555
      %v627 = vpack.c.b16 %v558, %v557
      %v628 = vpack.c.b16 %v560, %v559
      %v629 = vpack.c.b16 %v562, %v561
      %v630 = vpack.c.b16 %v564, %v563
      %v631 = vpack.c.b16 %v566, %v565
      %v632 = vpack.c.b16 %v568, %v567
      %v639 = vunpack.c.l.b16 %v300
      %v640 = vunpack.c.l.b16 %v301
      %v641 = vunpack.c.l.b16 %v302
      %v642 = vunpack.c.l.b16 %v303
      %v643 = vunpack.c.l.b16 %v304
      %v644 = vunpack.c.l.b16 %v305
      %v645 = vpack.c.b16 %v640, %v639
      %v646 = vpack.c.b16 %v642, %v641
      %v647 = vpack.c.b16 %v644, %v643
      %vm651 = vcmask 392192
      %v653 = vsel %vm651, %v569, 0
      %v656 = vsel %vm651, %v570, 0
      %v659 = vsel %vm651, %v571, 0
      %v662 = vsel %vm651, %v572, 0
      %v665 = vsel %vm651, %v573, 0
      %v668 = vsel %vm651, %v574, 0
      %v671 = vsel %vm651, %v575, 0
      %v674 = vsel %vm651, %v576, 0
      %v677 = vsel %vm651, %v577, 0
      %v680 = vsel %vm651, %v578, 0
      %v683 = vsel %vm651, %v579, 0
      %v686 = vsel %vm651, %v580, 0
      %v689 = vsel %vm651, %v581, 0
      %v692 = vsel %vm651, %v582, 0
      %v695 = vsel %vm651, %v583, 0
      %v698 = vsel %vm651, %v584, 0
      %v701 = vsel %vm651, %v585, 0
      %v704 = vsel %vm651, %v586, 0
      %v707 = vsel %vm651, %v587, 0
      %v710 = vsel %vm651, %v588, 0
      %v713 = vsel %vm651, %v589, 0
      %v716 = vsel %vm651, %v590, 0
      %v719 = vsel %vm651, %v591, 0
      %v722 = vsel %vm651, %v592, 0
      %v725 = vsel %vm651, %v593, 0
      %v728 = vsel %vm651, %v594, 0
      %v731 = vsel %vm651, %v595, 0
      %v734 = vsel %vm651, %v596, 0
      %v737 = vsel %vm651, %v597, 0
      %v740 = vsel %vm651, %v598, 0
      %v743 = vsel %vm651, %v599, 0
      %v746 = vsel %vm651, %v600, 0
      %v749 = vsel %vm651, %v601, 0
      %v752 = vsel %vm651, %v602, 0
      %v755 = vsel %vm651, %v603, 0
      %v758 = vsel %vm651, %v604, 0
      %v761 = vsel %vm651, %v605, 0
      %v764 = vsel %vm651, %v606, 0
      %v767 = vsel %vm651, %v607, 0
      %v770 = vsel %vm651, %v608, 0
      %v773 = vsel %vm651, %v609, 0
      %v776 = vsel %vm651, %v610, 0
      %v779 = vsel %vm651, %v611, 0
      %v782 = vsel %vm651, %v612, 0
      %v785 = vsel %vm651, %v613, 0
      %v788 = vsel %vm651, %v614, 0
      %v791 = vsel %vm651, %v615, 0
      %v794 = vsel %vm651, %v616, 0
      %v797 = vsel %vm651, %v617, 0
      %v800 = vsel %vm651, %v618, 0
      %v803 = vsel %vm651, %v619, 0
      %v806 = vsel %vm651, %v620, 0
      %v809 = vsel %vm651, %v621, 0
      %v812 = vsel %vm651, %v622, 0
      %v815 = vsel %vm651, %v623, 0
      %v818 = vsel %vm651, %v624, 0
      %v821 = vsel %vm651, %v625, 0
      %v824 = vsel %vm651, %v626, 0
      %v827 = vsel %vm651, %v627, 0
      %v830 = vsel %vm651, %v628, 0
      %v833 = vsel %vm651, %v629, 0
      %v836 = vsel %vm651, %v630, 0
      %v839 = vsel %vm651, %v631, 0
      %v842 = vsel %vm651, %v632, 0
      %844 = vmatprep.subr.bf16.mxu0 0
      %845 = vmatpush1.bf16.msra.mxu0 %v645
      %846 = vmatprep.subr.bf16.mxu0 0
      %847 = vmatpush1.bf16.msra.mxu0 %v646
      %848 = vmatprep.subr.bf16.mxu0 0
      %849 = vmatpush1.bf16.msra.mxu0 %v647
      %850 = vmatprep.subr.bf16.mxu0 0
      %851 = vmatpush1.bf16.msra.mxu0 0
      %852 = vmatprep.subr.bf16.mxu0 0
      %853 = vmatpush1.bf16.msra.mxu0 0
      %854 = vmatprep.subr.bf16.mxu0 0
      %855 = vmatpush1.bf16.msra.mxu0 0
      %856 = vmatprep.subr.bf16.mxu0 0
      %857 = vmatpush1.bf16.msra.mxu0 0
      %858 = vmatprep.subr.bf16.mxu0 0
      %859 = vmatpush1.bf16.msra.mxu0 0
      %860 = vmatprep.subr.bf16.mxu0 0
      %861 = vmatpush1.bf16.msra.mxu0 0
      %862 = vmatprep.subr.bf16.mxu0 0
      %863 = vmatpush1.bf16.msra.mxu0 0
      %864 = vmatprep.subr.bf16.mxu0 0
      %865 = vmatpush1.bf16.msra.mxu0 0
      %866 = vmatprep.subr.bf16.mxu0 0
      %867 = vmatpush1.bf16.msra.mxu0 0
      %868 = vmatprep.subr.bf16.mxu0 0
      %869 = vmatpush1.bf16.msra.mxu0 0
      %870 = vmatprep.subr.bf16.mxu0 0
      %871 = vmatpush1.bf16.msra.mxu0 0
      %872 = vmatprep.subr.bf16.mxu0 0
      %873 = vmatpush1.bf16.msra.mxu0 0
      %874 = vmatprep.subr.bf16.mxu0 0
      %875 = vmatpush1.bf16.msra.mxu0 0
      %876 = vmatprep.mubr.bf16.mxu0 0
      %877 = vmatmul.mubr.bf16.gmra.mrb[0].mxu0 %v653
      %v878 = vpop.f32.mrb[0].mxu0
      %v879 = vadd.f32 %v311, %v878
      %v880 = vpop.f32.mrb[0].mxu0
      %v881 = vpop.f32.mrb[0].mxu0
      %v882 = vadd.f32 %v311, %v881
      %v883 = vpop.f32.mrb[0].mxu0
      %884 = vmatprep.mubr.bf16.mxu0 0
      %885 = vmatmul.mubr.bf16.gmra.mrb[0].mxu0 %v656
      %v886 = vpop.f32.mrb[0].mxu0
      %v887 = vadd.f32 %v311, %v886
      %v888 = vpop.f32.mrb[0].mxu0
      %v889 = vpop.f32.mrb[0].mxu0
      %v890 = vadd.f32 %v311, %v889
      %v891 = vpop.f32.mrb[0].mxu0
      %892 = vmatprep.mubr.bf16.mxu0 0
      %893 = vmatmul.mubr.bf16.gmra.mrb[0].mxu0 %v659
      %v894 = vpop.f32.mrb[0].mxu0
      %v895 = vadd.f32 %v311, %v894
      %v896 = vpop.f32.mrb[0].mxu0
      %v897 = vpop.f32.mrb[0].mxu0
      %v898 = vadd.f32 %v311, %v897
      %v899 = vpop.f32.mrb[0].mxu0
      %900 = vmatprep.mubr.bf16.mxu0 0
      %901 = vmatmul.mubr.bf16.gmra.mrb[0].mxu0 %v662
      %v902 = vpop.f32.mrb[0].mxu0
      %v903 = vadd.f32 %v311, %v902
      %v904 = vpop.f32.mrb[0].mxu0
      %v905 = vpop.f32.mrb[0].mxu0
      %v906 = vadd.f32 %v311, %v905
      %v907 = vpop.f32.mrb[0].mxu0
      %908 = vmatprep.mubr.bf16.mxu0 0
      %909 = vmatmul.mubr.bf16.gmra.mrb[0].mxu0 %v665
      %v910 = vpop.f32.mrb[0].mxu0
      %v911 = vadd.f32 %v311, %v910
      %v912 = vpop.f32.mrb[0].mxu0
      %v913 = vpop.f32.mrb[0].mxu0
      %v914 = vadd.f32 %v311, %v913
      %v915 = vpop.f32.mrb[0].mxu0
      %916 = vmatprep.mubr.bf16.mxu0 0
      %917 = vmatmul.mubr.bf16.gmra.mrb[0].mxu0 %v668
      %v918 = vpop.f32.mrb[0].mxu0
      %v919 = vadd.f32 %v311, %v918
      %v920 = vpop.f32.mrb[0].mxu0
      %v921 = vpop.f32.mrb[0].mxu0
      %v922 = vadd.f32 %v311, %v921
      %v923 = vpop.f32.mrb[0].mxu0
      %924 = vmatprep.mubr.bf16.mxu0 0
      %925 = vmatmul.mubr.bf16.gmra.mrb[0].mxu0 %v671
      %v926 = vpop.f32.mrb[0].mxu0
      %v927 = vadd.f32 %v311, %v926
      %v928 = vpop.f32.mrb[0].mxu0
      %v929 = vpop.f32.mrb[0].mxu0
      %v930 = vadd.f32 %v311, %v929
      %v931 = vpop.f32.mrb[0].mxu0
      %932 = vmatprep.mubr.bf16.mxu0 0
      %933 = vmatmul.mubr.bf16.gmra.mrb[0].mxu0 %v674
      %v934 = vpop.f32.mrb[0].mxu0
      %v935 = vadd.f32 %v311, %v934
      %v936 = vpop.f32.mrb[0].mxu0
      %v937 = vpop.f32.mrb[0].mxu0
      %v938 = vadd.f32 %v311, %v937
      %v939 = vpop.f32.mrb[0].mxu0
      %940 = vmatprep.mubr.bf16.mxu0 0
      %941 = vmatmul.mubr.bf16.gmra.mrb[0].mxu0 %v677
      %v942 = vpop.f32.mrb[0].mxu0
      %v943 = vadd.f32 %v311, %v942
      %v944 = vpop.f32.mrb[0].mxu0
      %v945 = vpop.f32.mrb[0].mxu0
      %v946 = vadd.f32 %v311, %v945
      %v947 = vpop.f32.mrb[0].mxu0
      %948 = vmatprep.mubr.bf16.mxu0 0
      %949 = vmatmul.mubr.bf16.gmra.mrb[0].mxu0 %v680
      %v950 = vpop.f32.mrb[0].mxu0
      %v951 = vadd.f32 %v311, %v950
      %v952 = vpop.f32.mrb[0].mxu0
      %v953 = vpop.f32.mrb[0].mxu0
      %v954 = vadd.f32 %v311, %v953
      %v955 = vpop.f32.mrb[0].mxu0
      %956 = vmatprep.mubr.bf16.mxu0 0
      %957 = vmatmul.mubr.bf16.gmra.mrb[0].mxu0 %v683
      %v958 = vpop.f32.mrb[0].mxu0
      %v959 = vadd.f32 %v311, %v958
      %v960 = vpop.f32.mrb[0].mxu0
      %v961 = vpop.f32.mrb[0].mxu0
      %v962 = vadd.f32 %v311, %v961
      %v963 = vpop.f32.mrb[0].mxu0
      %964 = vmatprep.mubr.bf16.mxu0 0
      %965 = vmatmul.mubr.bf16.gmra.mrb[0].mxu0 %v686
      %v966 = vpop.f32.mrb[0].mxu0
      %v967 = vadd.f32 %v311, %v966
      %v968 = vpop.f32.mrb[0].mxu0
      %v969 = vpop.f32.mrb[0].mxu0
      %v970 = vadd.f32 %v311, %v969
      %v971 = vpop.f32.mrb[0].mxu0
      %972 = vmatprep.mubr.bf16.mxu0 0
      %973 = vmatmul.mubr.bf16.gmra.mrb[0].mxu0 %v689
      %v974 = vpop.f32.mrb[0].mxu0
      %v975 = vadd.f32 %v311, %v974
      %v976 = vpop.f32.mrb[0].mxu0
      %v977 = vpop.f32.mrb[0].mxu0
      %v978 = vadd.f32 %v311, %v977
      %v979 = vpop.f32.mrb[0].mxu0
      %980 = vmatprep.mubr.bf16.mxu0 0
      %981 = vmatmul.mubr.bf16.gmra.mrb[0].mxu0 %v692
      %v982 = vpop.f32.mrb[0].mxu0
      %v983 = vadd.f32 %v311, %v982
      %v984 = vpop.f32.mrb[0].mxu0
      %v985 = vpop.f32.mrb[0].mxu0
      %v986 = vadd.f32 %v311, %v985
      %v987 = vpop.f32.mrb[0].mxu0
      %988 = vmatprep.mubr.bf16.mxu0 0
      %989 = vmatmul.mubr.bf16.gmra.mrb[0].mxu0 %v695
      %v990 = vpop.f32.mrb[0].mxu0
      %v991 = vadd.f32 %v311, %v990
      %v992 = vpop.f32.mrb[0].mxu0
      %v993 = vpop.f32.mrb[0].mxu0
      %v994 = vadd.f32 %v311, %v993
      %v995 = vpop.f32.mrb[0].mxu0
      %996 = vmatprep.mubr.bf16.mxu0 0
      %997 = vmatmul.mubr.bf16.gmra.mrb[0].mxu0 %v698
      %v998 = vpop.f32.mrb[0].mxu0
      %v999 = vadd.f32 %v311, %v998
      %v1000 = vpop.f32.mrb[0].mxu0
      %v1001 = vpop.f32.mrb[0].mxu0
      %v1002 = vadd.f32 %v311, %v1001
      %v1003 = vpop.f32.mrb[0].mxu0
      %1004 = vmatprep.mubr.bf16.mxu0 0
      %1005 = vmatmul.mubr.bf16.gmra.mrb[0].mxu0 %v701
      %v1006 = vpop.f32.mrb[0].mxu0
      %v1007 = vadd.f32 %v311, %v1006
      %v1008 = vpop.f32.mrb[0].mxu0
      %v1009 = vpop.f32.mrb[0].mxu0
      %v1010 = vadd.f32 %v311, %v1009
      %v1011 = vpop.f32.mrb[0].mxu0
      %1012 = vmatprep.mubr.bf16.mxu0 0
      %1013 = vmatmul.mubr.bf16.gmra.mrb[0].mxu0 %v704
      %v1014 = vpop.f32.mrb[0].mxu0
      %v1015 = vadd.f32 %v311, %v1014
      %v1016 = vpop.f32.mrb[0].mxu0
      %v1017 = vpop.f32.mrb[0].mxu0
      %v1018 = vadd.f32 %v311, %v1017
      %v1019 = vpop.f32.mrb[0].mxu0
      %1020 = vmatprep.mubr.bf16.mxu0 0
      %1021 = vmatmul.mubr.bf16.gmra.mrb[0].mxu0 %v707
      %v1022 = vpop.f32.mrb[0].mxu0
      %v1023 = vadd.f32 %v311, %v1022
      %v1024 = vpop.f32.mrb[0].mxu0
      %v1025 = vpop.f32.mrb[0].mxu0
      %v1026 = vadd.f32 %v311, %v1025
      %v1027 = vpop.f32.mrb[0].mxu0
      %1028 = vmatprep.mubr.bf16.mxu0 0
      %1029 = vmatmul.mubr.bf16.gmra.mrb[0].mxu0 %v710
      %v1030 = vpop.f32.mrb[0].mxu0
      %v1031 = vadd.f32 %v311, %v1030
      %v1032 = vpop.f32.mrb[0].mxu0
      %v1033 = vpop.f32.mrb[0].mxu0
      %v1034 = vadd.f32 %v311, %v1033
      %v1035 = vpop.f32.mrb[0].mxu0
      %1036 = vmatprep.mubr.bf16.mxu0 0
      %1037 = vmatmul.mubr.bf16.gmra.mrb[0].mxu0 %v713
      %v1038 = vpop.f32.mrb[0].mxu0
      %v1039 = vadd.f32 %v311, %v1038
      %v1040 = vpop.f32.mrb[0].mxu0
      %v1041 = vpop.f32.mrb[0].mxu0
      %v1042 = vadd.f32 %v311, %v1041
      %v1043 = vpop.f32.mrb[0].mxu0
      %1044 = vmatprep.mubr.bf16.mxu0 0
      %1045 = vmatmul.mubr.bf16.gmra.mrb[0].mxu0 %v716
      %v1046 = vpop.f32.mrb[0].mxu0
      %v1047 = vadd.f32 %v311, %v1046
      %v1048 = vpop.f32.mrb[0].mxu0
      %v1049 = vpop.f32.mrb[0].mxu0
      %v1050 = vadd.f32 %v311, %v1049
      %v1051 = vpop.f32.mrb[0].mxu0
      %1052 = vmatprep.mubr.bf16.mxu0 0
      %1053 = vmatmul.mubr.bf16.gmra.mrb[0].mxu0 %v719
      %v1054 = vpop.f32.mrb[0].mxu0
      %v1055 = vadd.f32 %v311, %v1054
      %v1056 = vpop.f32.mrb[0].mxu0
      %v1057 = vpop.f32.mrb[0].mxu0
      %v1058 = vadd.f32 %v311, %v1057
      %v1059 = vpop.f32.mrb[0].mxu0
      %1060 = vmatprep.mubr.bf16.mxu0 0
      %1061 = vmatmul.mubr.bf16.gmra.mrb[0].mxu0 %v722
      %v1062 = vpop.f32.mrb[0].mxu0
      %v1063 = vadd.f32 %v311, %v1062
      %v1064 = vpop.f32.mrb[0].mxu0
      %v1065 = vpop.f32.mrb[0].mxu0
      %v1066 = vadd.f32 %v311, %v1065
      %v1067 = vpop.f32.mrb[0].mxu0
      %1068 = vmatprep.mubr.bf16.mxu0 0
      %1069 = vmatmul.mubr.bf16.gmra.mrb[0].mxu0 %v725
      %v1070 = vpop.f32.mrb[0].mxu0
      %v1071 = vadd.f32 %v311, %v1070
      %v1072 = vpop.f32.mrb[0].mxu0
      %v1073 = vpop.f32.mrb[0].mxu0
      %v1074 = vadd.f32 %v311, %v1073
      %v1075 = vpop.f32.mrb[0].mxu0
      %1076 = vmatprep.mubr.bf16.mxu0 0
      %1077 = vmatmul.mubr.bf16.gmra.mrb[0].mxu0 %v728
      %v1078 = vpop.f32.mrb[0].mxu0
      %v1079 = vadd.f32 %v311, %v1078
      %v1080 = vpop.f32.mrb[0].mxu0
      %v1081 = vpop.f32.mrb[0].mxu0
      %v1082 = vadd.f32 %v311, %v1081
      %v1083 = vpop.f32.mrb[0].mxu0
      %1084 = vmatprep.mubr.bf16.mxu0 0
      %1085 = vmatmul.mubr.bf16.gmra.mrb[0].mxu0 %v731
      %v1086 = vpop.f32.mrb[0].mxu0
      %v1087 = vadd.f32 %v311, %v1086
      %v1088 = vpop.f32.mrb[0].mxu0
      %v1089 = vpop.f32.mrb[0].mxu0
      %v1090 = vadd.f32 %v311, %v1089
      %v1091 = vpop.f32.mrb[0].mxu0
      %1092 = vmatprep.mubr.bf16.mxu0 0
      %1093 = vmatmul.mubr.bf16.gmra.mrb[0].mxu0 %v734
      %v1094 = vpop.f32.mrb[0].mxu0
      %v1095 = vadd.f32 %v311, %v1094
      %v1096 = vpop.f32.mrb[0].mxu0
      %v1097 = vpop.f32.mrb[0].mxu0
      %v1098 = vadd.f32 %v311, %v1097
      %v1099 = vpop.f32.mrb[0].mxu0
      %1100 = vmatprep.mubr.bf16.mxu0 0
      %1101 = vmatmul.mubr.bf16.gmra.mrb[0].mxu0 %v737
      %v1102 = vpop.f32.mrb[0].mxu0
      %v1103 = vadd.f32 %v311, %v1102
      %v1104 = vpop.f32.mrb[0].mxu0
      %v1105 = vpop.f32.mrb[0].mxu0
      %v1106 = vadd.f32 %v311, %v1105
      %v1107 = vpop.f32.mrb[0].mxu0
      %1108 = vmatprep.mubr.bf16.mxu0 0
      %1109 = vmatmul.mubr.bf16.gmra.mrb[0].mxu0 %v740
      %v1110 = vpop.f32.mrb[0].mxu0
      %v1111 = vadd.f32 %v311, %v1110
      %v1112 = vpop.f32.mrb[0].mxu0
      %v1113 = vpop.f32.mrb[0].mxu0
      %v1114 = vadd.f32 %v311, %v1113
      %v1115 = vpop.f32.mrb[0].mxu0
      %1116 = vmatprep.mubr.bf16.mxu0 0
      %1117 = vmatmul.mubr.bf16.gmra.mrb[0].mxu0 %v743
      %v1118 = vpop.f32.mrb[0].mxu0
      %v1119 = vadd.f32 %v311, %v1118
      %v1120 = vpop.f32.mrb[0].mxu0
      %v1121 = vpop.f32.mrb[0].mxu0
      %v1122 = vadd.f32 %v311, %v1121
      %v1123 = vpop.f32.mrb[0].mxu0
      %1124 = vmatprep.mubr.bf16.mxu0 0
      %1125 = vmatmul.mubr.bf16.gmra.mrb[0].mxu0 %v746
      %v1126 = vpop.f32.mrb[0].mxu0
      %v1127 = vadd.f32 %v311, %v1126
      %v1128 = vpop.f32.mrb[0].mxu0
      %v1129 = vpop.f32.mrb[0].mxu0
      %v1130 = vadd.f32 %v311, %v1129
      %v1131 = vpop.f32.mrb[0].mxu0
      %1132 = vmatprep.mubr.bf16.mxu0 0
      %1133 = vmatmul.mubr.bf16.gmra.mrb[0].mxu0 %v749
      %v1134 = vpop.f32.mrb[0].mxu0
      %v1135 = vadd.f32 %v311, %v1134
      %v1136 = vpop.f32.mrb[0].mxu0
      %v1137 = vpop.f32.mrb[0].mxu0
      %v1138 = vadd.f32 %v311, %v1137
      %v1139 = vpop.f32.mrb[0].mxu0
      %1140 = vmatprep.mubr.bf16.mxu0 0
      %1141 = vmatmul.mubr.bf16.gmra.mrb[0].mxu0 %v752
      %v1142 = vpop.f32.mrb[0].mxu0
      %v1143 = vadd.f32 %v311, %v1142
      %v1144 = vpop.f32.mrb[0].mxu0
      %v1145 = vpop.f32.mrb[0].mxu0
      %v1146 = vadd.f32 %v311, %v1145
      %v1147 = vpop.f32.mrb[0].mxu0
      %1148 = vmatprep.mubr.bf16.mxu0 0
      %1149 = vmatmul.mubr.bf16.gmra.mrb[0].mxu0 %v755
      %v1150 = vpop.f32.mrb[0].mxu0
      %v1151 = vadd.f32 %v311, %v1150
      %v1152 = vpop.f32.mrb[0].mxu0
      %v1153 = vpop.f32.mrb[0].mxu0
      %v1154 = vadd.f32 %v311, %v1153
      %v1155 = vpop.f32.mrb[0].mxu0
      %1156 = vmatprep.mubr.bf16.mxu0 0
      %1157 = vmatmul.mubr.bf16.gmra.mrb[0].mxu0 %v758
      %v1158 = vpop.f32.mrb[0].mxu0
      %v1159 = vadd.f32 %v311, %v1158
      %v1160 = vpop.f32.mrb[0].mxu0
      %v1161 = vpop.f32.mrb[0].mxu0
      %v1162 = vadd.f32 %v311, %v1161
      %v1163 = vpop.f32.mrb[0].mxu0
      %1164 = vmatprep.mubr.bf16.mxu0 0
      %1165 = vmatmul.mubr.bf16.gmra.mrb[0].mxu0 %v761
      %v1166 = vpop.f32.mrb[0].mxu0
      %v1167 = vadd.f32 %v311, %v1166
      %v1168 = vpop.f32.mrb[0].mxu0
      %v1169 = vpop.f32.mrb[0].mxu0
      %v1170 = vadd.f32 %v311, %v1169
      %v1171 = vpop.f32.mrb[0].mxu0
      %1172 = vmatprep.mubr.bf16.mxu0 0
      %1173 = vmatmul.mubr.bf16.gmra.mrb[0].mxu0 %v764
      %v1174 = vpop.f32.mrb[0].mxu0
      %v1175 = vadd.f32 %v311, %v1174
      %v1176 = vpop.f32.mrb[0].mxu0
      %v1177 = vpop.f32.mrb[0].mxu0
      %v1178 = vadd.f32 %v311, %v1177
      %v1179 = vpop.f32.mrb[0].mxu0
      %1180 = vmatprep.mubr.bf16.mxu0 0
      %1181 = vmatmul.mubr.bf16.gmra.mrb[0].mxu0 %v767
      %v1182 = vpop.f32.mrb[0].mxu0
      %v1183 = vadd.f32 %v311, %v1182
      %v1184 = vpop.f32.mrb[0].mxu0
      %v1185 = vpop.f32.mrb[0].mxu0
      %v1186 = vadd.f32 %v311, %v1185
      %v1187 = vpop.f32.mrb[0].mxu0
      %1188 = vmatprep.mubr.bf16.mxu0 0
      %1189 = vmatmul.mubr.bf16.gmra.mrb[0].mxu0 %v770
      %v1190 = vpop.f32.mrb[0].mxu0
      %v1191 = vadd.f32 %v311, %v1190
      %v1192 = vpop.f32.mrb[0].mxu0
      %v1193 = vpop.f32.mrb[0].mxu0
      %v1194 = vadd.f32 %v311, %v1193
      %v1195 = vpop.f32.mrb[0].mxu0
      %1196 = vmatprep.mubr.bf16.mxu0 0
      %1197 = vmatmul.mubr.bf16.gmra.mrb[0].mxu0 %v773
      %v1198 = vpop.f32.mrb[0].mxu0
      %v1199 = vadd.f32 %v311, %v1198
      %v1200 = vpop.f32.mrb[0].mxu0
      %v1201 = vpop.f32.mrb[0].mxu0
      %v1202 = vadd.f32 %v311, %v1201
      %v1203 = vpop.f32.mrb[0].mxu0
      %1204 = vmatprep.mubr.bf16.mxu0 0
      %1205 = vmatmul.mubr.bf16.gmra.mrb[0].mxu0 %v776
      %v1206 = vpop.f32.mrb[0].mxu0
      %v1207 = vadd.f32 %v311, %v1206
      %v1208 = vpop.f32.mrb[0].mxu0
      %v1209 = vpop.f32.mrb[0].mxu0
      %v1210 = vadd.f32 %v311, %v1209
      %v1211 = vpop.f32.mrb[0].mxu0
      %1212 = vmatprep.mubr.bf16.mxu0 0
      %1213 = vmatmul.mubr.bf16.gmra.mrb[0].mxu0 %v779
      %v1214 = vpop.f32.mrb[0].mxu0
      %v1215 = vadd.f32 %v311, %v1214
      %v1216 = vpop.f32.mrb[0].mxu0
      %v1217 = vpop.f32.mrb[0].mxu0
      %v1218 = vadd.f32 %v311, %v1217
      %v1219 = vpop.f32.mrb[0].mxu0
      %1220 = vmatprep.mubr.bf16.mxu0 0
      %1221 = vmatmul.mubr.bf16.gmra.mrb[0].mxu0 %v782
      %v1222 = vpop.f32.mrb[0].mxu0
      %v1223 = vadd.f32 %v311, %v1222
      %v1224 = vpop.f32.mrb[0].mxu0
      %v1225 = vpop.f32.mrb[0].mxu0
      %v1226 = vadd.f32 %v311, %v1225
      %v1227 = vpop.f32.mrb[0].mxu0
      %1228 = vmatprep.mubr.bf16.mxu0 0
      %1229 = vmatmul.mubr.bf16.gmra.mrb[0].mxu0 %v785
      %v1230 = vpop.f32.mrb[0].mxu0
      %v1231 = vadd.f32 %v311, %v1230
      %v1232 = vpop.f32.mrb[0].mxu0
      %v1233 = vpop.f32.mrb[0].mxu0
      %v1234 = vadd.f32 %v311, %v1233
      %v1235 = vpop.f32.mrb[0].mxu0
      %1236 = vmatprep.mubr.bf16.mxu0 0
      %1237 = vmatmul.mubr.bf16.gmra.mrb[0].mxu0 %v788
      %v1238 = vpop.f32.mrb[0].mxu0
      %v1239 = vadd.f32 %v311, %v1238
      %v1240 = vpop.f32.mrb[0].mxu0
      %v1241 = vpop.f32.mrb[0].mxu0
      %v1242 = vadd.f32 %v311, %v1241
      %v1243 = vpop.f32.mrb[0].mxu0
      %1244 = vmatprep.mubr.bf16.mxu0 0
      %1245 = vmatmul.mubr.bf16.gmra.mrb[0].mxu0 %v791
      %v1246 = vpop.f32.mrb[0].mxu0
      %v1247 = vadd.f32 %v311, %v1246
      %v1248 = vpop.f32.mrb[0].mxu0
      %v1249 = vpop.f32.mrb[0].mxu0
      %v1250 = vadd.f32 %v311, %v1249
      %v1251 = vpop.f32.mrb[0].mxu0
      %1252 = vmatprep.mubr.bf16.mxu0 0
      %1253 = vmatmul.mubr.bf16.gmra.mrb[0].mxu0 %v794
      %v1254 = vpop.f32.mrb[0].mxu0
      %v1255 = vadd.f32 %v311, %v1254
      %v1256 = vpop.f32.mrb[0].mxu0
      %v1257 = vpop.f32.mrb[0].mxu0
      %v1258 = vadd.f32 %v311, %v1257
      %v1259 = vpop.f32.mrb[0].mxu0
      %1260 = vmatprep.mubr.bf16.mxu0 0
      %1261 = vmatmul.mubr.bf16.gmra.mrb[0].mxu0 %v797
      %v1262 = vpop.f32.mrb[0].mxu0
      %v1263 = vadd.f32 %v311, %v1262
      %v1264 = vpop.f32.mrb[0].mxu0
      %v1265 = vpop.f32.mrb[0].mxu0
      %v1266 = vadd.f32 %v311, %v1265
      %v1267 = vpop.f32.mrb[0].mxu0
      %1268 = vmatprep.mubr.bf16.mxu0 0
      %1269 = vmatmul.mubr.bf16.gmra.mrb[0].mxu0 %v800
      %v1270 = vpop.f32.mrb[0].mxu0
      %v1271 = vadd.f32 %v311, %v1270
      %v1272 = vpop.f32.mrb[0].mxu0
      %v1273 = vpop.f32.mrb[0].mxu0
      %v1274 = vadd.f32 %v311, %v1273
      %v1275 = vpop.f32.mrb[0].mxu0
      %1276 = vmatprep.mubr.bf16.mxu0 0
      %1277 = vmatmul.mubr.bf16.gmra.mrb[0].mxu0 %v803
      %v1278 = vpop.f32.mrb[0].mxu0
      %v1279 = vadd.f32 %v311, %v1278
      %v1280 = vpop.f32.mrb[0].mxu0
      %v1281 = vpop.f32.mrb[0].mxu0
      %v1282 = vadd.f32 %v311, %v1281
      %v1283 = vpop.f32.mrb[0].mxu0
      %1284 = vmatprep.mubr.bf16.mxu0 0
      %1285 = vmatmul.mubr.bf16.gmra.mrb[0].mxu0 %v806
      %v1286 = vpop.f32.mrb[0].mxu0
      %v1287 = vadd.f32 %v311, %v1286
      %v1288 = vpop.f32.mrb[0].mxu0
      %v1289 = vpop.f32.mrb[0].mxu0
      %v1290 = vadd.f32 %v311, %v1289
      %v1291 = vpop.f32.mrb[0].mxu0
      %1292 = vmatprep.mubr.bf16.mxu0 0
      %1293 = vmatmul.mubr.bf16.gmra.mrb[0].mxu0 %v809
      %v1294 = vpop.f32.mrb[0].mxu0
      %v1295 = vadd.f32 %v311, %v1294
      %v1296 = vpop.f32.mrb[0].mxu0
      %v1297 = vpop.f32.mrb[0].mxu0
      %v1298 = vadd.f32 %v311, %v1297
      %v1299 = vpop.f32.mrb[0].mxu0
      %1300 = vmatprep.mubr.bf16.mxu0 0
      %1301 = vmatmul.mubr.bf16.gmra.mrb[0].mxu0 %v812
      %v1302 = vpop.f32.mrb[0].mxu0
      %v1303 = vadd.f32 %v311, %v1302
      %v1304 = vpop.f32.mrb[0].mxu0
      %v1305 = vpop.f32.mrb[0].mxu0
      %v1306 = vadd.f32 %v311, %v1305
      %v1307 = vpop.f32.mrb[0].mxu0
      %1308 = vmatprep.mubr.bf16.mxu0 0
      %1309 = vmatmul.mubr.bf16.gmra.mrb[0].mxu0 %v815
      %v1310 = vpop.f32.mrb[0].mxu0
      %v1311 = vadd.f32 %v311, %v1310
      %v1312 = vpop.f32.mrb[0].mxu0
      %v1313 = vpop.f32.mrb[0].mxu0
      %v1314 = vadd.f32 %v311, %v1313
      %v1315 = vpop.f32.mrb[0].mxu0
      %1316 = vmatprep.mubr.bf16.mxu0 0
      %1317 = vmatmul.mubr.bf16.gmra.mrb[0].mxu0 %v818
      %v1318 = vpop.f32.mrb[0].mxu0
      %v1319 = vadd.f32 %v311, %v1318
      %v1320 = vpop.f32.mrb[0].mxu0
      %v1321 = vpop.f32.mrb[0].mxu0
      %v1322 = vadd.f32 %v311, %v1321
      %v1323 = vpop.f32.mrb[0].mxu0
      %1324 = vmatprep.mubr.bf16.mxu0 0
      %1325 = vmatmul.mubr.bf16.gmra.mrb[0].mxu0 %v821
      %v1326 = vpop.f32.mrb[0].mxu0
      %v1327 = vadd.f32 %v311, %v1326
      %v1328 = vpop.f32.mrb[0].mxu0
      %v1329 = vpop.f32.mrb[0].mxu0
      %v1330 = vadd.f32 %v311, %v1329
      %v1331 = vpop.f32.mrb[0].mxu0
      %1332 = vmatprep.mubr.bf16.mxu0 0
      %1333 = vmatmul.mubr.bf16.gmra.mrb[0].mxu0 %v824
      %v1334 = vpop.f32.mrb[0].mxu0
      %v1335 = vadd.f32 %v311, %v1334
      %v1336 = vpop.f32.mrb[0].mxu0
      %v1337 = vpop.f32.mrb[0].mxu0
      %v1338 = vadd.f32 %v311, %v1337
      %v1339 = vpop.f32.mrb[0].mxu0
      %1340 = vmatprep.mubr.bf16.mxu0 0
      %1341 = vmatmul.mubr.bf16.gmra.mrb[0].mxu0 %v827
      %v1342 = vpop.f32.mrb[0].mxu0
      %v1343 = vadd.f32 %v311, %v1342
      %v1344 = vpop.f32.mrb[0].mxu0
      %v1345 = vpop.f32.mrb[0].mxu0
      %v1346 = vadd.f32 %v311, %v1345
      %v1347 = vpop.f32.mrb[0].mxu0
      %1348 = vmatprep.mubr.bf16.mxu0 0
      %1349 = vmatmul.mubr.bf16.gmra.mrb[0].mxu0 %v830
      %v1350 = vpop.f32.mrb[0].mxu0
      %v1351 = vadd.f32 %v311, %v1350
      %v1352 = vpop.f32.mrb[0].mxu0
      %v1353 = vpop.f32.mrb[0].mxu0
      %v1354 = vadd.f32 %v311, %v1353
      %v1355 = vpop.f32.mrb[0].mxu0
      %1356 = vmatprep.mubr.bf16.mxu0 0
      %1357 = vmatmul.mubr.bf16.gmra.mrb[0].mxu0 %v833
      %v1358 = vpop.f32.mrb[0].mxu0
      %v1359 = vadd.f32 %v311, %v1358
      %v1360 = vpop.f32.mrb[0].mxu0
      %v1361 = vpop.f32.mrb[0].mxu0
      %v1362 = vadd.f32 %v311, %v1361
      %v1363 = vpop.f32.mrb[0].mxu0
      %1364 = vmatprep.mubr.bf16.mxu0 0
      %1365 = vmatmul.mubr.bf16.gmra.mrb[0].mxu0 %v836
      %v1366 = vpop.f32.mrb[0].mxu0
      %v1367 = vadd.f32 %v311, %v1366
      %v1368 = vpop.f32.mrb[0].mxu0
      %v1369 = vpop.f32.mrb[0].mxu0
      %v1370 = vadd.f32 %v311, %v1369
      %v1371 = vpop.f32.mrb[0].mxu0
      %1372 = vmatprep.mubr.bf16.mxu0 0
      %1373 = vmatmul.mubr.bf16.gmra.mrb[0].mxu0 %v839
      %v1374 = vpop.f32.mrb[0].mxu0
      %v1375 = vadd.f32 %v311, %v1374
      %v1376 = vpop.f32.mrb[0].mxu0
      %v1377 = vpop.f32.mrb[0].mxu0
      %v1378 = vadd.f32 %v311, %v1377
      %v1379 = vpop.f32.mrb[0].mxu0
      %1380 = vmatprep.mubr.bf16.mxu0 0
      %1381 = vmatmul.mubr.bf16.gmra.mrb[0].mxu0 %v842
      %v1382 = vpop.f32.mrb[0].mxu0
      %v1383 = vadd.f32 %v311, %v1382
      %v1384 = vpop.f32.mrb[0].mxu0
      %v1385 = vpop.f32.mrb[0].mxu0
      %v1386 = vadd.f32 %v311, %v1385
      %v1387 = vpop.f32.mrb[0].mxu0
      %1388 = vdwg.mxu0
      %vm1389 = vcmp.ge.f32.partialorder %v879, 0.0
      %vm1390 = vcmp.ge.f32.partialorder %v882, 0.0
      %vm1391 = vcmp.ge.f32.partialorder %v887, 0.0
      %vm1392 = vcmp.ge.f32.partialorder %v890, 0.0
      %vm1393 = vcmp.ge.f32.partialorder %v895, 0.0
      %vm1394 = vcmp.ge.f32.partialorder %v898, 0.0
      %vm1395 = vcmp.ge.f32.partialorder %v903, 0.0
      %vm1396 = vcmp.ge.f32.partialorder %v906, 0.0
      %vm1397 = vcmp.ge.f32.partialorder %v911, 0.0
      %vm1398 = vcmp.ge.f32.partialorder %v914, 0.0
      %vm1399 = vcmp.ge.f32.partialorder %v919, 0.0
      %vm1400 = vcmp.ge.f32.partialorder %v922, 0.0
      %vm1401 = vcmp.ge.f32.partialorder %v927, 0.0
      %vm1402 = vcmp.ge.f32.partialorder %v930, 0.0
      %vm1403 = vcmp.ge.f32.partialorder %v935, 0.0
      %vm1404 = vcmp.ge.f32.partialorder %v938, 0.0
      %vm1405 = vcmp.ge.f32.partialorder %v943, 0.0
      %vm1406 = vcmp.ge.f32.partialorder %v946, 0.0
      %vm1407 = vcmp.ge.f32.partialorder %v951, 0.0
      %vm1408 = vcmp.ge.f32.partialorder %v954, 0.0
      %vm1409 = vcmp.ge.f32.partialorder %v959, 0.0
      %vm1410 = vcmp.ge.f32.partialorder %v962, 0.0
      %vm1411 = vcmp.ge.f32.partialorder %v967, 0.0
      %vm1412 = vcmp.ge.f32.partialorder %v970, 0.0
      %vm1413 = vcmp.ge.f32.partialorder %v975, 0.0
      %vm1414 = vcmp.ge.f32.partialorder %v978, 0.0
      %vm1415 = vcmp.ge.f32.partialorder %v983, 0.0
      %vm1416 = vcmp.ge.f32.partialorder %v986, 0.0
      %vm1417 = vcmp.ge.f32.partialorder %v991, 0.0
      %vm1418 = vcmp.ge.f32.partialorder %v994, 0.0
      %vm1419 = vcmp.ge.f32.partialorder %v999, 0.0
      %vm1420 = vcmp.ge.f32.partialorder %v1002, 0.0
      %vm1421 = vcmp.ge.f32.partialorder %v1007, 0.0
      %vm1422 = vcmp.ge.f32.partialorder %v1010, 0.0
      %vm1423 = vcmp.ge.f32.partialorder %v1015, 0.0
      %vm1424 = vcmp.ge.f32.partialorder %v1018, 0.0
      %vm1425 = vcmp.ge.f32.partialorder %v1023, 0.0
      %vm1426 = vcmp.ge.f32.partialorder %v1026, 0.0
      %vm1427 = vcmp.ge.f32.partialorder %v1031, 0.0
      %vm1428 = vcmp.ge.f32.partialorder %v1034, 0.0
      %vm1429 = vcmp.ge.f32.partialorder %v1039, 0.0
      %vm1430 = vcmp.ge.f32.partialorder %v1042, 0.0
      %vm1431 = vcmp.ge.f32.partialorder %v1047, 0.0
      %vm1432 = vcmp.ge.f32.partialorder %v1050, 0.0
      %vm1433 = vcmp.ge.f32.partialorder %v1055, 0.0
      %vm1434 = vcmp.ge.f32.partialorder %v1058, 0.0
      %vm1435 = vcmp.ge.f32.partialorder %v1063, 0.0
      %vm1436 = vcmp.ge.f32.partialorder %v1066, 0.0
      %vm1437 = vcmp.ge.f32.partialorder %v1071, 0.0
      %vm1438 = vcmp.ge.f32.partialorder %v1074, 0.0
      %vm1439 = vcmp.ge.f32.partialorder %v1079, 0.0
      %vm1440 = vcmp.ge.f32.partialorder %v1082, 0.0
      %vm1441 = vcmp.ge.f32.partialorder %v1087, 0.0
      %vm1442 = vcmp.ge.f32.partialorder %v1090, 0.0
      %vm1443 = vcmp.ge.f32.partialorder %v1095, 0.0
      %vm1444 = vcmp.ge.f32.partialorder %v1098, 0.0
      %vm1445 = vcmp.ge.f32.partialorder %v1103, 0.0
      %vm1446 = vcmp.ge.f32.partialorder %v1106, 0.0
      %vm1447 = vcmp.ge.f32.partialorder %v1111, 0.0
      %vm1448 = vcmp.ge.f32.partialorder %v1114, 0.0
      %vm1449 = vcmp.ge.f32.partialorder %v1119, 0.0
      %vm1450 = vcmp.ge.f32.partialorder %v1122, 0.0
      %vm1451 = vcmp.ge.f32.partialorder %v1127, 0.0
      %vm1452 = vcmp.ge.f32.partialorder %v1130, 0.0
      %vm1453 = vcmp.ge.f32.partialorder %v1135, 0.0
      %vm1454 = vcmp.ge.f32.partialorder %v1138, 0.0
      %vm1455 = vcmp.ge.f32.partialorder %v1143, 0.0
      %vm1456 = vcmp.ge.f32.partialorder %v1146, 0.0
      %vm1457 = vcmp.ge.f32.partialorder %v1151, 0.0
      %vm1458 = vcmp.ge.f32.partialorder %v1154, 0.0
      %vm1459 = vcmp.ge.f32.partialorder %v1159, 0.0
      %vm1460 = vcmp.ge.f32.partialorder %v1162, 0.0
      %vm1461 = vcmp.ge.f32.partialorder %v1167, 0.0
      %vm1462 = vcmp.ge.f32.partialorder %v1170, 0.0
      %vm1463 = vcmp.ge.f32.partialorder %v1175, 0.0
      %vm1464 = vcmp.ge.f32.partialorder %v1178, 0.0
      %vm1465 = vcmp.ge.f32.partialorder %v1183, 0.0
      %vm1466 = vcmp.ge.f32.partialorder %v1186, 0.0
      %vm1467 = vcmp.ge.f32.partialorder %v1191, 0.0
      %vm1468 = vcmp.ge.f32.partialorder %v1194, 0.0
      %vm1469 = vcmp.ge.f32.partialorder %v1199, 0.0
      %vm1470 = vcmp.ge.f32.partialorder %v1202, 0.0
      %vm1471 = vcmp.ge.f32.partialorder %v1207, 0.0
      %vm1472 = vcmp.ge.f32.partialorder %v1210, 0.0
      %vm1473 = vcmp.ge.f32.partialorder %v1215, 0.0
      %vm1474 = vcmp.ge.f32.partialorder %v1218, 0.0
      %vm1475 = vcmp.ge.f32.partialorder %v1223, 0.0
      %vm1476 = vcmp.ge.f32.partialorder %v1226, 0.0
      %vm1477 = vcmp.ge.f32.partialorder %v1231, 0.0
      %vm1478 = vcmp.ge.f32.partialorder %v1234, 0.0
      %vm1479 = vcmp.ge.f32.partialorder %v1239, 0.0
      %vm1480 = vcmp.ge.f32.partialorder %v1242, 0.0
      %vm1481 = vcmp.ge.f32.partialorder %v1247, 0.0
      %vm1482 = vcmp.ge.f32.partialorder %v1250, 0.0
      %vm1483 = vcmp.ge.f32.partialorder %v1255, 0.0
      %vm1484 = vcmp.ge.f32.partialorder %v1258, 0.0
      %vm1485 = vcmp.ge.f32.partialorder %v1263, 0.0
      %vm1486 = vcmp.ge.f32.partialorder %v1266, 0.0
      %vm1487 = vcmp.ge.f32.partialorder %v1271, 0.0
      %vm1488 = vcmp.ge.f32.partialorder %v1274, 0.0
      %vm1489 = vcmp.ge.f32.partialorder %v1279, 0.0
      %vm1490 = vcmp.ge.f32.partialorder %v1282, 0.0
      %vm1491 = vcmp.ge.f32.partialorder %v1287, 0.0
      %vm1492 = vcmp.ge.f32.partialorder %v1290, 0.0
      %vm1493 = vcmp.ge.f32.partialorder %v1295, 0.0
      %vm1494 = vcmp.ge.f32.partialorder %v1298, 0.0
      %vm1495 = vcmp.ge.f32.partialorder %v1303, 0.0
      %vm1496 = vcmp.ge.f32.partialorder %v1306, 0.0
      %vm1497 = vcmp.ge.f32.partialorder %v1311, 0.0
      %vm1498 = vcmp.ge.f32.partialorder %v1314, 0.0
      %vm1499 = vcmp.ge.f32.partialorder %v1319, 0.0
      %vm1500 = vcmp.ge.f32.partialorder %v1322, 0.0
      %vm1501 = vcmp.ge.f32.partialorder %v1327, 0.0
      %vm1502 = vcmp.ge.f32.partialorder %v1330, 0.0
      %vm1503 = vcmp.ge.f32.partialorder %v1335, 0.0
      %vm1504 = vcmp.ge.f32.partialorder %v1338, 0.0
      %vm1505 = vcmp.ge.f32.partialorder %v1343, 0.0
      %vm1506 = vcmp.ge.f32.partialorder %v1346, 0.0
      %vm1507 = vcmp.ge.f32.partialorder %v1351, 0.0
      %vm1508 = vcmp.ge.f32.partialorder %v1354, 0.0
      %vm1509 = vcmp.ge.f32.partialorder %v1359, 0.0
      %vm1510 = vcmp.ge.f32.partialorder %v1362, 0.0
      %vm1511 = vcmp.ge.f32.partialorder %v1367, 0.0
      %vm1512 = vcmp.ge.f32.partialorder %v1370, 0.0
      %vm1513 = vcmp.ge.f32.partialorder %v1375, 0.0
      %vm1514 = vcmp.ge.f32.partialorder %v1378, 0.0
      %vm1515 = vcmp.ge.f32.partialorder %v1383, 0.0
      %vm1516 = vcmp.ge.f32.partialorder %v1386, 0.0
      %v1517 = vmul.f32 %v879, 0.2
      %v1518 = vmul.f32 %v882, 0.2
      %v1519 = vmul.f32 %v887, 0.2
      %v1520 = vmul.f32 %v890, 0.2
      %v1521 = vmul.f32 %v895, 0.2
      %v1522 = vmul.f32 %v898, 0.2
      %v1523 = vmul.f32 %v903, 0.2
      %v1524 = vmul.f32 %v906, 0.2
      %v1525 = vmul.f32 %v911, 0.2
      %v1526 = vmul.f32 %v914, 0.2
      %v1527 = vmul.f32 %v919, 0.2
      %v1528 = vmul.f32 %v922, 0.2
      %v1529 = vmul.f32 %v927, 0.2
      %v1530 = vmul.f32 %v930, 0.2
      %v1531 = vmul.f32 %v935, 0.2
      %v1532 = vmul.f32 %v938, 0.2
      %v1533 = vmul.f32 %v943, 0.2
      %v1534 = vmul.f32 %v946, 0.2
      %v1535 = vmul.f32 %v951, 0.2
      %v1536 = vmul.f32 %v954, 0.2
      %v1537 = vmul.f32 %v959, 0.2
      %v1538 = vmul.f32 %v962, 0.2
      %v1539 = vmul.f32 %v967, 0.2
      %v1540 = vmul.f32 %v970, 0.2
      %v1541 = vmul.f32 %v975, 0.2
      %v1542 = vmul.f32 %v978, 0.2
      %v1543 = vmul.f32 %v983, 0.2
      %v1544 = vmul.f32 %v986, 0.2
      %v1545 = vmul.f32 %v991, 0.2
      %v1546 = vmul.f32 %v994, 0.2
      %v1547 = vmul.f32 %v999, 0.2
      %v1548 = vmul.f32 %v1002, 0.2
      %v1549 = vmul.f32 %v1007, 0.2
      %v1550 = vmul.f32 %v1010, 0.2
      %v1551 = vmul.f32 %v1015, 0.2
      %v1552 = vmul.f32 %v1018, 0.2
      %v1553 = vmul.f32 %v1023, 0.2
      %v1554 = vmul.f32 %v1026, 0.2
      %v1555 = vmul.f32 %v1031, 0.2
      %v1556 = vmul.f32 %v1034, 0.2
      %v1557 = vmul.f32 %v1039, 0.2
      %v1558 = vmul.f32 %v1042, 0.2
      %v1559 = vmul.f32 %v1047, 0.2
      %v1560 = vmul.f32 %v1050, 0.2
      %v1561 = vmul.f32 %v1055, 0.2
      %v1562 = vmul.f32 %v1058, 0.2
      %v1563 = vmul.f32 %v1063, 0.2
      %v1564 = vmul.f32 %v1066, 0.2
      %v1565 = vmul.f32 %v1071, 0.2
      %v1566 = vmul.f32 %v1074, 0.2
      %v1567 = vmul.f32 %v1079, 0.2
      %v1568 = vmul.f32 %v1082, 0.2
      %v1569 = vmul.f32 %v1087, 0.2
      %v1570 = vmul.f32 %v1090, 0.2
      %v1571 = vmul.f32 %v1095, 0.2
      %v1572 = vmul.f32 %v1098, 0.2
      %v1573 = vmul.f32 %v1103, 0.2
      %v1574 = vmul.f32 %v1106, 0.2
      %v1575 = vmul.f32 %v1111, 0.2
      %v1576 = vmul.f32 %v1114, 0.2
      %v1577 = vmul.f32 %v1119, 0.2
      %v1578 = vmul.f32 %v1122, 0.2
      %v1579 = vmul.f32 %v1127, 0.2
      %v1580 = vmul.f32 %v1130, 0.2
      %v1581 = vmul.f32 %v1135, 0.2
      %v1582 = vmul.f32 %v1138, 0.2
      %v1583 = vmul.f32 %v1143, 0.2
      %v1584 = vmul.f32 %v1146, 0.2
      %v1585 = vmul.f32 %v1151, 0.2
      %v1586 = vmul.f32 %v1154, 0.2
      %v1587 = vmul.f32 %v1159, 0.2
      %v1588 = vmul.f32 %v1162, 0.2
      %v1589 = vmul.f32 %v1167, 0.2
      %v1590 = vmul.f32 %v1170, 0.2
      %v1591 = vmul.f32 %v1175, 0.2
      %v1592 = vmul.f32 %v1178, 0.2
      %v1593 = vmul.f32 %v1183, 0.2
      %v1594 = vmul.f32 %v1186, 0.2
      %v1595 = vmul.f32 %v1191, 0.2
      %v1596 = vmul.f32 %v1194, 0.2
      %v1597 = vmul.f32 %v1199, 0.2
      %v1598 = vmul.f32 %v1202, 0.2
      %v1599 = vmul.f32 %v1207, 0.2
      %v1600 = vmul.f32 %v1210, 0.2
      %v1601 = vmul.f32 %v1215, 0.2
      %v1602 = vmul.f32 %v1218, 0.2
      %v1603 = vmul.f32 %v1223, 0.2
      %v1604 = vmul.f32 %v1226, 0.2
      %v1605 = vmul.f32 %v1231, 0.2
      %v1606 = vmul.f32 %v1234, 0.2
      %v1607 = vmul.f32 %v1239, 0.2
      %v1608 = vmul.f32 %v1242, 0.2
      %v1609 = vmul.f32 %v1247, 0.2
      %v1610 = vmul.f32 %v1250, 0.2
      %v1611 = vmul.f32 %v1255, 0.2
      %v1612 = vmul.f32 %v1258, 0.2
      %v1613 = vmul.f32 %v1263, 0.2
      %v1614 = vmul.f32 %v1266, 0.2
      %v1615 = vmul.f32 %v1271, 0.2
      %v1616 = vmul.f32 %v1274, 0.2
      %v1617 = vmul.f32 %v1279, 0.2
      %v1618 = vmul.f32 %v1282, 0.2
      %v1619 = vmul.f32 %v1287, 0.2
      %v1620 = vmul.f32 %v1290, 0.2
      %v1621 = vmul.f32 %v1295, 0.2
      %v1622 = vmul.f32 %v1298, 0.2
      %v1623 = vmul.f32 %v1303, 0.2
      %v1624 = vmul.f32 %v1306, 0.2
      %v1625 = vmul.f32 %v1311, 0.2
      %v1626 = vmul.f32 %v1314, 0.2
      %v1627 = vmul.f32 %v1319, 0.2
      %v1628 = vmul.f32 %v1322, 0.2
      %v1629 = vmul.f32 %v1327, 0.2
      %v1630 = vmul.f32 %v1330, 0.2
      %v1631 = vmul.f32 %v1335, 0.2
      %v1632 = vmul.f32 %v1338, 0.2
      %v1633 = vmul.f32 %v1343, 0.2
      %v1634 = vmul.f32 %v1346, 0.2
      %v1635 = vmul.f32 %v1351, 0.2
      %v1636 = vmul.f32 %v1354, 0.2
      %v1637 = vmul.f32 %v1359, 0.2
      %v1638 = vmul.f32 %v1362, 0.2
      %v1639 = vmul.f32 %v1367, 0.2
      %v1640 = vmul.f32 %v1370, 0.2
      %v1641 = vmul.f32 %v1375, 0.2
      %v1642 = vmul.f32 %v1378, 0.2
      %v1643 = vmul.f32 %v1383, 0.2
      %v1644 = vmul.f32 %v1386, 0.2
      %v1645 = vsel %vm1389, %v879, %v1517
      %v1646 = vsel %vm1390, %v882, %v1518
      %v1647 = vsel %vm1391, %v887, %v1519
      %v1648 = vsel %vm1392, %v890, %v1520
      %v1649 = vsel %vm1393, %v895, %v1521
      %v1650 = vsel %vm1394, %v898, %v1522
      %v1651 = vsel %vm1395, %v903, %v1523
      %v1652 = vsel %vm1396, %v906, %v1524
      %v1653 = vsel %vm1397, %v911, %v1525
      %v1654 = vsel %vm1398, %v914, %v1526
      %v1655 = vsel %vm1399, %v919, %v1527
      %v1656 = vsel %vm1400, %v922, %v1528
      %v1657 = vsel %vm1401, %v927, %v1529
      %v1658 = vsel %vm1402, %v930, %v1530
      %v1659 = vsel %vm1403, %v935, %v1531
      %v1660 = vsel %vm1404, %v938, %v1532
      %v1661 = vsel %vm1405, %v943, %v1533
      %v1662 = vsel %vm1406, %v946, %v1534
      %v1663 = vsel %vm1407, %v951, %v1535
      %v1664 = vsel %vm1408, %v954, %v1536
      %v1665 = vsel %vm1409, %v959, %v1537
      %v1666 = vsel %vm1410, %v962, %v1538
      %v1667 = vsel %vm1411, %v967, %v1539
      %v1668 = vsel %vm1412, %v970, %v1540
      %v1669 = vsel %vm1413, %v975, %v1541
      %v1670 = vsel %vm1414, %v978, %v1542
      %v1671 = vsel %vm1415, %v983, %v1543
      %v1672 = vsel %vm1416, %v986, %v1544
      %v1673 = vsel %vm1417, %v991, %v1545
      %v1674 = vsel %vm1418, %v994, %v1546
      %v1675 = vsel %vm1419, %v999, %v1547
      %v1676 = vsel %vm1420, %v1002, %v1548
      %v1677 = vsel %vm1421, %v1007, %v1549
      %v1678 = vsel %vm1422, %v1010, %v1550
      %v1679 = vsel %vm1423, %v1015, %v1551
      %v1680 = vsel %vm1424, %v1018, %v1552
      %v1681 = vsel %vm1425, %v1023, %v1553
      %v1682 = vsel %vm1426, %v1026, %v1554
      %v1683 = vsel %vm1427, %v1031, %v1555
      %v1684 = vsel %vm1428, %v1034, %v1556
      %v1685 = vsel %vm1429, %v1039, %v1557
      %v1686 = vsel %vm1430, %v1042, %v1558
      %v1687 = vsel %vm1431, %v1047, %v1559
      %v1688 = vsel %vm1432, %v1050, %v1560
      %v1689 = vsel %vm1433, %v1055, %v1561
      %v1690 = vsel %vm1434, %v1058, %v1562
      %v1691 = vsel %vm1435, %v1063, %v1563
      %v1692 = vsel %vm1436, %v1066, %v1564
      %v1693 = vsel %vm1437, %v1071, %v1565
      %v1694 = vsel %vm1438, %v1074, %v1566
      %v1695 = vsel %vm1439, %v1079, %v1567
      %v1696 = vsel %vm1440, %v1082, %v1568
      %v1697 = vsel %vm1441, %v1087, %v1569
      %v1698 = vsel %vm1442, %v1090, %v1570
      %v1699 = vsel %vm1443, %v1095, %v1571
      %v1700 = vsel %vm1444, %v1098, %v1572
      %v1701 = vsel %vm1445, %v1103, %v1573
      %v1702 = vsel %vm1446, %v1106, %v1574
      %v1703 = vsel %vm1447, %v1111, %v1575
      %v1704 = vsel %vm1448, %v1114, %v1576
      %v1705 = vsel %vm1449, %v1119, %v1577
      %v1706 = vsel %vm1450, %v1122, %v1578
      %v1707 = vsel %vm1451, %v1127, %v1579
      %v1708 = vsel %vm1452, %v1130, %v1580
      %v1709 = vsel %vm1453, %v1135, %v1581
      %v1710 = vsel %vm1454, %v1138, %v1582
      %v1711 = vsel %vm1455, %v1143, %v1583
      %v1712 = vsel %vm1456, %v1146, %v1584
      %v1713 = vsel %vm1457, %v1151, %v1585
      %v1714 = vsel %vm1458, %v1154, %v1586
      %v1715 = vsel %vm1459, %v1159, %v1587
      %v1716 = vsel %vm1460, %v1162, %v1588
      %v1717 = vsel %vm1461, %v1167, %v1589
      %v1718 = vsel %vm1462, %v1170, %v1590
      %v1719 = vsel %vm1463, %v1175, %v1591
      %v1720 = vsel %vm1464, %v1178, %v1592
      %v1721 = vsel %vm1465, %v1183, %v1593
      %v1722 = vsel %vm1466, %v1186, %v1594
      %v1723 = vsel %vm1467, %v1191, %v1595
      %v1724 = vsel %vm1468, %v1194, %v1596
      %v1725 = vsel %vm1469, %v1199, %v1597
      %v1726 = vsel %vm1470, %v1202, %v1598
      %v1727 = vsel %vm1471, %v1207, %v1599
      %v1728 = vsel %vm1472, %v1210, %v1600
      %v1729 = vsel %vm1473, %v1215, %v1601
      %v1730 = vsel %vm1474, %v1218, %v1602
      %v1731 = vsel %vm1475, %v1223, %v1603
      %v1732 = vsel %vm1476, %v1226, %v1604
      %v1733 = vsel %vm1477, %v1231, %v1605
      %v1734 = vsel %vm1478, %v1234, %v1606
      %v1735 = vsel %vm1479, %v1239, %v1607
      %v1736 = vsel %vm1480, %v1242, %v1608
      %v1737 = vsel %vm1481, %v1247, %v1609
      %v1738 = vsel %vm1482, %v1250, %v1610
      %v1739 = vsel %vm1483, %v1255, %v1611
      %v1740 = vsel %vm1484, %v1258, %v1612
      %v1741 = vsel %vm1485, %v1263, %v1613
      %v1742 = vsel %vm1486, %v1266, %v1614
      %v1743 = vsel %vm1487, %v1271, %v1615
      %v1744 = vsel %vm1488, %v1274, %v1616
      %v1745 = vsel %vm1489, %v1279, %v1617
      %v1746 = vsel %vm1490, %v1282, %v1618
      %v1747 = vsel %vm1491, %v1287, %v1619
      %v1748 = vsel %vm1492, %v1290, %v1620
      %v1749 = vsel %vm1493, %v1295, %v1621
      %v1750 = vsel %vm1494, %v1298, %v1622
      %v1751 = vsel %vm1495, %v1303, %v1623
      %v1752 = vsel %vm1496, %v1306, %v1624
      %v1753 = vsel %vm1497, %v1311, %v1625
      %v1754 = vsel %vm1498, %v1314, %v1626
      %v1755 = vsel %vm1499, %v1319, %v1627
      %v1756 = vsel %vm1500, %v1322, %v1628
      %v1757 = vsel %vm1501, %v1327, %v1629
      %v1758 = vsel %vm1502, %v1330, %v1630
      %v1759 = vsel %vm1503, %v1335, %v1631
      %v1760 = vsel %vm1504, %v1338, %v1632
      %v1761 = vsel %vm1505, %v1343, %v1633
      %v1762 = vsel %vm1506, %v1346, %v1634
      %v1763 = vsel %vm1507, %v1351, %v1635
      %v1764 = vsel %vm1508, %v1354, %v1636
      %v1765 = vsel %vm1509, %v1359, %v1637
      %v1766 = vsel %vm1510, %v1362, %v1638
      %v1767 = vsel %vm1511, %v1367, %v1639
      %v1768 = vsel %vm1512, %v1370, %v1640
      %v1769 = vsel %vm1513, %v1375, %v1641
      %v1770 = vsel %vm1514, %v1378, %v1642
      %v1771 = vsel %vm1515, %v1383, %v1643
      %v1772 = vsel %vm1516, %v1386, %v1644
      %v1773 = vpack.c.bf16 %v1646, %v1645
      %v1774 = vpack.c.bf16 %v1648, %v1647
      %v1775 = vpack.c.bf16 %v1650, %v1649
      %v1776 = vpack.c.bf16 %v1652, %v1651
      %v1777 = vpack.c.bf16 %v1654, %v1653
      %v1778 = vpack.c.bf16 %v1656, %v1655
      %v1779 = vpack.c.bf16 %v1658, %v1657
      %v1780 = vpack.c.bf16 %v1660, %v1659
      %v1781 = vpack.c.bf16 %v1662, %v1661
      %v1782 = vpack.c.bf16 %v1664, %v1663
      %v1783 = vpack.c.bf16 %v1666, %v1665
      %v1784 = vpack.c.bf16 %v1668, %v1667
      %v1785 = vpack.c.bf16 %v1670, %v1669
      %v1786 = vpack.c.bf16 %v1672, %v1671
      %v1787 = vpack.c.bf16 %v1674, %v1673
      %v1788 = vpack.c.bf16 %v1676, %v1675
      %v1789 = vpack.c.bf16 %v1678, %v1677
      %v1790 = vpack.c.bf16 %v1680, %v1679
      %v1791 = vpack.c.bf16 %v1682, %v1681
      %v1792 = vpack.c.bf16 %v1684, %v1683
      %v1793 = vpack.c.bf16 %v1686, %v1685
      %v1794 = vpack.c.bf16 %v1688, %v1687
      %v1795 = vpack.c.bf16 %v1690, %v1689
      %v1796 = vpack.c.bf16 %v1692, %v1691
      %v1797 = vpack.c.bf16 %v1694, %v1693
      %v1798 = vpack.c.bf16 %v1696, %v1695
      %v1799 = vpack.c.bf16 %v1698, %v1697
      %v1800 = vpack.c.bf16 %v1700, %v1699
      %v1801 = vpack.c.bf16 %v1702, %v1701
      %v1802 = vpack.c.bf16 %v1704, %v1703
      %v1803 = vpack.c.bf16 %v1706, %v1705
      %v1804 = vpack.c.bf16 %v1708, %v1707
      %v1805 = vpack.c.bf16 %v1710, %v1709
      %v1806 = vpack.c.bf16 %v1712, %v1711
      %v1807 = vpack.c.bf16 %v1714, %v1713
      %v1808 = vpack.c.bf16 %v1716, %v1715
      %v1809 = vpack.c.bf16 %v1718, %v1717
      %v1810 = vpack.c.bf16 %v1720, %v1719
      %v1811 = vpack.c.bf16 %v1722, %v1721
      %v1812 = vpack.c.bf16 %v1724, %v1723
      %v1813 = vpack.c.bf16 %v1726, %v1725
      %v1814 = vpack.c.bf16 %v1728, %v1727
      %v1815 = vpack.c.bf16 %v1730, %v1729
      %v1816 = vpack.c.bf16 %v1732, %v1731
      %v1817 = vpack.c.bf16 %v1734, %v1733
      %v1818 = vpack.c.bf16 %v1736, %v1735
      %v1819 = vpack.c.bf16 %v1738, %v1737
      %v1820 = vpack.c.bf16 %v1740, %v1739
      %v1821 = vpack.c.bf16 %v1742, %v1741
      %v1822 = vpack.c.bf16 %v1744, %v1743
      %v1823 = vpack.c.bf16 %v1746, %v1745
      %v1824 = vpack.c.bf16 %v1748, %v1747
      %v1825 = vpack.c.bf16 %v1750, %v1749
      %v1826 = vpack.c.bf16 %v1752, %v1751
      %v1827 = vpack.c.bf16 %v1754, %v1753
      %v1828 = vpack.c.bf16 %v1756, %v1755
      %v1829 = vpack.c.bf16 %v1758, %v1757
      %v1830 = vpack.c.bf16 %v1760, %v1759
      %v1831 = vpack.c.bf16 %v1762, %v1761
      %v1832 = vpack.c.bf16 %v1764, %v1763
      %v1833 = vpack.c.bf16 %v1766, %v1765
      %v1834 = vpack.c.bf16 %v1768, %v1767
      %v1835 = vpack.c.bf16 %v1770, %v1769
      %v1836 = vpack.c.bf16 %v1772, %v1771
      %v1901 = vunpack.c.l.b16 %v1773
      %v1902 = vunpack.c.h.b16 %v1773
      %v1903 = vunpack.c.l.b16 %v1774
      %v1904 = vunpack.c.h.b16 %v1774
      %v1905 = vunpack.c.l.b16 %v1775
      %v1906 = vunpack.c.h.b16 %v1775
      %v1907 = vunpack.c.l.b16 %v1776
      %v1908 = vunpack.c.h.b16 %v1776
      %v1909 = vunpack.c.l.b16 %v1777
      %v1910 = vunpack.c.h.b16 %v1777
      %v1911 = vunpack.c.l.b16 %v1778
      %v1912 = vunpack.c.h.b16 %v1778
      %v1913 = vunpack.c.l.b16 %v1779
      %v1914 = vunpack.c.h.b16 %v1779
      %v1915 = vunpack.c.l.b16 %v1780
      %v1916 = vunpack.c.h.b16 %v1780
      %v1917 = vunpack.c.l.b16 %v1781
      %v1918 = vunpack.c.h.b16 %v1781
      %v1919 = vunpack.c.l.b16 %v1782
      %v1920 = vunpack.c.h.b16 %v1782
      %v1921 = vunpack.c.l.b16 %v1783
      %v1922 = vunpack.c.h.b16 %v1783
      %v1923 = vunpack.c.l.b16 %v1784
      %v1924 = vunpack.c.h.b16 %v1784
      %v1925 = vunpack.c.l.b16 %v1785
      %v1926 = vunpack.c.h.b16 %v1785
      %v1927 = vunpack.c.l.b16 %v1786
      %v1928 = vunpack.c.h.b16 %v1786
      %v1929 = vunpack.c.l.b16 %v1787
      %v1930 = vunpack.c.h.b16 %v1787
      %v1931 = vunpack.c.l.b16 %v1788
      %v1932 = vunpack.c.h.b16 %v1788
      %v1933 = vunpack.c.l.b16 %v1789
      %v1934 = vunpack.c.h.b16 %v1789
      %v1935 = vunpack.c.l.b16 %v1790
      %v1936 = vunpack.c.h.b16 %v1790
      %v1937 = vunpack.c.l.b16 %v1791
      %v1938 = vunpack.c.h.b16 %v1791
      %v1939 = vunpack.c.l.b16 %v1792
      %v1940 = vunpack.c.h.b16 %v1792
      %v1941 = vunpack.c.l.b16 %v1793
      %v1942 = vunpack.c.h.b16 %v1793
      %v1943 = vunpack.c.l.b16 %v1794
      %v1944 = vunpack.c.h.b16 %v1794
      %v1945 = vunpack.c.l.b16 %v1795
      %v1946 = vunpack.c.h.b16 %v1795
      %v1947 = vunpack.c.l.b16 %v1796
      %v1948 = vunpack.c.h.b16 %v1796
      %v1949 = vunpack.c.l.b16 %v1797
      %v1950 = vunpack.c.h.b16 %v1797
      %v1951 = vunpack.c.l.b16 %v1798
      %v1952 = vunpack.c.h.b16 %v1798
      %v1953 = vunpack.c.l.b16 %v1799
      %v1954 = vunpack.c.h.b16 %v1799
      %v1955 = vunpack.c.l.b16 %v1800
      %v1956 = vunpack.c.h.b16 %v1800
      %v1957 = vunpack.c.l.b16 %v1801
      %v1958 = vunpack.c.h.b16 %v1801
      %v1959 = vunpack.c.l.b16 %v1802
      %v1960 = vunpack.c.h.b16 %v1802
      %v1961 = vunpack.c.l.b16 %v1803
      %v1962 = vunpack.c.h.b16 %v1803
      %v1963 = vunpack.c.l.b16 %v1804
      %v1964 = vunpack.c.h.b16 %v1804
      %v1965 = vunpack.c.l.b16 %v1805
      %v1966 = vunpack.c.h.b16 %v1805
      %v1967 = vunpack.c.l.b16 %v1806
      %v1968 = vunpack.c.h.b16 %v1806
      %v1969 = vunpack.c.l.b16 %v1807
      %v1970 = vunpack.c.h.b16 %v1807
      %v1971 = vunpack.c.l.b16 %v1808
      %v1972 = vunpack.c.h.b16 %v1808
      %v1973 = vunpack.c.l.b16 %v1809
      %v1974 = vunpack.c.h.b16 %v1809
      %v1975 = vunpack.c.l.b16 %v1810
      %v1976 = vunpack.c.h.b16 %v1810
      %v1977 = vunpack.c.l.b16 %v1811
      %v1978 = vunpack.c.h.b16 %v1811
      %v1979 = vunpack.c.l.b16 %v1812
      %v1980 = vunpack.c.h.b16 %v1812
      %v1981 = vunpack.c.l.b16 %v1813
      %v1982 = vunpack.c.h.b16 %v1813
      %v1983 = vunpack.c.l.b16 %v1814
      %v1984 = vunpack.c.h.b16 %v1814
      %v1985 = vunpack.c.l.b16 %v1815
      %v1986 = vunpack.c.h.b16 %v1815
      %v1987 = vunpack.c.l.b16 %v1816
      %v1988 = vunpack.c.h.b16 %v1816
      %v1989 = vunpack.c.l.b16 %v1817
      %v1990 = vunpack.c.h.b16 %v1817
      %v1991 = vunpack.c.l.b16 %v1818
      %v1992 = vunpack.c.h.b16 %v1818
      %v1993 = vunpack.c.l.b16 %v1819
      %v1994 = vunpack.c.h.b16 %v1819
      %v1995 = vunpack.c.l.b16 %v1820
      %v1996 = vunpack.c.h.b16 %v1820
      %v1997 = vunpack.c.l.b16 %v1821
      %v1998 = vunpack.c.h.b16 %v1821
      %v1999 = vunpack.c.l.b16 %v1822
      %v2000 = vunpack.c.h.b16 %v1822
      %v2001 = vunpack.c.l.b16 %v1823
      %v2002 = vunpack.c.h.b16 %v1823
      %v2003 = vunpack.c.l.b16 %v1824
      %v2004 = vunpack.c.h.b16 %v1824
      %v2005 = vunpack.c.l.b16 %v1825
      %v2006 = vunpack.c.h.b16 %v1825
      %v2007 = vunpack.c.l.b16 %v1826
      %v2008 = vunpack.c.h.b16 %v1826
      %v2009 = vunpack.c.l.b16 %v1827
      %v2010 = vunpack.c.h.b16 %v1827
      %v2011 = vunpack.c.l.b16 %v1828
      %v2012 = vunpack.c.h.b16 %v1828
      %v2013 = vunpack.c.l.b16 %v1829
      %v2014 = vunpack.c.h.b16 %v1829
      %v2015 = vunpack.c.l.b16 %v1830
      %v2016 = vunpack.c.h.b16 %v1830
      %v2017 = vunpack.c.l.b16 %v1831
      %v2018 = vunpack.c.h.b16 %v1831
      %v2019 = vunpack.c.l.b16 %v1832
      %v2020 = vunpack.c.h.b16 %v1832
      %v2021 = vunpack.c.l.b16 %v1833
      %v2022 = vunpack.c.h.b16 %v1833
      %v2023 = vunpack.c.l.b16 %v1834
      %v2024 = vunpack.c.h.b16 %v1834
      %v2025 = vunpack.c.l.b16 %v1835
      %v2026 = vunpack.c.h.b16 %v1835
      %v2027 = vunpack.c.l.b16 %v1836
      %v2028 = vunpack.c.h.b16 %v1836
      %v2029 = vpack.c.b16 %v1901, %v1901
      %v2030 = vpack.c.b16 %v1902, %v1902
      %v2031 = vpack.c.b16 %v1903, %v1903
      %v2032 = vpack.c.b16 %v1904, %v1904
      %v2033 = vpack.c.b16 %v1905, %v1905
      %v2034 = vpack.c.b16 %v1906, %v1906
      %v2035 = vpack.c.b16 %v1907, %v1907
      %v2036 = vpack.c.b16 %v1908, %v1908
      %v2037 = vpack.c.b16 %v1909, %v1909
      %v2038 = vpack.c.b16 %v1910, %v1910
      %v2039 = vpack.c.b16 %v1911, %v1911
      %v2040 = vpack.c.b16 %v1912, %v1912
      %v2041 = vpack.c.b16 %v1913, %v1913
      %v2042 = vpack.c.b16 %v1914, %v1914
      %v2043 = vpack.c.b16 %v1915, %v1915
      %v2044 = vpack.c.b16 %v1916, %v1916
      %v2045 = vpack.c.b16 %v1917, %v1917
      %v2046 = vpack.c.b16 %v1918, %v1918
      %v2047 = vpack.c.b16 %v1919, %v1919
      %v2048 = vpack.c.b16 %v1920, %v1920
      %v2049 = vpack.c.b16 %v1921, %v1921
      %v2050 = vpack.c.b16 %v1922, %v1922
      %v2051 = vpack.c.b16 %v1923, %v1923
      %v2052 = vpack.c.b16 %v1924, %v1924
      %v2053 = vpack.c.b16 %v1925, %v1925
      %v2054 = vpack.c.b16 %v1926, %v1926
      %v2055 = vpack.c.b16 %v1927, %v1927
      %v2056 = vpack.c.b16 %v1928, %v1928
      %v2057 = vpack.c.b16 %v1929, %v1929
      %v2058 = vpack.c.b16 %v1930, %v1930
      %v2059 = vpack.c.b16 %v1931, %v1931
      %v2060 = vpack.c.b16 %v1932, %v1932
      %v2061 = vpack.c.b16 %v1933, %v1933
      %v2062 = vpack.c.b16 %v1934, %v1934
      %v2063 = vpack.c.b16 %v1935, %v1935
      %v2064 = vpack.c.b16 %v1936, %v1936
      %v2065 = vpack.c.b16 %v1937, %v1937
      %v2066 = vpack.c.b16 %v1938, %v1938
      %v2067 = vpack.c.b16 %v1939, %v1939
      %v2068 = vpack.c.b16 %v1940, %v1940
      %v2069 = vpack.c.b16 %v1941, %v1941
      %v2070 = vpack.c.b16 %v1942, %v1942
      %v2071 = vpack.c.b16 %v1943, %v1943
      %v2072 = vpack.c.b16 %v1944, %v1944
      %v2073 = vpack.c.b16 %v1945, %v1945
      %v2074 = vpack.c.b16 %v1946, %v1946
      %v2075 = vpack.c.b16 %v1947, %v1947
      %v2076 = vpack.c.b16 %v1948, %v1948
      %v2077 = vpack.c.b16 %v1949, %v1949
      %v2078 = vpack.c.b16 %v1950, %v1950
      %v2079 = vpack.c.b16 %v1951, %v1951
      %v2080 = vpack.c.b16 %v1952, %v1952
      %v2081 = vpack.c.b16 %v1953, %v1953
      %v2082 = vpack.c.b16 %v1954, %v1954
      %v2083 = vpack.c.b16 %v1955, %v1955
      %v2084 = vpack.c.b16 %v1956, %v1956
      %v2085 = vpack.c.b16 %v1957, %v1957
      %v2086 = vpack.c.b16 %v1958, %v1958
      %v2087 = vpack.c.b16 %v1959, %v1959
      %v2088 = vpack.c.b16 %v1960, %v1960
      %v2089 = vpack.c.b16 %v1961, %v1961
      %v2090 = vpack.c.b16 %v1962, %v1962
      %v2091 = vpack.c.b16 %v1963, %v1963
      %v2092 = vpack.c.b16 %v1964, %v1964
      %v2093 = vpack.c.b16 %v1965, %v1965
      %v2094 = vpack.c.b16 %v1966, %v1966
      %v2095 = vpack.c.b16 %v1967, %v1967
      %v2096 = vpack.c.b16 %v1968, %v1968
      %v2097 = vpack.c.b16 %v1969, %v1969
      %v2098 = vpack.c.b16 %v1970, %v1970
      %v2099 = vpack.c.b16 %v1971, %v1971
      %v2100 = vpack.c.b16 %v1972, %v1972
      %v2101 = vpack.c.b16 %v1973, %v1973
      %v2102 = vpack.c.b16 %v1974, %v1974
      %v2103 = vpack.c.b16 %v1975, %v1975
      %v2104 = vpack.c.b16 %v1976, %v1976
      %v2105 = vpack.c.b16 %v1977, %v1977
      %v2106 = vpack.c.b16 %v1978, %v1978
      %v2107 = vpack.c.b16 %v1979, %v1979
      %v2108 = vpack.c.b16 %v1980, %v1980
      %v2109 = vpack.c.b16 %v1981, %v1981
      %v2110 = vpack.c.b16 %v1982, %v1982
      %v2111 = vpack.c.b16 %v1983, %v1983
      %v2112 = vpack.c.b16 %v1984, %v1984
      %v2113 = vpack.c.b16 %v1985, %v1985
      %v2114 = vpack.c.b16 %v1986, %v1986
      %v2115 = vpack.c.b16 %v1987, %v1987
      %v2116 = vpack.c.b16 %v1988, %v1988
      %v2117 = vpack.c.b16 %v1989, %v1989
      %v2118 = vpack.c.b16 %v1990, %v1990
      %v2119 = vpack.c.b16 %v1991, %v1991
      %v2120 = vpack.c.b16 %v1992, %v1992
      %v2121 = vpack.c.b16 %v1993, %v1993
      %v2122 = vpack.c.b16 %v1994, %v1994
      %v2123 = vpack.c.b16 %v1995, %v1995
      %v2124 = vpack.c.b16 %v1996, %v1996
      %v2125 = vpack.c.b16 %v1997, %v1997
      %v2126 = vpack.c.b16 %v1998, %v1998
      %v2127 = vpack.c.b16 %v1999, %v1999
      %v2128 = vpack.c.b16 %v2000, %v2000
      %v2129 = vpack.c.b16 %v2001, %v2001
      %v2130 = vpack.c.b16 %v2002, %v2002
      %v2131 = vpack.c.b16 %v2003, %v2003
      %v2132 = vpack.c.b16 %v2004, %v2004
      %v2133 = vpack.c.b16 %v2005, %v2005
      %v2134 = vpack.c.b16 %v2006, %v2006
      %v2135 = vpack.c.b16 %v2007, %v2007
      %v2136 = vpack.c.b16 %v2008, %v2008
      %v2137 = vpack.c.b16 %v2009, %v2009
      %v2138 = vpack.c.b16 %v2010, %v2010
      %v2139 = vpack.c.b16 %v2011, %v2011
      %v2140 = vpack.c.b16 %v2012, %v2012
      %v2141 = vpack.c.b16 %v2013, %v2013
      %v2142 = vpack.c.b16 %v2014, %v2014
      %v2143 = vpack.c.b16 %v2015, %v2015
      %v2144 = vpack.c.b16 %v2016, %v2016
      %v2145 = vpack.c.b16 %v2017, %v2017
      %v2146 = vpack.c.b16 %v2018, %v2018
      %v2147 = vpack.c.b16 %v2019, %v2019
      %v2148 = vpack.c.b16 %v2020, %v2020
      %v2149 = vpack.c.b16 %v2021, %v2021
      %v2150 = vpack.c.b16 %v2022, %v2022
      %v2151 = vpack.c.b16 %v2023, %v2023
      %v2152 = vpack.c.b16 %v2024, %v2024
      %v2153 = vpack.c.b16 %v2025, %v2025
      %v2154 = vpack.c.b16 %v2026, %v2026
      %v2155 = vpack.c.b16 %v2027, %v2027
      %v2156 = vpack.c.b16 %v2028, %v2028
      %vm2285 = vcmask 27648
      %2286 = vst.msk [vmem:[%s170] sm:$0xf] %vm2285, %v2029
      %2287 = vst.msk [vmem:[%s170 + $0x4] sm:$0xf] %vm2285, %v2030
      %2288 = vst.msk [vmem:[%s170 + $0x8] sm:$0xf] %vm2285, %v2031
      %2289 = vst.msk [vmem:[%s170 + $0xc] sm:$0xf] %vm2285, %v2032
      %2290 = vst.msk [vmem:[%s170 + $0x10] sm:$0xf] %vm2285, %v2033
      %2291 = vst.msk [vmem:[%s170 + $0x14] sm:$0xf] %vm2285, %v2034
      %2292 = vst.msk [vmem:[%s170 + $0x18] sm:$0xf] %vm2285, %v2035
      %2293 = vst.msk [vmem:[%s170 + $0x1c] sm:$0xf] %vm2285, %v2036
      %2294 = vst.msk [vmem:[%s170 + $0x20] sm:$0xf] %vm2285, %v2037
      %2295 = vst.msk [vmem:[%s170 + $0x24] sm:$0xf] %vm2285, %v2038
      %2296 = vst.msk [vmem:[%s170 + $0x28] sm:$0xf] %vm2285, %v2039
      %2297 = vst.msk [vmem:[%s170 + $0x2c] sm:$0xf] %vm2285, %v2040
      %2298 = vst.msk [vmem:[%s170 + $0x30] sm:$0xf] %vm2285, %v2041
      %2299 = vst.msk [vmem:[%s170 + $0x34] sm:$0xf] %vm2285, %v2042
      %2300 = vst.msk [vmem:[%s170 + $0x38] sm:$0xf] %vm2285, %v2043
      %2301 = vst.msk [vmem:[%s170 + $0x3c] sm:$0xf] %vm2285, %v2044
      %2302 = vst.msk [vmem:[%s170 + $0x40] sm:$0xf] %vm2285, %v2045
      %2303 = vst.msk [vmem:[%s170 + $0x44] sm:$0xf] %vm2285, %v2046
      %2304 = vst.msk [vmem:[%s170 + $0x48] sm:$0xf] %vm2285, %v2047
      %2305 = vst.msk [vmem:[%s170 + $0x4c] sm:$0xf] %vm2285, %v2048
      %2306 = vst.msk [vmem:[%s170 + $0x50] sm:$0xf] %vm2285, %v2049
      %2307 = vst.msk [vmem:[%s170 + $0x54] sm:$0xf] %vm2285, %v2050
      %2308 = vst.msk [vmem:[%s170 + $0x58] sm:$0xf] %vm2285, %v2051
      %2309 = vst.msk [vmem:[%s170 + $0x5c] sm:$0xf] %vm2285, %v2052
      %2310 = vst.msk [vmem:[%s170 + $0x60] sm:$0xf] %vm2285, %v2053
      %2311 = vst.msk [vmem:[%s170 + $0x64] sm:$0xf] %vm2285, %v2054
      %2312 = vst.msk [vmem:[%s170 + $0x68] sm:$0xf] %vm2285, %v2055
      %2313 = vst.msk [vmem:[%s170 + $0x6c] sm:$0xf] %vm2285, %v2056
      %2314 = vst.msk [vmem:[%s170 + $0x70] sm:$0xf] %vm2285, %v2057
      %2315 = vst.msk [vmem:[%s170 + $0x74] sm:$0xf] %vm2285, %v2058
      %2316 = vst.msk [vmem:[%s170 + $0x78] sm:$0xf] %vm2285, %v2059
      %2317 = vst.msk [vmem:[%s170 + $0x7c] sm:$0xf] %vm2285, %v2060
      %2318 = vst.msk [vmem:[%s170 + $0x80] sm:$0xf] %vm2285, %v2061
      %2319 = vst.msk [vmem:[%s170 + $0x84] sm:$0xf] %vm2285, %v2062
      %2320 = vst.msk [vmem:[%s170 + $0x88] sm:$0xf] %vm2285, %v2063
      %2321 = vst.msk [vmem:[%s170 + $0x8c] sm:$0xf] %vm2285, %v2064
      %2322 = vst.msk [vmem:[%s170 + $0x90] sm:$0xf] %vm2285, %v2065
      %2323 = vst.msk [vmem:[%s170 + $0x94] sm:$0xf] %vm2285, %v2066
      %2324 = vst.msk [vmem:[%s170 + $0x98] sm:$0xf] %vm2285, %v2067
      %2325 = vst.msk [vmem:[%s170 + $0x9c] sm:$0xf] %vm2285, %v2068
      %2326 = vst.msk [vmem:[%s170 + $0xa0] sm:$0xf] %vm2285, %v2069
      %2327 = vst.msk [vmem:[%s170 + $0xa4] sm:$0xf] %vm2285, %v2070
      %2328 = vst.msk [vmem:[%s170 + $0xa8] sm:$0xf] %vm2285, %v2071
      %2329 = vst.msk [vmem:[%s170 + $0xac] sm:$0xf] %vm2285, %v2072
      %2330 = vst.msk [vmem:[%s170 + $0xb0] sm:$0xf] %vm2285, %v2073
      %2331 = vst.msk [vmem:[%s170 + $0xb4] sm:$0xf] %vm2285, %v2074
      %2332 = vst.msk [vmem:[%s170 + $0xb8] sm:$0xf] %vm2285, %v2075
      %2333 = vst.msk [vmem:[%s170 + $0xbc] sm:$0xf] %vm2285, %v2076
      %2334 = vst.msk [vmem:[%s170 + $0xc0] sm:$0xf] %vm2285, %v2077
      %2335 = vst.msk [vmem:[%s170 + $0xc4] sm:$0xf] %vm2285, %v2078
      %2336 = vst.msk [vmem:[%s170 + $0xc8] sm:$0xf] %vm2285, %v2079
      %2337 = vst.msk [vmem:[%s170 + $0xcc] sm:$0xf] %vm2285, %v2080
      %2338 = vst.msk [vmem:[%s170 + $0xd0] sm:$0xf] %vm2285, %v2081
      %2339 = vst.msk [vmem:[%s170 + $0xd4] sm:$0xf] %vm2285, %v2082
      %2340 = vst.msk [vmem:[%s170 + $0xd8] sm:$0xf] %vm2285, %v2083
      %2341 = vst.msk [vmem:[%s170 + $0xdc] sm:$0xf] %vm2285, %v2084
      %2342 = vst.msk [vmem:[%s170 + $0xe0] sm:$0xf] %vm2285, %v2085
      %2343 = vst.msk [vmem:[%s170 + $0xe4] sm:$0xf] %vm2285, %v2086
      %2344 = vst.msk [vmem:[%s170 + $0xe8] sm:$0xf] %vm2285, %v2087
      %2345 = vst.msk [vmem:[%s170 + $0xec] sm:$0xf] %vm2285, %v2088
      %2346 = vst.msk [vmem:[%s170 + $0xf0] sm:$0xf] %vm2285, %v2089
      %2347 = vst.msk [vmem:[%s170 + $0xf4] sm:$0xf] %vm2285, %v2090
      %2348 = vst.msk [vmem:[%s170 + $0xf8] sm:$0xf] %vm2285, %v2091
      %2349 = vst.msk [vmem:[%s170 + $0xfc] sm:$0xf] %vm2285, %v2092
      %2350 = vst.msk [vmem:[%s170 + $0x100] sm:$0xf] %vm2285, %v2093
      %2351 = vst.msk [vmem:[%s170 + $0x104] sm:$0xf] %vm2285, %v2094
      %2352 = vst.msk [vmem:[%s170 + $0x108] sm:$0xf] %vm2285, %v2095
      %2353 = vst.msk [vmem:[%s170 + $0x10c] sm:$0xf] %vm2285, %v2096
      %2354 = vst.msk [vmem:[%s170 + $0x110] sm:$0xf] %vm2285, %v2097
      %2355 = vst.msk [vmem:[%s170 + $0x114] sm:$0xf] %vm2285, %v2098
      %2356 = vst.msk [vmem:[%s170 + $0x118] sm:$0xf] %vm2285, %v2099
      %2357 = vst.msk [vmem:[%s170 + $0x11c] sm:$0xf] %vm2285, %v2100
      %2358 = vst.msk [vmem:[%s170 + $0x120] sm:$0xf] %vm2285, %v2101
      %2359 = vst.msk [vmem:[%s170 + $0x124] sm:$0xf] %vm2285, %v2102
      %2360 = vst.msk [vmem:[%s170 + $0x128] sm:$0xf] %vm2285, %v2103
      %2361 = vst.msk [vmem:[%s170 + $0x12c] sm:$0xf] %vm2285, %v2104
      %2362 = vst.msk [vmem:[%s170 + $0x130] sm:$0xf] %vm2285, %v2105
      %2363 = vst.msk [vmem:[%s170 + $0x134] sm:$0xf] %vm2285, %v2106
      %2364 = vst.msk [vmem:[%s170 + $0x138] sm:$0xf] %vm2285, %v2107
      %2365 = vst.msk [vmem:[%s170 + $0x13c] sm:$0xf] %vm2285, %v2108
      %2366 = vst.msk [vmem:[%s170 + $0x140] sm:$0xf] %vm2285, %v2109
      %2367 = vst.msk [vmem:[%s170 + $0x144] sm:$0xf] %vm2285, %v2110
      %2368 = vst.msk [vmem:[%s170 + $0x148] sm:$0xf] %vm2285, %v2111
      %2369 = vst.msk [vmem:[%s170 + $0x14c] sm:$0xf] %vm2285, %v2112
      %2370 = vst.msk [vmem:[%s170 + $0x150] sm:$0xf] %vm2285, %v2113
      %2371 = vst.msk [vmem:[%s170 + $0x154] sm:$0xf] %vm2285, %v2114
      %2372 = vst.msk [vmem:[%s170 + $0x158] sm:$0xf] %vm2285, %v2115
      %2373 = vst.msk [vmem:[%s170 + $0x15c] sm:$0xf] %vm2285, %v2116
      %2374 = vst.msk [vmem:[%s170 + $0x160] sm:$0xf] %vm2285, %v2117
      %2375 = vst.msk [vmem:[%s170 + $0x164] sm:$0xf] %vm2285, %v2118
      %2376 = vst.msk [vmem:[%s170 + $0x168] sm:$0xf] %vm2285, %v2119
      %2377 = vst.msk [vmem:[%s170 + $0x16c] sm:$0xf] %vm2285, %v2120
      %2378 = vst.msk [vmem:[%s170 + $0x170] sm:$0xf] %vm2285, %v2121
      %2379 = vst.msk [vmem:[%s170 + $0x174] sm:$0xf] %vm2285, %v2122
      %2380 = vst.msk [vmem:[%s170 + $0x178] sm:$0xf] %vm2285, %v2123
      %2381 = vst.msk [vmem:[%s170 + $0x17c] sm:$0xf] %vm2285, %v2124
      %2382 = vst.msk [vmem:[%s170 + $0x180] sm:$0xf] %vm2285, %v2125
      %2383 = vst.msk [vmem:[%s170 + $0x184] sm:$0xf] %vm2285, %v2126
      %2384 = vst.msk [vmem:[%s170 + $0x188] sm:$0xf] %vm2285, %v2127
      %2385 = vst.msk [vmem:[%s170 + $0x18c] sm:$0xf] %vm2285, %v2128
      %2386 = vst.msk [vmem:[%s170 + $0x190] sm:$0xf] %vm2285, %v2129
      %2387 = vst.msk [vmem:[%s170 + $0x194] sm:$0xf] %vm2285, %v2130
      %2388 = vst.msk [vmem:[%s170 + $0x198] sm:$0xf] %vm2285, %v2131
      %2389 = vst.msk [vmem:[%s170 + $0x19c] sm:$0xf] %vm2285, %v2132
      %2390 = vst.msk [vmem:[%s170 + $0x1a0] sm:$0xf] %vm2285, %v2133
      %2391 = vst.msk [vmem:[%s170 + $0x1a4] sm:$0xf] %vm2285, %v2134
      %2392 = vst.msk [vmem:[%s170 + $0x1a8] sm:$0xf] %vm2285, %v2135
      %2393 = vst.msk [vmem:[%s170 + $0x1ac] sm:$0xf] %vm2285, %v2136
      %2394 = vst.msk [vmem:[%s170 + $0x1b0] sm:$0xf] %vm2285, %v2137
      %2395 = vst.msk [vmem:[%s170 + $0x1b4] sm:$0xf] %vm2285, %v2138
      %2396 = vst.msk [vmem:[%s170 + $0x1b8] sm:$0xf] %vm2285, %v2139
      %2397 = vst.msk [vmem:[%s170 + $0x1bc] sm:$0xf] %vm2285, %v2140
      %2398 = vst.msk [vmem:[%s170 + $0x1c0] sm:$0xf] %vm2285, %v2141
      %2399 = vst.msk [vmem:[%s170 + $0x1c4] sm:$0xf] %vm2285, %v2142
      %2400 = vst.msk [vmem:[%s170 + $0x1c8] sm:$0xf] %vm2285, %v2143
      %2401 = vst.msk [vmem:[%s170 + $0x1cc] sm:$0xf] %vm2285, %v2144
      %2402 = vst.msk [vmem:[%s170 + $0x1d0] sm:$0xf] %vm2285, %v2145
      %2403 = vst.msk [vmem:[%s170 + $0x1d4] sm:$0xf] %vm2285, %v2146
      %2404 = vst.msk [vmem:[%s170 + $0x1d8] sm:$0xf] %vm2285, %v2147
      %2405 = vst.msk [vmem:[%s170 + $0x1dc] sm:$0xf] %vm2285, %v2148
      %2406 = vst.msk [vmem:[%s170 + $0x1e0] sm:$0xf] %vm2285, %v2149
      %2407 = vst.msk [vmem:[%s170 + $0x1e4] sm:$0xf] %vm2285, %v2150
      %2408 = vst.msk [vmem:[%s170 + $0x1e8] sm:$0xf] %vm2285, %v2151
      %2409 = vst.msk [vmem:[%s170 + $0x1ec] sm:$0xf] %vm2285, %v2152
      %2410 = vst.msk [vmem:[%s170 + $0x1f0] sm:$0xf] %vm2285, %v2153
      %2411 = vst.msk [vmem:[%s170 + $0x1f4] sm:$0xf] %vm2285, %v2154
      %2412 = vst.msk [vmem:[%s170 + $0x1f8] sm:$0xf] %vm2285, %v2155
      %2413 = vst.msk [vmem:[%s170 + $0x1fc] sm:$0xf] %vm2285, %v2156
      %p2414 = scmp.lt.s32.totalorder %s14, 1
      %s2415 = scalar_select %p2414, %s14, 1
      %s2416 = smul.addr %s2415, 128
      %s2417 = smul.addr %s2416, 4
      %s2418 = scalar_lea.vmem %s3, %s2417
      // Predicated region
      $region33: #{image_encoder_forward.5} parent=31 // pred_check
        %p2419 = pneg %p100
      $region34: #{image_encoder_forward.5} parent=31 // pred_check_branch
        %2421 = sbr.rel (%p2419) target = $region36
      $region35: #{image_encoder_forward.5} parent=31 // pred_region
        _
      $region36: #{image_encoder_forward.5} parent=31 // pred_fallthru
        _
    $region32: #{image_encoder_forward.5} parent=5 // pred_fallthru
      _
    %p2422 = scmp.le.s32.totalorder 2, %s9
    // Predicated region
    $region37: #{image_encoder_forward.5} parent=5 // pred_check
      %p2423 = pneg %p2422
    $region38: #{image_encoder_forward.5} parent=5 // pred_check_branch
      %2425 = sbr.rel (%p2423) target = $region40
    $region39: #{image_encoder_forward.5} parent=5 // pred_region
      %s2426 = ssub.s32 %s9, 2
      // Predicated region
      $region41: #{image_encoder_forward.5} parent=39 // pred_check
        %p2427 = pneg %p106
      $region42: #{image_encoder_forward.5} parent=39 // pred_check_branch
        %2429 = sbr.rel (%p2427) target = $region44
      $region43: #{image_encoder_forward.5} parent=39 // pred_region
        %p2430 = scmp.lt.s32.totalorder %s15, 1
        %s2431 = scalar_select %p2430, %s15, 1
        %s2432 = smul.addr %s2431, 128
        %s2433 = smul.addr %s2432, 4
        %s2434 = scalar_lea.vmem %s3, %s2433
      $region44: #{image_encoder_forward.5} parent=39 // pred_fallthru
        _
    $region40: #{image_encoder_forward.5} parent=5 // pred_fallthru
      _
  $region6: #{image_encoder_forward.5} parent=0 // loop_footer
    %s13 = sadd.s32 1, %s9
  $region7: #{image_encoder_forward.5} parent=0 // loop_footer_branch
    %8 = sbr.rel target = $region3
  $region8: #{image_encoder_forward.5} parent=0 // loop_exit
    _

// kernel: image_encoder_forward.6
$region0: #{image_encoder_forward.6}
  #allocation0 [shape = 'u32[]', space=smem, size = 0x4, offset = 0x4, fixed_abs, tag = 'smem constant byte address 0x4 - core index']
  #allocation1 [shape = 'u32[144,128]{1,0:T(1,128)}', space=vmem, size = 0x12000, scoped, tag = 'internal scratch']
  %s0 = inlined_call_operand.vmem [shape: bf16[2,256,64], index: 0, kind: input, shape index: {}]
  %s1 = inlined_call_operand.vmem [shape: bf16[64,8], index: 1, kind: input, shape index: {}]
  %s2 = inlined_call_operand.vmem [shape: f32[1,8], index: 2, kind: input, shape index: {}]
  %s3 = inlined_call_operand.vmem [shape: bf16[2,256,8], index: 3, kind: output, shape index: {}]
  %s4 = sld [smem:[#allocation0]]
  $region45: #{image_encoder_forward.6} parent=0
    _
  %s6 = ssub.s32 1, %s4
  %s7 = scalar_select 0, %s6, %s4
  loop: start=0, step=1, limit=4
  $region2: #{image_encoder_forward.6} parent=0 // loop_pre_header
    _
  $region3: #{image_encoder_forward.6} parent=0 // loop_header
    %s9 = sphi 0, %s13
    %p10 = scmp.ge.s32.totalorder %s9, 4
    %s19 = sphi 0, %s21
    %s22 = sphi 0, %s19
    %s23 = sphi 0, %s22
    %s39 = sphi 0, %s23
    %s43 = sphi 0, %s43
    %s45 = sphi 0, %s43
    %s46 = sphi 0, %s45
    %s60 = sphi 0, %s46
    %s64 = sphi 0, %s64
    %s66 = sphi 0, %s64
    %s67 = sphi 0, %s66
    %s81 = sphi 0, %s67
    %s87 = sphi 0, %s89
    %s90 = sphi 0, %s87
    %s91 = sphi 0, %s90
    %s107 = sphi 0, %s91
  $region4: #{image_encoder_forward.6} parent=0 // loop_header_branch
    %12 = sbr.rel (%p10) target = $region8
  $region5: #{image_encoder_forward.6} parent=0 // loop_body
    %s14 = ssub.s32 %s9, 1
    %s15 = ssub.s32 %s9, 2
    %s16 = sadd.s32 %s9, 1
    %s17 = ssub.s32 %s9, %s16
    %p18 = scmp.eq.s32.totalorder %s17, 0
    %s20 = sadd.s32 %s19, 1
    %s21 = scalar_select %p18, %s19, %s20
    %p24 = pneg %p18
    %p25 = scmp.eq.s32.totalorder %s9, 1
    %p26 = por %p24, %p25
    %p27 = scmp.ne.s32.totalorder %s19, %s22
    %p28 = scmp.eq.s32.totalorder %s9, 0
    %p29 = por %p27, %p28
    %p30 = scmp.ne.s32.totalorder %s19, %s22
    %p31 = scmp.eq.s32.totalorder %s14, 1
    %p32 = por %p30, %p31
    %p33 = scmp.ne.s32.totalorder %s22, %s23
    %p34 = scmp.eq.s32.totalorder %s14, 0
    %p35 = por %p33, %p34
    %p36 = scmp.ne.s32.totalorder %s22, %s23
    %p37 = scmp.eq.s32.totalorder %s15, 1
    %p38 = por %p36, %p37
    %p40 = scmp.ne.s32.totalorder %s23, %s39
    %p41 = scmp.eq.s32.totalorder %s15, 0
    %p42 = por %p40, %p41
    %s44 = sadd.s32 %s43, 1
    %p47 = scmp.eq.s32.totalorder %s9, 1
    %p48 = scmp.ne.s32.totalorder %s43, %s45
    %p49 = scmp.eq.s32.totalorder %s9, 0
    %p50 = por %p48, %p49
    %p51 = scmp.ne.s32.totalorder %s43, %s45
    %p52 = scmp.eq.s32.totalorder %s14, 1
    %p53 = por %p51, %p52
    %p54 = scmp.ne.s32.totalorder %s45, %s46
    %p55 = scmp.eq.s32.totalorder %s14, 0
    %p56 = por %p54, %p55
    %p57 = scmp.ne.s32.totalorder %s45, %s46
    %p58 = scmp.eq.s32.totalorder %s15, 1
    %p59 = por %p57, %p58
    %p61 = scmp.ne.s32.totalorder %s46, %s60
    %p62 = scmp.eq.s32.totalorder %s15, 0
    %p63 = por %p61, %p62
    %s65 = sadd.s32 %s64, 1
    %p68 = scmp.eq.s32.totalorder %s9, 1
    %p69 = scmp.ne.s32.totalorder %s64, %s66
    %p70 = scmp.eq.s32.totalorder %s9, 0
    %p71 = por %p69, %p70
    %p72 = scmp.ne.s32.totalorder %s64, %s66
    %p73 = scmp.eq.s32.totalorder %s14, 1
    %p74 = por %p72, %p73
    %p75 = scmp.ne.s32.totalorder %s66, %s67
    %p76 = scmp.eq.s32.totalorder %s14, 0
    %p77 = por %p75, %p76
    %p78 = scmp.ne.s32.totalorder %s66, %s67
    %p79 = scmp.eq.s32.totalorder %s15, 1
    %p80 = por %p78, %p79
    %p82 = scmp.ne.s32.totalorder %s67, %s81
    %p83 = scmp.eq.s32.totalorder %s15, 0
    %p84 = por %p82, %p83
    %s85 = ssub.s32 %s9, %s16
    %p86 = scmp.eq.s32.totalorder %s85, 0
    %s88 = sadd.s32 %s87, 1
    %s89 = scalar_select %p86, %s87, %s88
    %p92 = pneg %p86
    %p93 = scmp.eq.s32.totalorder %s9, 1
    %p94 = por %p92, %p93
    %p95 = scmp.ne.s32.totalorder %s87, %s90
    %p96 = scmp.eq.s32.totalorder %s9, 0
    %p97 = por %p95, %p96
    %p98 = scmp.ne.s32.totalorder %s87, %s90
    %p99 = scmp.eq.s32.totalorder %s14, 1
    %p100 = por %p98, %p99
    %p101 = scmp.ne.s32.totalorder %s90, %s91
    %p102 = scmp.eq.s32.totalorder %s14, 0
    %p103 = por %p101, %p102
    %p104 = scmp.ne.s32.totalorder %s90, %s91
    %p105 = scmp.eq.s32.totalorder %s15, 1
    %p106 = por %p104, %p105
    %p108 = scmp.ne.s32.totalorder %s91, %s107
    %p109 = scmp.eq.s32.totalorder %s15, 0
    %p110 = por %p108, %p109
    %p111 = scmp.le.s32.totalorder 1, %s9
    %p112 = scmp.lt.s32.totalorder %s9, 3
    %p113 = pnand %p111, %p112
    %p114 = pneg %p113
    // Predicated region
    $region9: #{image_encoder_forward.6} parent=5 // pred_check
      _
    $region10: #{image_encoder_forward.6} parent=5 // pred_check_branch
      %116 = sbr.rel (%p113) target = $region12
    $region11: #{image_encoder_forward.6} parent=5 // pred_region
      %s117 = ssub.s32 %s9, 1
      // Predicated region
      $region13: #{image_encoder_forward.6} parent=11 // pred_check
        %p118 = pneg %p56
      $region14: #{image_encoder_forward.6} parent=11 // pred_check_branch
        %120 = sbr.rel (%p118) target = $region16
      $region15: #{image_encoder_forward.6} parent=11 // pred_region
        _
      $region16: #{image_encoder_forward.6} parent=11 // pred_fallthru
        _
      // Predicated region
      $region17: #{image_encoder_forward.6} parent=11 // pred_check
        %p121 = pneg %p77
      $region18: #{image_encoder_forward.6} parent=11 // pred_check_branch
        %123 = sbr.rel (%p121) target = $region20
      $region19: #{image_encoder_forward.6} parent=11 // pred_region
        _
      $region20: #{image_encoder_forward.6} parent=11 // pred_fallthru
        _
    $region12: #{image_encoder_forward.6} parent=5 // pred_fallthru
      _
    %p124 = scmp.lt.s32.totalorder %s9, 2
    // Predicated region
    $region21: #{image_encoder_forward.6} parent=5 // pred_check
      %p125 = pneg %p124
    $region22: #{image_encoder_forward.6} parent=5 // pred_check_branch
      %127 = sbr.rel (%p125) target = $region24
    $region23: #{image_encoder_forward.6} parent=5 // pred_region
      // Predicated region
      $region25: #{image_encoder_forward.6} parent=23 // pred_check
        %p128 = pneg %p29
      $region26: #{image_encoder_forward.6} parent=23 // pred_check_branch
        %130 = sbr.rel (%p128) target = $region28
      $region27: #{image_encoder_forward.6} parent=23 // pred_region
        %p131 = scmp.lt.s32.totalorder %s9, 1
        %s132 = scalar_select %p131, %s9, 1
        %s133 = smul.addr %s132, 32
        %s134 = smul.addr %s133, 4
        %s135 = scalar_lea.vmem %s0, %s134
      $region28: #{image_encoder_forward.6} parent=23 // pred_fallthru
        _
    $region24: #{image_encoder_forward.6} parent=5 // pred_fallthru
      _
    %p136 = scmp.le.s32.totalorder 1, %s9
    %p137 = scmp.lt.s32.totalorder %s9, 3
    %p138 = pnand %p136, %p137
    %p139 = pneg %p138
    // Predicated region
    $region29: #{image_encoder_forward.6} parent=5 // pred_check
      _
    $region30: #{image_encoder_forward.6} parent=5 // pred_check_branch
      %141 = sbr.rel (%p138) target = $region32
    $region31: #{image_encoder_forward.6} parent=5 // pred_region
      %s142 = ssub.s32 %s9, 1
      %p143 = scmp.lt.s32.totalorder %s14, 1
      %s144 = scalar_select %p143, %s14, 1
      %s145 = smul.addr %s144, 32
      %s146 = smul.addr %s145, 4
      %s147 = scalar_lea.vmem %s0, %s146
      %p148 = pneg %p35
      %p149 = pneg %p32
      %p150 = pneg %p56
      %p151 = pneg %p53
      %p152 = pneg %p77
      %p153 = pneg %p74
      %p154 = pneg %p103
      %p155 = pneg %p100
      %p156 = scmp.lt.s32.totalorder %s14, 1
      %s157 = scalar_select %p156, %s14, 1
      %s158 = smul.addr %s157, 32
      %s159 = smul.addr %s158, 4
      %s160 = scalar_lea.vmem %s3, %s159
      %p161 = scmp.lt.s32.totalorder %s14, 1
      %s162 = scalar_select %p161, %s14, 1
      %s163 = smul.addr %s162, 32
      %s164 = smul.addr %s163, 4
      %s165 = scalar_lea.vmem %s0, %s164
      %p166 = scmp.lt.s32.totalorder %s14, 1
      %s167 = scalar_select %p166, %s14, 1
      %s168 = smul.addr %s167, 32
      %s169 = smul.addr %s168, 4
      %s170 = scalar_lea.vmem %s3, %s169
      %v172 = vld [vmem:[%s165] sm:$0xf]
      %v173 = vld [vmem:[%s165 + $0x4] sm:$0xf]
      %v174 = vld [vmem:[%s165 + $0x8] sm:$0xf]
      %v175 = vld [vmem:[%s165 + $0xc] sm:$0xf]
      %v176 = vld [vmem:[%s165 + $0x10] sm:$0xf]
      %v177 = vld [vmem:[%s165 + $0x14] sm:$0xf]
      %v178 = vld [vmem:[%s165 + $0x18] sm:$0xf]
      %v179 = vld [vmem:[%s165 + $0x1c] sm:$0xf]
      %v180 = vld [vmem:[%s165 + $0x20] sm:$0xf]
      %v181 = vld [vmem:[%s165 + $0x24] sm:$0xf]
      %v182 = vld [vmem:[%s165 + $0x28] sm:$0xf]
      %v183 = vld [vmem:[%s165 + $0x2c] sm:$0xf]
      %v184 = vld [vmem:[%s165 + $0x30] sm:$0xf]
      %v185 = vld [vmem:[%s165 + $0x34] sm:$0xf]
      %v186 = vld [vmem:[%s165 + $0x38] sm:$0xf]
      %v187 = vld [vmem:[%s165 + $0x3c] sm:$0xf]
      %v188 = vld [vmem:[%s165 + $0x40] sm:$0xf]
      %v189 = vld [vmem:[%s165 + $0x44] sm:$0xf]
      %v190 = vld [vmem:[%s165 + $0x48] sm:$0xf]
      %v191 = vld [vmem:[%s165 + $0x4c] sm:$0xf]
      %v192 = vld [vmem:[%s165 + $0x50] sm:$0xf]
      %v193 = vld [vmem:[%s165 + $0x54] sm:$0xf]
      %v194 = vld [vmem:[%s165 + $0x58] sm:$0xf]
      %v195 = vld [vmem:[%s165 + $0x5c] sm:$0xf]
      %v196 = vld [vmem:[%s165 + $0x60] sm:$0xf]
      %v197 = vld [vmem:[%s165 + $0x64] sm:$0xf]
      %v198 = vld [vmem:[%s165 + $0x68] sm:$0xf]
      %v199 = vld [vmem:[%s165 + $0x6c] sm:$0xf]
      %v200 = vld [vmem:[%s165 + $0x70] sm:$0xf]
      %v201 = vld [vmem:[%s165 + $0x74] sm:$0xf]
      %v202 = vld [vmem:[%s165 + $0x78] sm:$0xf]
      %v203 = vld [vmem:[%s165 + $0x7c] sm:$0xf]
      %v204 = vld [vmem:[%s1] sm:$0xf]
      %v205 = vld [vmem:[%s1 + $0x4] sm:$0xf]
      %v206 = vld [vmem:[%s1 + $0x8] sm:$0xf]
      %v207 = vld [vmem:[%s1 + $0xc] sm:$0xf]
      %v208 = vld [vmem:[%s1 + $0x10] sm:$0xf]
      %v209 = vld [vmem:[%s1 + $0x14] sm:$0xf]
      %v210 = vld [vmem:[%s1 + $0x18] sm:$0xf]
      %v211 = vld [vmem:[%s1 + $0x1c] sm:$0xf]
      %v212 = vld [vmem:[%s2] sm:$0x1]
      %v214 = vlaneseq
      %v215 = vshrl.u32 %v214, 7
      %v216 = vsub.s32 0, %v215
      %v217 = vrot.slane %v212, %v216
      %v251 = vunpack.c.l.b16 %v172
      %v252 = vunpack.c.l.b16 %v173
      %v253 = vunpack.c.l.b16 %v174
      %v254 = vunpack.c.l.b16 %v175
      %v255 = vunpack.c.l.b16 %v176
      %v256 = vunpack.c.l.b16 %v177
      %v257 = vunpack.c.l.b16 %v178
      %v258 = vunpack.c.l.b16 %v179
      %v259 = vunpack.c.l.b16 %v180
      %v260 = vunpack.c.l.b16 %v181
      %v261 = vunpack.c.l.b16 %v182
      %v262 = vunpack.c.l.b16 %v183
      %v263 = vunpack.c.l.b16 %v184
      %v264 = vunpack.c.l.b16 %v185
      %v265 = vunpack.c.l.b16 %v186
      %v266 = vunpack.c.l.b16 %v187
      %v267 = vunpack.c.l.b16 %v188
      %v268 = vunpack.c.l.b16 %v189
      %v269 = vunpack.c.l.b16 %v190
      %v270 = vunpack.c.l.b16 %v191
      %v271 = vunpack.c.l.b16 %v192
      %v272 = vunpack.c.l.b16 %v193
      %v273 = vunpack.c.l.b16 %v194
      %v274 = vunpack.c.l.b16 %v195
      %v275 = vunpack.c.l.b16 %v196
      %v276 = vunpack.c.l.b16 %v197
      %v277 = vunpack.c.l.b16 %v198
      %v278 = vunpack.c.l.b16 %v199
      %v279 = vunpack.c.l.b16 %v200
      %v280 = vunpack.c.l.b16 %v201
      %v281 = vunpack.c.l.b16 %v202
      %v282 = vunpack.c.l.b16 %v203
      %v283 = vpack.c.b16 %v252, %v251
      %v284 = vpack.c.b16 %v254, %v253
      %v285 = vpack.c.b16 %v256, %v255
      %v286 = vpack.c.b16 %v258, %v257
      %v287 = vpack.c.b16 %v260, %v259
      %v288 = vpack.c.b16 %v262, %v261
      %v289 = vpack.c.b16 %v264, %v263
      %v290 = vpack.c.b16 %v266, %v265
      %v291 = vpack.c.b16 %v268, %v267
      %v292 = vpack.c.b16 %v270, %v269
      %v293 = vpack.c.b16 %v272, %v271
      %v294 = vpack.c.b16 %v274, %v273
      %v295 = vpack.c.b16 %v276, %v275
      %v296 = vpack.c.b16 %v278, %v277
      %v297 = vpack.c.b16 %v280, %v279
      %v298 = vpack.c.b16 %v282, %v281
      %v307 = vunpack.c.l.b16 %v204
      %v308 = vunpack.c.l.b16 %v205
      %v309 = vunpack.c.l.b16 %v206
      %v310 = vunpack.c.l.b16 %v207
      %v311 = vunpack.c.l.b16 %v208
      %v312 = vunpack.c.l.b16 %v209
      %v313 = vunpack.c.l.b16 %v210
      %v314 = vunpack.c.l.b16 %v211
      %v315 = vpack.c.b16 %v308, %v307
      %v316 = vpack.c.b16 %v310, %v309
      %v317 = vpack.c.b16 %v312, %v311
      %v318 = vpack.c.b16 %v314, %v313
      %vm323 = vcmask 523264
      %v325 = vsel %vm323, %v283, 0
      %v328 = vsel %vm323, %v284, 0
      %v331 = vsel %vm323, %v285, 0
      %v334 = vsel %vm323, %v286, 0
      %v337 = vsel %vm323, %v287, 0
      %v340 = vsel %vm323, %v288, 0
      %v343 = vsel %vm323, %v289, 0
      %v346 = vsel %vm323, %v290, 0
      %v349 = vsel %vm323, %v291, 0
      %v352 = vsel %vm323, %v292, 0
      %v355 = vsel %vm323, %v293, 0
      %v358 = vsel %vm323, %v294, 0
      %v361 = vsel %vm323, %v295, 0
      %v364 = vsel %vm323, %v296, 0
      %v367 = vsel %vm323, %v297, 0
      %v370 = vsel %vm323, %v298, 0
      %372 = vmatprep.subr.bf16.mxu0 0
      %373 = vmatpush1.bf16.msra.mxu0 %v315
      %374 = vmatprep.subr.bf16.mxu0 0
      %375 = vmatpush1.bf16.msra.mxu0 %v316
      %376 = vmatprep.subr.bf16.mxu0 0
      %377 = vmatpush1.bf16.msra.mxu0 %v317
      %378 = vmatprep.subr.bf16.mxu0 0
      %379 = vmatpush1.bf16.msra.mxu0 %v318
      %380 = vmatprep.subr.bf16.mxu0 0
      %381 = vmatpush1.bf16.msra.mxu0 0
      %382 = vmatprep.subr.bf16.mxu0 0
      %383 = vmatpush1.bf16.msra.mxu0 0
      %384 = vmatprep.subr.bf16.mxu0 0
      %385 = vmatpush1.bf16.msra.mxu0 0
      %386 = vmatprep.subr.bf16.mxu0 0
      %387 = vmatpush1.bf16.msra.mxu0 0
      %388 = vmatprep.subr.bf16.mxu0 0
      %389 = vmatpush1.bf16.msra.mxu0 0
      %390 = vmatprep.subr.bf16.mxu0 0
      %391 = vmatpush1.bf16.msra.mxu0 0
      %392 = vmatprep.subr.bf16.mxu0 0
      %393 = vmatpush1.bf16.msra.mxu0 0
      %394 = vmatprep.subr.bf16.mxu0 0
      %395 = vmatpush1.bf16.msra.mxu0 0
      %396 = vmatprep.subr.bf16.mxu0 0
      %397 = vmatpush1.bf16.msra.mxu0 0
      %398 = vmatprep.subr.bf16.mxu0 0
      %399 = vmatpush1.bf16.msra.mxu0 0
      %400 = vmatprep.subr.bf16.mxu0 0
      %401 = vmatpush1.bf16.msra.mxu0 0
      %402 = vmatprep.subr.bf16.mxu0 0
      %403 = vmatpush1.bf16.msra.mxu0 0
      %404 = vmatprep.mubr.bf16.mxu0 0
      %405 = vmatmul.mubr.bf16.gmra.mrb[0].mxu0 %v325
      %v406 = vpop.f32.mrb[0].mxu0
      %v407 = vadd.f32 %v217, %v406
      %v408 = vpop.f32.mrb[0].mxu0
      %v409 = vpop.f32.mrb[0].mxu0
      %v410 = vadd.f32 %v217, %v409
      %v411 = vpop.f32.mrb[0].mxu0
      %412 = vmatprep.mubr.bf16.mxu0 0
      %413 = vmatmul.mubr.bf16.gmra.mrb[0].mxu0 %v328
      %v414 = vpop.f32.mrb[0].mxu0
      %v415 = vadd.f32 %v217, %v414
      %v416 = vpop.f32.mrb[0].mxu0
      %v417 = vpop.f32.mrb[0].mxu0
      %v418 = vadd.f32 %v217, %v417
      %v419 = vpop.f32.mrb[0].mxu0
      %420 = vmatprep.mubr.bf16.mxu0 0
      %421 = vmatmul.mubr.bf16.gmra.mrb[0].mxu0 %v331
      %v422 = vpop.f32.mrb[0].mxu0
      %v423 = vadd.f32 %v217, %v422
      %v424 = vpop.f32.mrb[0].mxu0
      %v425 = vpop.f32.mrb[0].mxu0
      %v426 = vadd.f32 %v217, %v425
      %v427 = vpop.f32.mrb[0].mxu0
      %428 = vmatprep.mubr.bf16.mxu0 0
      %429 = vmatmul.mubr.bf16.gmra.mrb[0].mxu0 %v334
      %v430 = vpop.f32.mrb[0].mxu0
      %v431 = vadd.f32 %v217, %v430
      %v432 = vpop.f32.mrb[0].mxu0
      %v433 = vpop.f32.mrb[0].mxu0
      %v434 = vadd.f32 %v217, %v433
      %v435 = vpop.f32.mrb[0].mxu0
      %436 = vmatprep.mubr.bf16.mxu0 0
      %437 = vmatmul.mubr.bf16.gmra.mrb[0].mxu0 %v337
      %v438 = vpop.f32.mrb[0].mxu0
      %v439 = vadd.f32 %v217, %v438
      %v440 = vpop.f32.mrb[0].mxu0
      %v441 = vpop.f32.mrb[0].mxu0
      %v442 = vadd.f32 %v217, %v441
      %v443 = vpop.f32.mrb[0].mxu0
      %444 = vmatprep.mubr.bf16.mxu0 0
      %445 = vmatmul.mubr.bf16.gmra.mrb[0].mxu0 %v340
      %v446 = vpop.f32.mrb[0].mxu0
      %v447 = vadd.f32 %v217, %v446
      %v448 = vpop.f32.mrb[0].mxu0
      %v449 = vpop.f32.mrb[0].mxu0
      %v450 = vadd.f32 %v217, %v449
      %v451 = vpop.f32.mrb[0].mxu0
      %452 = vmatprep.mubr.bf16.mxu0 0
      %453 = vmatmul.mubr.bf16.gmra.mrb[0].mxu0 %v343
      %v454 = vpop.f32.mrb[0].mxu0
      %v455 = vadd.f32 %v217, %v454
      %v456 = vpop.f32.mrb[0].mxu0
      %v457 = vpop.f32.mrb[0].mxu0
      %v458 = vadd.f32 %v217, %v457
      %v459 = vpop.f32.mrb[0].mxu0
      %460 = vmatprep.mubr.bf16.mxu0 0
      %461 = vmatmul.mubr.bf16.gmra.mrb[0].mxu0 %v346
      %v462 = vpop.f32.mrb[0].mxu0
      %v463 = vadd.f32 %v217, %v462
      %v464 = vpop.f32.mrb[0].mxu0
      %v465 = vpop.f32.mrb[0].mxu0
      %v466 = vadd.f32 %v217, %v465
      %v467 = vpop.f32.mrb[0].mxu0
      %468 = vmatprep.mubr.bf16.mxu0 0
      %469 = vmatmul.mubr.bf16.gmra.mrb[0].mxu0 %v349
      %v470 = vpop.f32.mrb[0].mxu0
      %v471 = vadd.f32 %v217, %v470
      %v472 = vpop.f32.mrb[0].mxu0
      %v473 = vpop.f32.mrb[0].mxu0
      %v474 = vadd.f32 %v217, %v473
      %v475 = vpop.f32.mrb[0].mxu0
      %476 = vmatprep.mubr.bf16.mxu0 0
      %477 = vmatmul.mubr.bf16.gmra.mrb[0].mxu0 %v352
      %v478 = vpop.f32.mrb[0].mxu0
      %v479 = vadd.f32 %v217, %v478
      %v480 = vpop.f32.mrb[0].mxu0
      %v481 = vpop.f32.mrb[0].mxu0
      %v482 = vadd.f32 %v217, %v481
      %v483 = vpop.f32.mrb[0].mxu0
      %484 = vmatprep.mubr.bf16.mxu0 0
      %485 = vmatmul.mubr.bf16.gmra.mrb[0].mxu0 %v355
      %v486 = vpop.f32.mrb[0].mxu0
      %v487 = vadd.f32 %v217, %v486
      %v488 = vpop.f32.mrb[0].mxu0
      %v489 = vpop.f32.mrb[0].mxu0
      %v490 = vadd.f32 %v217, %v489
      %v491 = vpop.f32.mrb[0].mxu0
      %492 = vmatprep.mubr.bf16.mxu0 0
      %493 = vmatmul.mubr.bf16.gmra.mrb[0].mxu0 %v358
      %v494 = vpop.f32.mrb[0].mxu0
      %v495 = vadd.f32 %v217, %v494
      %v496 = vpop.f32.mrb[0].mxu0
      %v497 = vpop.f32.mrb[0].mxu0
      %v498 = vadd.f32 %v217, %v497
      %v499 = vpop.f32.mrb[0].mxu0
      %500 = vmatprep.mubr.bf16.mxu0 0
      %501 = vmatmul.mubr.bf16.gmra.mrb[0].mxu0 %v361
      %v502 = vpop.f32.mrb[0].mxu0
      %v503 = vadd.f32 %v217, %v502
      %v504 = vpop.f32.mrb[0].mxu0
      %v505 = vpop.f32.mrb[0].mxu0
      %v506 = vadd.f32 %v217, %v505
      %v507 = vpop.f32.mrb[0].mxu0
      %508 = vmatprep.mubr.bf16.mxu0 0
      %509 = vmatmul.mubr.bf16.gmra.mrb[0].mxu0 %v364
      %v510 = vpop.f32.mrb[0].mxu0
      %v511 = vadd.f32 %v217, %v510
      %v512 = vpop.f32.mrb[0].mxu0
      %v513 = vpop.f32.mrb[0].mxu0
      %v514 = vadd.f32 %v217, %v513
      %v515 = vpop.f32.mrb[0].mxu0
      %516 = vmatprep.mubr.bf16.mxu0 0
      %517 = vmatmul.mubr.bf16.gmra.mrb[0].mxu0 %v367
      %v518 = vpop.f32.mrb[0].mxu0
      %v519 = vadd.f32 %v217, %v518
      %v520 = vpop.f32.mrb[0].mxu0
      %v521 = vpop.f32.mrb[0].mxu0
      %v522 = vadd.f32 %v217, %v521
      %v523 = vpop.f32.mrb[0].mxu0
      %524 = vmatprep.mubr.bf16.mxu0 0
      %525 = vmatmul.mubr.bf16.gmra.mrb[0].mxu0 %v370
      %v526 = vpop.f32.mrb[0].mxu0
      %v527 = vadd.f32 %v217, %v526
      %v528 = vpop.f32.mrb[0].mxu0
      %v529 = vpop.f32.mrb[0].mxu0
      %v530 = vadd.f32 %v217, %v529
      %v531 = vpop.f32.mrb[0].mxu0
      %532 = vdwg.mxu0
      %vm533 = vcmask 64512
      %v534 = vsel %vm533, %v407, 0.0
      %v535 = vsel %vm533, %v410, 0.0
      %v536 = vadd.f32 %v534, %v535
      %v537 = vsel %vm533, %v415, 0.0
      %v538 = vadd.f32 %v536, %v537
      %v539 = vsel %vm533, %v418, 0.0
      %v540 = vadd.f32 %v538, %v539
      %v541 = vsel %vm533, %v423, 0.0
      %v542 = vadd.f32 %v540, %v541
      %v543 = vsel %vm533, %v426, 0.0
      %v544 = vadd.f32 %v542, %v543
      %v545 = vsel %vm533, %v431, 0.0
      %v546 = vadd.f32 %v544, %v545
      %v547 = vsel %vm533, %v434, 0.0
      %v548 = vadd.f32 %v546, %v547
      %v549 = vsel %vm533, %v439, 0.0
      %v550 = vadd.f32 %v548, %v549
      %v551 = vsel %vm533, %v442, 0.0
      %v552 = vadd.f32 %v550, %v551
      %v553 = vsel %vm533, %v447, 0.0
      %v554 = vadd.f32 %v552, %v553
      %v555 = vsel %vm533, %v450, 0.0
      %v556 = vadd.f32 %v554, %v555
      %v557 = vsel %vm533, %v455, 0.0
      %v558 = vadd.f32 %v556, %v557
      %v559 = vsel %vm533, %v458, 0.0
      %v560 = vadd.f32 %v558, %v559
      %v561 = vsel %vm533, %v463, 0.0
      %v562 = vadd.f32 %v560, %v561
      %v563 = vsel %vm533, %v466, 0.0
      %v564 = vadd.f32 %v562, %v563
      %v565 = vsel %vm533, %v471, 0.0
      %v566 = vadd.f32 %v564, %v565
      %v567 = vsel %vm533, %v474, 0.0
      %v568 = vadd.f32 %v566, %v567
      %v569 = vsel %vm533, %v479, 0.0
      %v570 = vadd.f32 %v568, %v569
      %v571 = vsel %vm533, %v482, 0.0
      %v572 = vadd.f32 %v570, %v571
      %v573 = vsel %vm533, %v487, 0.0
      %v574 = vadd.f32 %v572, %v573
      %v575 = vsel %vm533, %v490, 0.0
      %v576 = vadd.f32 %v574, %v575
      %v577 = vsel %vm533, %v495, 0.0
      %v578 = vadd.f32 %v576, %v577
      %v579 = vsel %vm533, %v498, 0.0
      %v580 = vadd.f32 %v578, %v579
      %v581 = vsel %vm533, %v503, 0.0
      %v582 = vadd.f32 %v580, %v581
      %v583 = vsel %vm533, %v506, 0.0
      %v584 = vadd.f32 %v582, %v583
      %v585 = vsel %vm533, %v511, 0.0
      %v586 = vadd.f32 %v584, %v585
      %v587 = vsel %vm533, %v514, 0.0
      %v588 = vadd.f32 %v586, %v587
      %v589 = vsel %vm533, %v519, 0.0
      %v590 = vadd.f32 %v588, %v589
      %v591 = vsel %vm533, %v522, 0.0
      %v592 = vadd.f32 %v590, %v591
      %v593 = vsel %vm533, %v527, 0.0
      %v594 = vadd.f32 %v592, %v593
      %v595 = vsel %vm533, %v530, 0.0
      %v596 = vadd.f32 %v594, %v595
      %v597 = vrot.slane %v596, 4
      %v598 = vadd.f32 %v596, %v597
      %v599 = vrot.slane %v598, 2
      %v600 = vadd.f32 %v598, %v599
      %v601 = vrot.slane %v600, 1
      %v602 = vadd.f32 %v600, %v601
      %v603 = vrcp.pop 256.0
      %v604 = vmul.f32 %v602, %v603
      %v605 = vsub.f32 %v407, %v604
      %v606 = vsub.f32 %v410, %v604
      %v607 = vsub.f32 %v415, %v604
      %v608 = vsub.f32 %v418, %v604
      %v609 = vsub.f32 %v423, %v604
      %v610 = vsub.f32 %v426, %v604
      %v611 = vsub.f32 %v431, %v604
      %v612 = vsub.f32 %v434, %v604
      %v613 = vsub.f32 %v439, %v604
      %v614 = vsub.f32 %v442, %v604
      %v615 = vsub.f32 %v447, %v604
      %v616 = vsub.f32 %v450, %v604
      %v617 = vsub.f32 %v455, %v604
      %v618 = vsub.f32 %v458, %v604
      %v619 = vsub.f32 %v463, %v604
      %v620 = vsub.f32 %v466, %v604
      %v621 = vsub.f32 %v471, %v604
      %v622 = vsub.f32 %v474, %v604
      %v623 = vsub.f32 %v479, %v604
      %v624 = vsub.f32 %v482, %v604
      %v625 = vsub.f32 %v487, %v604
      %v626 = vsub.f32 %v490, %v604
      %v627 = vsub.f32 %v495, %v604
      %v628 = vsub.f32 %v498, %v604
      %v629 = vsub.f32 %v503, %v604
      %v630 = vsub.f32 %v506, %v604
      %v631 = vsub.f32 %v511, %v604
      %v632 = vsub.f32 %v514, %v604
      %v633 = vsub.f32 %v519, %v604
      %v634 = vsub.f32 %v522, %v604
      %v635 = vsub.f32 %v527, %v604
      %v636 = vsub.f32 %v530, %v604
      %v637 = vmul.f32 %v605, %v605
      %v638 = vmul.f32 %v606, %v606
      %v639 = vmul.f32 %v607, %v607
      %v640 = vmul.f32 %v608, %v608
      %v641 = vmul.f32 %v609, %v609
      %v642 = vmul.f32 %v610, %v610
      %v643 = vmul.f32 %v611, %v611
      %v644 = vmul.f32 %v612, %v612
      %v645 = vmul.f32 %v613, %v613
      %v646 = vmul.f32 %v614, %v614
      %v647 = vmul.f32 %v615, %v615
      %v648 = vmul.f32 %v616, %v616
      %v649 = vmul.f32 %v617, %v617
      %v650 = vmul.f32 %v618, %v618
      %v651 = vmul.f32 %v619, %v619
      %v652 = vmul.f32 %v620, %v620
      %v653 = vmul.f32 %v621, %v621
      %v654 = vmul.f32 %v622, %v622
      %v655 = vmul.f32 %v623, %v623
      %v656 = vmul.f32 %v624, %v624
      %v657 = vmul.f32 %v625, %v625
      %v658 = vmul.f32 %v626, %v626
      %v659 = vmul.f32 %v627, %v627
      %v660 = vmul.f32 %v628, %v628
      %v661 = vmul.f32 %v629, %v629
      %v662 = vmul.f32 %v630, %v630
      %v663 = vmul.f32 %v631, %v631
      %v664 = vmul.f32 %v632, %v632
      %v665 = vmul.f32 %v633, %v633
      %v666 = vmul.f32 %v634, %v634
      %v667 = vmul.f32 %v635, %v635
      %v668 = vmul.f32 %v636, %v636
      %v669 = vsel %vm533, %v637, 0.0
      %v670 = vsel %vm533, %v638, 0.0
      %v671 = vadd.f32 %v669, %v670
      %v672 = vsel %vm533, %v639, 0.0
      %v673 = vadd.f32 %v671, %v672
      %v674 = vsel %vm533, %v640, 0.0
      %v675 = vadd.f32 %v673, %v674
      %v676 = vsel %vm533, %v641, 0.0
      %v677 = vadd.f32 %v675, %v676
      %v678 = vsel %vm533, %v642, 0.0
      %v679 = vadd.f32 %v677, %v678
      %v680 = vsel %vm533, %v643, 0.0
      %v681 = vadd.f32 %v679, %v680
      %v682 = vsel %vm533, %v644, 0.0
      %v683 = vadd.f32 %v681, %v682
      %v684 = vsel %vm533, %v645, 0.0
      %v685 = vadd.f32 %v683, %v684
      %v686 = vsel %vm533, %v646, 0.0
      %v687 = vadd.f32 %v685, %v686
      %v688 = vsel %vm533, %v647, 0.0
      %v689 = vadd.f32 %v687, %v688
      %v690 = vsel %vm533, %v648, 0.0
      %v691 = vadd.f32 %v689, %v690
      %v692 = vsel %vm533, %v649, 0.0
      %v693 = vadd.f32 %v691, %v692
      %v694 = vsel %vm533, %v650, 0.0
      %v695 = vadd.f32 %v693, %v694
      %v696 = vsel %vm533, %v651, 0.0
      %v697 = vadd.f32 %v695, %v696
      %v698 = vsel %vm533, %v652, 0.0
      %v699 = vadd.f32 %v697, %v698
      %v700 = vsel %vm533, %v653, 0.0
      %v701 = vadd.f32 %v699, %v700
      %v702 = vsel %vm533, %v654, 0.0
      %v703 = vadd.f32 %v701, %v702
      %v704 = vsel %vm533, %v655, 0.0
      %v705 = vadd.f32 %v703, %v704
      %v706 = vsel %vm533, %v656, 0.0
      %v707 = vadd.f32 %v705, %v706
      %v708 = vsel %vm533, %v657, 0.0
      %v709 = vadd.f32 %v707, %v708
      %v710 = vsel %vm533, %v658, 0.0
      %v711 = vadd.f32 %v709, %v710
      %v712 = vsel %vm533, %v659, 0.0
      %v713 = vadd.f32 %v711, %v712
      %v714 = vsel %vm533, %v660, 0.0
      %v715 = vadd.f32 %v713, %v714
      %v716 = vsel %vm533, %v661, 0.0
      %v717 = vadd.f32 %v715, %v716
      %v718 = vsel %vm533, %v662, 0.0
      %v719 = vadd.f32 %v717, %v718
      %v720 = vsel %vm533, %v663, 0.0
      %v721 = vadd.f32 %v719, %v720
      %v722 = vsel %vm533, %v664, 0.0
      %v723 = vadd.f32 %v721, %v722
      %v724 = vsel %vm533, %v665, 0.0
      %v725 = vadd.f32 %v723, %v724
      %v726 = vsel %vm533, %v666, 0.0
      %v727 = vadd.f32 %v725, %v726
      %v728 = vsel %vm533, %v667, 0.0
      %v729 = vadd.f32 %v727, %v728
      %v730 = vsel %vm533, %v668, 0.0
      %v731 = vadd.f32 %v729, %v730
      %v732 = vrot.slane %v731, 4
      %v733 = vadd.f32 %v731, %v732
      %v734 = vrot.slane %v733, 2
      %v735 = vadd.f32 %v733, %v734
      %v736 = vrot.slane %v735, 1
      %v737 = vadd.f32 %v735, %v736
      %v738 = vmul.f32 %v737, %v603
      %v739 = vadd.f32 %v738, 1e-05
      %v740 = vrsqrt.pop %v739
      %v741 = vmul.f32 %v605, %v740
      %v742 = vmul.f32 %v606, %v740
      %v743 = vmul.f32 %v607, %v740
      %v744 = vmul.f32 %v608, %v740
      %v745 = vmul.f32 %v609, %v740
      %v746 = vmul.f32 %v610, %v740
      %v747 = vmul.f32 %v611, %v740
      %v748 = vmul.f32 %v612, %v740
      %v749 = vmul.f32 %v613, %v740
      %v750 = vmul.f32 %v614, %v740
      %v751 = vmul.f32 %v615, %v740
      %v752 = vmul.f32 %v616, %v740
      %v753 = vmul.f32 %v617, %v740
      %v754 = vmul.f32 %v618, %v740
      %v755 = vmul.f32 %v619, %v740
      %v756 = vmul.f32 %v620, %v740
      %v757 = vmul.f32 %v621, %v740
      %v758 = vmul.f32 %v622, %v740
      %v759 = vmul.f32 %v623, %v740
      %v760 = vmul.f32 %v624, %v740
      %v761 = vmul.f32 %v625, %v740
      %v762 = vmul.f32 %v626, %v740
      %v763 = vmul.f32 %v627, %v740
      %v764 = vmul.f32 %v628, %v740
      %v765 = vmul.f32 %v629, %v740
      %v766 = vmul.f32 %v630, %v740
      %v767 = vmul.f32 %v631, %v740
      %v768 = vmul.f32 %v632, %v740
      %v769 = vmul.f32 %v633, %v740
      %v770 = vmul.f32 %v634, %v740
      %v771 = vmul.f32 %v635, %v740
      %v772 = vmul.f32 %v636, %v740
      %vm773 = vcmp.ge.f32.partialorder %v741, 0.0
      %vm774 = vcmp.ge.f32.partialorder %v742, 0.0
      %vm775 = vcmp.ge.f32.partialorder %v743, 0.0
      %vm776 = vcmp.ge.f32.partialorder %v744, 0.0
      %vm777 = vcmp.ge.f32.partialorder %v745, 0.0
      %vm778 = vcmp.ge.f32.partialorder %v746, 0.0
      %vm779 = vcmp.ge.f32.partialorder %v747, 0.0
      %vm780 = vcmp.ge.f32.partialorder %v748, 0.0
      %vm781 = vcmp.ge.f32.partialorder %v749, 0.0
      %vm782 = vcmp.ge.f32.partialorder %v750, 0.0
      %vm783 = vcmp.ge.f32.partialorder %v751, 0.0
      %vm784 = vcmp.ge.f32.partialorder %v752, 0.0
      %vm785 = vcmp.ge.f32.partialorder %v753, 0.0
      %vm786 = vcmp.ge.f32.partialorder %v754, 0.0
      %vm787 = vcmp.ge.f32.partialorder %v755, 0.0
      %vm788 = vcmp.ge.f32.partialorder %v756, 0.0
      %vm789 = vcmp.ge.f32.partialorder %v757, 0.0
      %vm790 = vcmp.ge.f32.partialorder %v758, 0.0
      %vm791 = vcmp.ge.f32.partialorder %v759, 0.0
      %vm792 = vcmp.ge.f32.partialorder %v760, 0.0
      %vm793 = vcmp.ge.f32.partialorder %v761, 0.0
      %vm794 = vcmp.ge.f32.partialorder %v762, 0.0
      %vm795 = vcmp.ge.f32.partialorder %v763, 0.0
      %vm796 = vcmp.ge.f32.partialorder %v764, 0.0
      %vm797 = vcmp.ge.f32.partialorder %v765, 0.0
      %vm798 = vcmp.ge.f32.partialorder %v766, 0.0
      %vm799 = vcmp.ge.f32.partialorder %v767, 0.0
      %vm800 = vcmp.ge.f32.partialorder %v768, 0.0
      %vm801 = vcmp.ge.f32.partialorder %v769, 0.0
      %vm802 = vcmp.ge.f32.partialorder %v770, 0.0
      %vm803 = vcmp.ge.f32.partialorder %v771, 0.0
      %vm804 = vcmp.ge.f32.partialorder %v772, 0.0
      %v805 = vmul.f32 %v741, 0.2
      %v806 = vmul.f32 %v742, 0.2
      %v807 = vmul.f32 %v743, 0.2
      %v808 = vmul.f32 %v744, 0.2
      %v809 = vmul.f32 %v745, 0.2
      %v810 = vmul.f32 %v746, 0.2
      %v811 = vmul.f32 %v747, 0.2
      %v812 = vmul.f32 %v748, 0.2
      %v813 = vmul.f32 %v749, 0.2
      %v814 = vmul.f32 %v750, 0.2
      %v815 = vmul.f32 %v751, 0.2
      %v816 = vmul.f32 %v752, 0.2
      %v817 = vmul.f32 %v753, 0.2
      %v818 = vmul.f32 %v754, 0.2
      %v819 = vmul.f32 %v755, 0.2
      %v820 = vmul.f32 %v756, 0.2
      %v821 = vmul.f32 %v757, 0.2
      %v822 = vmul.f32 %v758, 0.2
      %v823 = vmul.f32 %v759, 0.2
      %v824 = vmul.f32 %v760, 0.2
      %v825 = vmul.f32 %v761, 0.2
      %v826 = vmul.f32 %v762, 0.2
      %v827 = vmul.f32 %v763, 0.2
      %v828 = vmul.f32 %v764, 0.2
      %v829 = vmul.f32 %v765, 0.2
      %v830 = vmul.f32 %v766, 0.2
      %v831 = vmul.f32 %v767, 0.2
      %v832 = vmul.f32 %v768, 0.2
      %v833 = vmul.f32 %v769, 0.2
      %v834 = vmul.f32 %v770, 0.2
      %v835 = vmul.f32 %v771, 0.2
      %v836 = vmul.f32 %v772, 0.2
      %v837 = vsel %vm773, %v741, %v805
      %v838 = vsel %vm774, %v742, %v806
      %v839 = vsel %vm775, %v743, %v807
      %v840 = vsel %vm776, %v744, %v808
      %v841 = vsel %vm777, %v745, %v809
      %v842 = vsel %vm778, %v746, %v810
      %v843 = vsel %vm779, %v747, %v811
      %v844 = vsel %vm780, %v748, %v812
      %v845 = vsel %vm781, %v749, %v813
      %v846 = vsel %vm782, %v750, %v814
      %v847 = vsel %vm783, %v751, %v815
      %v848 = vsel %vm784, %v752, %v816
      %v849 = vsel %vm785, %v753, %v817
      %v850 = vsel %vm786, %v754, %v818
      %v851 = vsel %vm787, %v755, %v819
      %v852 = vsel %vm788, %v756, %v820
      %v853 = vsel %vm789, %v757, %v821
      %v854 = vsel %vm790, %v758, %v822
      %v855 = vsel %vm791, %v759, %v823
      %v856 = vsel %vm792, %v760, %v824
      %v857 = vsel %vm793, %v761, %v825
      %v858 = vsel %vm794, %v762, %v826
      %v859 = vsel %vm795, %v763, %v827
      %v860 = vsel %vm796, %v764, %v828
      %v861 = vsel %vm797, %v765, %v829
      %v862 = vsel %vm798, %v766, %v830
      %v863 = vsel %vm799, %v767, %v831
      %v864 = vsel %vm800, %v768, %v832
      %v865 = vsel %vm801, %v769, %v833
      %v866 = vsel %vm802, %v770, %v834
      %v867 = vsel %vm803, %v771, %v835
      %v868 = vsel %vm804, %v772, %v836
      %v869 = vpack.c.bf16 %v838, %v837
      %v870 = vpack.c.bf16 %v840, %v839
      %v871 = vpack.c.bf16 %v842, %v841
      %v872 = vpack.c.bf16 %v844, %v843
      %v873 = vpack.c.bf16 %v846, %v845
      %v874 = vpack.c.bf16 %v848, %v847
      %v875 = vpack.c.bf16 %v850, %v849
      %v876 = vpack.c.bf16 %v852, %v851
      %v877 = vpack.c.bf16 %v854, %v853
      %v878 = vpack.c.bf16 %v856, %v855
      %v879 = vpack.c.bf16 %v858, %v857
      %v880 = vpack.c.bf16 %v860, %v859
      %v881 = vpack.c.bf16 %v862, %v861
      %v882 = vpack.c.bf16 %v864, %v863
      %v883 = vpack.c.bf16 %v866, %v865
      %v884 = vpack.c.bf16 %v868, %v867
      %v901 = vunpack.c.l.b16 %v869
      %v902 = vunpack.c.h.b16 %v869
      %v903 = vunpack.c.l.b16 %v870
      %v904 = vunpack.c.h.b16 %v870
      %v905 = vunpack.c.l.b16 %v871
      %v906 = vunpack.c.h.b16 %v871
      %v907 = vunpack.c.l.b16 %v872
      %v908 = vunpack.c.h.b16 %v872
      %v909 = vunpack.c.l.b16 %v873
      %v910 = vunpack.c.h.b16 %v873
      %v911 = vunpack.c.l.b16 %v874
      %v912 = vunpack.c.h.b16 %v874
      %v913 = vunpack.c.l.b16 %v875
      %v914 = vunpack.c.h.b16 %v875
      %v915 = vunpack.c.l.b16 %v876
      %v916 = vunpack.c.h.b16 %v876
      %v917 = vunpack.c.l.b16 %v877
      %v918 = vunpack.c.h.b16 %v877
      %v919 = vunpack.c.l.b16 %v878
      %v920 = vunpack.c.h.b16 %v878
      %v921 = vunpack.c.l.b16 %v879
      %v922 = vunpack.c.h.b16 %v879
      %v923 = vunpack.c.l.b16 %v880
      %v924 = vunpack.c.h.b16 %v880
      %v925 = vunpack.c.l.b16 %v881
      %v926 = vunpack.c.h.b16 %v881
      %v927 = vunpack.c.l.b16 %v882
      %v928 = vunpack.c.h.b16 %v882
      %v929 = vunpack.c.l.b16 %v883
      %v930 = vunpack.c.h.b16 %v883
      %v931 = vunpack.c.l.b16 %v884
      %v932 = vunpack.c.h.b16 %v884
      %v933 = vpack.c.b16 %v901, %v901
      %v934 = vpack.c.b16 %v902, %v902
      %v935 = vpack.c.b16 %v903, %v903
      %v936 = vpack.c.b16 %v904, %v904
      %v937 = vpack.c.b16 %v905, %v905
      %v938 = vpack.c.b16 %v906, %v906
      %v939 = vpack.c.b16 %v907, %v907
      %v940 = vpack.c.b16 %v908, %v908
      %v941 = vpack.c.b16 %v909, %v909
      %v942 = vpack.c.b16 %v910, %v910
      %v943 = vpack.c.b16 %v911, %v911
      %v944 = vpack.c.b16 %v912, %v912
      %v945 = vpack.c.b16 %v913, %v913
      %v946 = vpack.c.b16 %v914, %v914
      %v947 = vpack.c.b16 %v915, %v915
      %v948 = vpack.c.b16 %v916, %v916
      %v949 = vpack.c.b16 %v917, %v917
      %v950 = vpack.c.b16 %v918, %v918
      %v951 = vpack.c.b16 %v919, %v919
      %v952 = vpack.c.b16 %v920, %v920
      %v953 = vpack.c.b16 %v921, %v921
      %v954 = vpack.c.b16 %v922, %v922
      %v955 = vpack.c.b16 %v923, %v923
      %v956 = vpack.c.b16 %v924, %v924
      %v957 = vpack.c.b16 %v925, %v925
      %v958 = vpack.c.b16 %v926, %v926
      %v959 = vpack.c.b16 %v927, %v927
      %v960 = vpack.c.b16 %v928, %v928
      %v961 = vpack.c.b16 %v929, %v929
      %v962 = vpack.c.b16 %v930, %v930
      %v963 = vpack.c.b16 %v931, %v931
      %v964 = vpack.c.b16 %v932, %v932
      %vm997 = vcmask 60416
      %998 = vst.msk [vmem:[%s170] sm:$0xf] %vm997, %v933
      %999 = vst.msk [vmem:[%s170 + $0x4] sm:$0xf] %vm997, %v934
      %1000 = vst.msk [vmem:[%s170 + $0x8] sm:$0xf] %vm997, %v935
      %1001 = vst.msk [vmem:[%s170 + $0xc] sm:$0xf] %vm997, %v936
      %1002 = vst.msk [vmem:[%s170 + $0x10] sm:$0xf] %vm997, %v937
      %1003 = vst.msk [vmem:[%s170 + $0x14] sm:$0xf] %vm997, %v938
      %1004 = vst.msk [vmem:[%s170 + $0x18] sm:$0xf] %vm997, %v939
      %1005 = vst.msk [vmem:[%s170 + $0x1c] sm:$0xf] %vm997, %v940
      %1006 = vst.msk [vmem:[%s170 + $0x20] sm:$0xf] %vm997, %v941
      %1007 = vst.msk [vmem:[%s170 + $0x24] sm:$0xf] %vm997, %v942
      %1008 = vst.msk [vmem:[%s170 + $0x28] sm:$0xf] %vm997, %v943
      %1009 = vst.msk [vmem:[%s170 + $0x2c] sm:$0xf] %vm997, %v944
      %1010 = vst.msk [vmem:[%s170 + $0x30] sm:$0xf] %vm997, %v945
      %1011 = vst.msk [vmem:[%s170 + $0x34] sm:$0xf] %vm997, %v946
      %1012 = vst.msk [vmem:[%s170 + $0x38] sm:$0xf] %vm997, %v947
      %1013 = vst.msk [vmem:[%s170 + $0x3c] sm:$0xf] %vm997, %v948
      %1014 = vst.msk [vmem:[%s170 + $0x40] sm:$0xf] %vm997, %v949
      %1015 = vst.msk [vmem:[%s170 + $0x44] sm:$0xf] %vm997, %v950
      %1016 = vst.msk [vmem:[%s170 + $0x48] sm:$0xf] %vm997, %v951
      %1017 = vst.msk [vmem:[%s170 + $0x4c] sm:$0xf] %vm997, %v952
      %1018 = vst.msk [vmem:[%s170 + $0x50] sm:$0xf] %vm997, %v953
      %1019 = vst.msk [vmem:[%s170 + $0x54] sm:$0xf] %vm997, %v954
      %1020 = vst.msk [vmem:[%s170 + $0x58] sm:$0xf] %vm997, %v955
      %1021 = vst.msk [vmem:[%s170 + $0x5c] sm:$0xf] %vm997, %v956
      %1022 = vst.msk [vmem:[%s170 + $0x60] sm:$0xf] %vm997, %v957
      %1023 = vst.msk [vmem:[%s170 + $0x64] sm:$0xf] %vm997, %v958
      %1024 = vst.msk [vmem:[%s170 + $0x68] sm:$0xf] %vm997, %v959
      %1025 = vst.msk [vmem:[%s170 + $0x6c] sm:$0xf] %vm997, %v960
      %1026 = vst.msk [vmem:[%s170 + $0x70] sm:$0xf] %vm997, %v961
      %1027 = vst.msk [vmem:[%s170 + $0x74] sm:$0xf] %vm997, %v962
      %1028 = vst.msk [vmem:[%s170 + $0x78] sm:$0xf] %vm997, %v963
      %1029 = vst.msk [vmem:[%s170 + $0x7c] sm:$0xf] %vm997, %v964
      %p1030 = scmp.lt.s32.totalorder %s14, 1
      %s1031 = scalar_select %p1030, %s14, 1
      %s1032 = smul.addr %s1031, 32
      %s1033 = smul.addr %s1032, 4
      %s1034 = scalar_lea.vmem %s3, %s1033
      // Predicated region
      $region33: #{image_encoder_forward.6} parent=31 // pred_check
        %p1035 = pneg %p100
      $region34: #{image_encoder_forward.6} parent=31 // pred_check_branch
        %1037 = sbr.rel (%p1035) target = $region36
      $region35: #{image_encoder_forward.6} parent=31 // pred_region
        _
      $region36: #{image_encoder_forward.6} parent=31 // pred_fallthru
        _
    $region32: #{image_encoder_forward.6} parent=5 // pred_fallthru
      _
    %p1038 = scmp.le.s32.totalorder 2, %s9
    // Predicated region
    $region37: #{image_encoder_forward.6} parent=5 // pred_check
      %p1039 = pneg %p1038
    $region38: #{image_encoder_forward.6} parent=5 // pred_check_branch
      %1041 = sbr.rel (%p1039) target = $region40
    $region39: #{image_encoder_forward.6} parent=5 // pred_region
      %s1042 = ssub.s32 %s9, 2
      // Predicated region
      $region41: #{image_encoder_forward.6} parent=39 // pred_check
        %p1043 = pneg %p106
      $region42: #{image_encoder_forward.6} parent=39 // pred_check_branch
        %1045 = sbr.rel (%p1043) target = $region44
      $region43: #{image_encoder_forward.6} parent=39 // pred_region
        %p1046 = scmp.lt.s32.totalorder %s15, 1
        %s1047 = scalar_select %p1046, %s15, 1
        %s1048 = smul.addr %s1047, 32
        %s1049 = smul.addr %s1048, 4
        %s1050 = scalar_lea.vmem %s3, %s1049
      $region44: #{image_encoder_forward.6} parent=39 // pred_fallthru
        _
    $region40: #{image_encoder_forward.6} parent=5 // pred_fallthru
      _
  $region6: #{image_encoder_forward.6} parent=0 // loop_footer
    %s13 = sadd.s32 1, %s9
  $region7: #{image_encoder_forward.6} parent=0 // loop_footer_branch
    %8 = sbr.rel target = $region3
  $region8: #{image_encoder_forward.6} parent=0 // loop_exit
    _

// kernel: image_encoder_forward.7
$region0: #{image_encoder_forward.7}
  #allocation0 [shape = 'u32[]', space=smem, size = 0x4, offset = 0x4, fixed_abs, tag = 'smem constant byte address 0x4 - core index']
  #allocation1 [shape = 'u32[144,128]{1,0:T(1,128)}', space=vmem, size = 0x12000, scoped, tag = 'internal scratch']
  %s0 = inlined_call_operand.vmem [shape: bf16[2,64,128], index: 0, kind: input, shape index: {}]
  %s1 = inlined_call_operand.vmem [shape: bf16[128,16], index: 1, kind: input, shape index: {}]
  %s2 = inlined_call_operand.vmem [shape: f32[1,16], index: 2, kind: input, shape index: {}]
  %s3 = inlined_call_operand.vmem [shape: bf16[2,64,16], index: 3, kind: output, shape index: {}]
  %s4 = sld [smem:[#allocation0]]
  $region45: #{image_encoder_forward.7} parent=0
    _
  %s6 = ssub.s32 1, %s4
  %s7 = scalar_select 0, %s6, %s4
  loop: start=0, step=1, limit=4
  $region2: #{image_encoder_forward.7} parent=0 // loop_pre_header
    _
  $region3: #{image_encoder_forward.7} parent=0 // loop_header
    %s9 = sphi 0, %s13
    %p10 = scmp.ge.s32.totalorder %s9, 4
    %s19 = sphi 0, %s21
    %s22 = sphi 0, %s19
    %s23 = sphi 0, %s22
    %s39 = sphi 0, %s23
    %s43 = sphi 0, %s43
    %s45 = sphi 0, %s43
    %s46 = sphi 0, %s45
    %s60 = sphi 0, %s46
    %s64 = sphi 0, %s64
    %s66 = sphi 0, %s64
    %s67 = sphi 0, %s66
    %s81 = sphi 0, %s67
    %s87 = sphi 0, %s89
    %s90 = sphi 0, %s87
    %s91 = sphi 0, %s90
    %s107 = sphi 0, %s91
  $region4: #{image_encoder_forward.7} parent=0 // loop_header_branch
    %12 = sbr.rel (%p10) target = $region8
  $region5: #{image_encoder_forward.7} parent=0 // loop_body
    %s14 = ssub.s32 %s9, 1
    %s15 = ssub.s32 %s9, 2
    %s16 = sadd.s32 %s9, 1
    %s17 = ssub.s32 %s9, %s16
    %p18 = scmp.eq.s32.totalorder %s17, 0
    %s20 = sadd.s32 %s19, 1
    %s21 = scalar_select %p18, %s19, %s20
    %p24 = pneg %p18
    %p25 = scmp.eq.s32.totalorder %s9, 1
    %p26 = por %p24, %p25
    %p27 = scmp.ne.s32.totalorder %s19, %s22
    %p28 = scmp.eq.s32.totalorder %s9, 0
    %p29 = por %p27, %p28
    %p30 = scmp.ne.s32.totalorder %s19, %s22
    %p31 = scmp.eq.s32.totalorder %s14, 1
    %p32 = por %p30, %p31
    %p33 = scmp.ne.s32.totalorder %s22, %s23
    %p34 = scmp.eq.s32.totalorder %s14, 0
    %p35 = por %p33, %p34
    %p36 = scmp.ne.s32.totalorder %s22, %s23
    %p37 = scmp.eq.s32.totalorder %s15, 1
    %p38 = por %p36, %p37
    %p40 = scmp.ne.s32.totalorder %s23, %s39
    %p41 = scmp.eq.s32.totalorder %s15, 0
    %p42 = por %p40, %p41
    %s44 = sadd.s32 %s43, 1
    %p47 = scmp.eq.s32.totalorder %s9, 1
    %p48 = scmp.ne.s32.totalorder %s43, %s45
    %p49 = scmp.eq.s32.totalorder %s9, 0
    %p50 = por %p48, %p49
    %p51 = scmp.ne.s32.totalorder %s43, %s45
    %p52 = scmp.eq.s32.totalorder %s14, 1
    %p53 = por %p51, %p52
    %p54 = scmp.ne.s32.totalorder %s45, %s46
    %p55 = scmp.eq.s32.totalorder %s14, 0
    %p56 = por %p54, %p55
    %p57 = scmp.ne.s32.totalorder %s45, %s46
    %p58 = scmp.eq.s32.totalorder %s15, 1
    %p59 = por %p57, %p58
    %p61 = scmp.ne.s32.totalorder %s46, %s60
    %p62 = scmp.eq.s32.totalorder %s15, 0
    %p63 = por %p61, %p62
    %s65 = sadd.s32 %s64, 1
    %p68 = scmp.eq.s32.totalorder %s9, 1
    %p69 = scmp.ne.s32.totalorder %s64, %s66
    %p70 = scmp.eq.s32.totalorder %s9, 0
    %p71 = por %p69, %p70
    %p72 = scmp.ne.s32.totalorder %s64, %s66
    %p73 = scmp.eq.s32.totalorder %s14, 1
    %p74 = por %p72, %p73
    %p75 = scmp.ne.s32.totalorder %s66, %s67
    %p76 = scmp.eq.s32.totalorder %s14, 0
    %p77 = por %p75, %p76
    %p78 = scmp.ne.s32.totalorder %s66, %s67
    %p79 = scmp.eq.s32.totalorder %s15, 1
    %p80 = por %p78, %p79
    %p82 = scmp.ne.s32.totalorder %s67, %s81
    %p83 = scmp.eq.s32.totalorder %s15, 0
    %p84 = por %p82, %p83
    %s85 = ssub.s32 %s9, %s16
    %p86 = scmp.eq.s32.totalorder %s85, 0
    %s88 = sadd.s32 %s87, 1
    %s89 = scalar_select %p86, %s87, %s88
    %p92 = pneg %p86
    %p93 = scmp.eq.s32.totalorder %s9, 1
    %p94 = por %p92, %p93
    %p95 = scmp.ne.s32.totalorder %s87, %s90
    %p96 = scmp.eq.s32.totalorder %s9, 0
    %p97 = por %p95, %p96
    %p98 = scmp.ne.s32.totalorder %s87, %s90
    %p99 = scmp.eq.s32.totalorder %s14, 1
    %p100 = por %p98, %p99
    %p101 = scmp.ne.s32.totalorder %s90, %s91
    %p102 = scmp.eq.s32.totalorder %s14, 0
    %p103 = por %p101, %p102
    %p104 = scmp.ne.s32.totalorder %s90, %s91
    %p105 = scmp.eq.s32.totalorder %s15, 1
    %p106 = por %p104, %p105
    %p108 = scmp.ne.s32.totalorder %s91, %s107
    %p109 = scmp.eq.s32.totalorder %s15, 0
    %p110 = por %p108, %p109
    %p111 = scmp.le.s32.totalorder 1, %s9
    %p112 = scmp.lt.s32.totalorder %s9, 3
    %p113 = pnand %p111, %p112
    %p114 = pneg %p113
    // Predicated region
    $region9: #{image_encoder_forward.7} parent=5 // pred_check
      _
    $region10: #{image_encoder_forward.7} parent=5 // pred_check_branch
      %116 = sbr.rel (%p113) target = $region12
    $region11: #{image_encoder_forward.7} parent=5 // pred_region
      %s117 = ssub.s32 %s9, 1
      // Predicated region
      $region13: #{image_encoder_forward.7} parent=11 // pred_check
        %p118 = pneg %p56
      $region14: #{image_encoder_forward.7} parent=11 // pred_check_branch
        %120 = sbr.rel (%p118) target = $region16
      $region15: #{image_encoder_forward.7} parent=11 // pred_region
        _
      $region16: #{image_encoder_forward.7} parent=11 // pred_fallthru
        _
      // Predicated region
      $region17: #{image_encoder_forward.7} parent=11 // pred_check
        %p121 = pneg %p77
      $region18: #{image_encoder_forward.7} parent=11 // pred_check_branch
        %123 = sbr.rel (%p121) target = $region20
      $region19: #{image_encoder_forward.7} parent=11 // pred_region
        _
      $region20: #{image_encoder_forward.7} parent=11 // pred_fallthru
        _
    $region12: #{image_encoder_forward.7} parent=5 // pred_fallthru
      _
    %p124 = scmp.lt.s32.totalorder %s9, 2
    // Predicated region
    $region21: #{image_encoder_forward.7} parent=5 // pred_check
      %p125 = pneg %p124
    $region22: #{image_encoder_forward.7} parent=5 // pred_check_branch
      %127 = sbr.rel (%p125) target = $region24
    $region23: #{image_encoder_forward.7} parent=5 // pred_region
      // Predicated region
      $region25: #{image_encoder_forward.7} parent=23 // pred_check
        %p128 = pneg %p29
      $region26: #{image_encoder_forward.7} parent=23 // pred_check_branch
        %130 = sbr.rel (%p128) target = $region28
      $region27: #{image_encoder_forward.7} parent=23 // pred_region
        %p131 = scmp.lt.s32.totalorder %s9, 1
        %s132 = scalar_select %p131, %s9, 1
        %s133 = smul.addr %s132, 8
        %s134 = smul.addr %s133, 4
        %s135 = scalar_lea.vmem %s0, %s134
      $region28: #{image_encoder_forward.7} parent=23 // pred_fallthru
        _
    $region24: #{image_encoder_forward.7} parent=5 // pred_fallthru
      _
    %p136 = scmp.le.s32.totalorder 1, %s9
    %p137 = scmp.lt.s32.totalorder %s9, 3
    %p138 = pnand %p136, %p137
    %p139 = pneg %p138
    // Predicated region
    $region29: #{image_encoder_forward.7} parent=5 // pred_check
      _
    $region30: #{image_encoder_forward.7} parent=5 // pred_check_branch
      %141 = sbr.rel (%p138) target = $region32
    $region31: #{image_encoder_forward.7} parent=5 // pred_region
      %s142 = ssub.s32 %s9, 1
      %p143 = scmp.lt.s32.totalorder %s14, 1
      %s144 = scalar_select %p143, %s14, 1
      %s145 = smul.addr %s144, 8
      %s146 = smul.addr %s145, 4
      %s147 = scalar_lea.vmem %s0, %s146
      %p148 = pneg %p35
      %p149 = pneg %p32
      %p150 = pneg %p56
      %p151 = pneg %p53
      %p152 = pneg %p77
      %p153 = pneg %p74
      %p154 = pneg %p103
      %p155 = pneg %p100
      %p156 = scmp.lt.s32.totalorder %s14, 1
      %s157 = scalar_select %p156, %s14, 1
      %s158 = smul.addr %s157, 8
      %s159 = smul.addr %s158, 4
      %s160 = scalar_lea.vmem %s3, %s159
      %p161 = scmp.lt.s32.totalorder %s14, 1
      %s162 = scalar_select %p161, %s14, 1
      %s163 = smul.addr %s162, 8
      %s164 = smul.addr %s163, 4
      %s165 = scalar_lea.vmem %s0, %s164
      %p166 = scmp.lt.s32.totalorder %s14, 1
      %s167 = scalar_select %p166, %s14, 1
      %s168 = smul.addr %s167, 8
      %s169 = smul.addr %s168, 4
      %s170 = scalar_lea.vmem %s3, %s169
      %v172 = vld [vmem:[%s165] sm:$0xf]
      %v173 = vld [vmem:[%s165 + $0x4] sm:$0xf]
      %v174 = vld [vmem:[%s165 + $0x8] sm:$0xf]
      %v175 = vld [vmem:[%s165 + $0xc] sm:$0xf]
      %v176 = vld [vmem:[%s165 + $0x10] sm:$0xf]
      %v177 = vld [vmem:[%s165 + $0x14] sm:$0xf]
      %v178 = vld [vmem:[%s165 + $0x18] sm:$0xf]
      %v179 = vld [vmem:[%s165 + $0x1c] sm:$0xf]
      %v180 = vld [vmem:[%s1] sm:$0xf]
      %v181 = vld [vmem:[%s1 + $0x4] sm:$0xf]
      %v182 = vld [vmem:[%s1 + $0x8] sm:$0xf]
      %v183 = vld [vmem:[%s1 + $0xc] sm:$0xf]
      %v184 = vld [vmem:[%s1 + $0x10] sm:$0xf]
      %v185 = vld [vmem:[%s1 + $0x14] sm:$0xf]
      %v186 = vld [vmem:[%s1 + $0x18] sm:$0xf]
      %v187 = vld [vmem:[%s1 + $0x1c] sm:$0xf]
      %v188 = vld [vmem:[%s1 + $0x20] sm:$0xf]
      %v189 = vld [vmem:[%s1 + $0x24] sm:$0xf]
      %v190 = vld [vmem:[%s1 + $0x28] sm:$0xf]
      %v191 = vld [vmem:[%s1 + $0x2c] sm:$0xf]
      %v192 = vld [vmem:[%s1 + $0x30] sm:$0xf]
      %v193 = vld [vmem:[%s1 + $0x34] sm:$0xf]
      %v194 = vld [vmem:[%s1 + $0x38] sm:$0xf]
      %v195 = vld [vmem:[%s1 + $0x3c] sm:$0xf]
      %v196 = vld [vmem:[%s2] sm:$0x1]
      %v198 = vlaneseq
      %v199 = vshrl.u32 %v198, 7
      %v200 = vsub.s32 0, %v199
      %v201 = vrot.slane %v196, %v200
      %v211 = vunpack.c.l.b16 %v172
      %v212 = vunpack.c.l.b16 %v173
      %v213 = vunpack.c.l.b16 %v174
      %v214 = vunpack.c.l.b16 %v175
      %v215 = vunpack.c.l.b16 %v176
      %v216 = vunpack.c.l.b16 %v177
      %v217 = vunpack.c.l.b16 %v178
      %v218 = vunpack.c.l.b16 %v179
      %v219 = vpack.c.b16 %v212, %v211
      %v220 = vpack.c.b16 %v214, %v213
      %v221 = vpack.c.b16 %v216, %v215
      %v222 = vpack.c.b16 %v218, %v217
      %v243 = vunpack.c.l.b16 %v180
      %v244 = vunpack.c.l.b16 %v181
      %v245 = vunpack.c.l.b16 %v182
      %v246 = vunpack.c.l.b16 %v183
      %v247 = vunpack.c.l.b16 %v184
      %v248 = vunpack.c.l.b16 %v185
      %v249 = vunpack.c.l.b16 %v186
      %v250 = vunpack.c.l.b16 %v187
      %v251 = vunpack.c.l.b16 %v188
      %v252 = vunpack.c.l.b16 %v189
      %v253 = vunpack.c.l.b16 %v190
      %v254 = vunpack.c.l.b16 %v191
      %v255 = vunpack.c.l.b16 %v192
      %v256 = vunpack.c.l.b16 %v193
      %v257 = vunpack.c.l.b16 %v194
      %v258 = vunpack.c.l.b16 %v195
      %v259 = vpack.c.b16 %v244, %v243
      %v260 = vpack.c.b16 %v246, %v245
      %v261 = vpack.c.b16 %v248, %v247
      %v262 = vpack.c.b16 %v250, %v249
      %v263 = vpack.c.b16 %v252, %v251
      %v264 = vpack.c.b16 %v254, %v253
      %v265 = vpack.c.b16 %v256, %v255
      %v266 = vpack.c.b16 %v258, %v257
      %275 = vmatprep.subr.bf16.mxu0 0
      %276 = vmatpush1.bf16.msra.mxu0 %v259
      %277 = vmatprep.subr.bf16.mxu0 0
      %278 = vmatpush1.bf16.msra.mxu0 %v260
      %279 = vmatprep.subr.bf16.mxu0 0
      %280 = vmatpush1.bf16.msra.mxu0 %v261
      %281 = vmatprep.subr.bf16.mxu0 0
      %282 = vmatpush1.bf16.msra.mxu0 %v262
      %283 = vmatprep.subr.bf16.mxu0 0
      %284 = vmatpush1.bf16.msra.mxu0 %v263
      %285 = vmatprep.subr.bf16.mxu0 0
      %286 = vmatpush1.bf16.msra.mxu0 %v264
      %287 = vmatprep.subr.bf16.mxu0 0
      %288 = vmatpush1.bf16.msra.mxu0 %v265
      %289 = vmatprep.subr.bf16.mxu0 0
      %290 = vmatpush1.bf16.msra.mxu0 %v266
      %291 = vmatprep.subr.bf16.mxu0 0
      %292 = vmatpush1.bf16.msra.mxu0 0
      %293 = vmatprep.subr.bf16.mxu0 0
      %294 = vmatpush1.bf16.msra.mxu0 0
      %295 = vmatprep.subr.bf16.mxu0 0
      %296 = vmatpush1.bf16.msra.mxu0 0
      %297 = vmatprep.subr.bf16.mxu0 0
      %298 = vmatpush1.bf16.msra.mxu0 0
      %299 = vmatprep.subr.bf16.mxu0 0
      %300 = vmatpush1.bf16.msra.mxu0 0
      %301 = vmatprep.subr.bf16.mxu0 0
      %302 = vmatpush1.bf16.msra.mxu0 0
      %303 = vmatprep.subr.bf16.mxu0 0
      %304 = vmatpush1.bf16.msra.mxu0 0
      %305 = vmatprep.subr.bf16.mxu0 0
      %306 = vmatpush1.bf16.msra.mxu0 0
      %307 = vmatprep.mubr.bf16.mxu0 0
      %308 = vmatmul.mubr.bf16.gmra.mrb[0].mxu0 %v219
      %v309 = vpop.f32.mrb[0].mxu0
      %v310 = vadd.f32 %v201, %v309
      %v311 = vpop.f32.mrb[0].mxu0
      %v312 = vpop.f32.mrb[0].mxu0
      %v313 = vadd.f32 %v201, %v312
      %v314 = vpop.f32.mrb[0].mxu0
      %315 = vmatprep.mubr.bf16.mxu0 0
      %316 = vmatmul.mubr.bf16.gmra.mrb[0].mxu0 %v220
      %v317 = vpop.f32.mrb[0].mxu0
      %v318 = vadd.f32 %v201, %v317
      %v319 = vpop.f32.mrb[0].mxu0
      %v320 = vpop.f32.mrb[0].mxu0
      %v321 = vadd.f32 %v201, %v320
      %v322 = vpop.f32.mrb[0].mxu0
      %323 = vmatprep.mubr.bf16.mxu0 0
      %324 = vmatmul.mubr.bf16.gmra.mrb[0].mxu0 %v221
      %v325 = vpop.f32.mrb[0].mxu0
      %v326 = vadd.f32 %v201, %v325
      %v327 = vpop.f32.mrb[0].mxu0
      %v328 = vpop.f32.mrb[0].mxu0
      %v329 = vadd.f32 %v201, %v328
      %v330 = vpop.f32.mrb[0].mxu0
      %331 = vmatprep.mubr.bf16.mxu0 0
      %332 = vmatmul.mubr.bf16.gmra.mrb[0].mxu0 %v222
      %v333 = vpop.f32.mrb[0].mxu0
      %v334 = vadd.f32 %v201, %v333
      %v335 = vpop.f32.mrb[0].mxu0
      %v336 = vpop.f32.mrb[0].mxu0
      %v337 = vadd.f32 %v201, %v336
      %v338 = vpop.f32.mrb[0].mxu0
      %339 = vdwg.mxu0
      %vm340 = vcmask 130048
      %v341 = vsel %vm340, %v310, 0.0
      %v342 = vsel %vm340, %v313, 0.0
      %v343 = vadd.f32 %v341, %v342
      %v344 = vsel %vm340, %v318, 0.0
      %v345 = vadd.f32 %v343, %v344
      %v346 = vsel %vm340, %v321, 0.0
      %v347 = vadd.f32 %v345, %v346
      %v348 = vsel %vm340, %v326, 0.0
      %v349 = vadd.f32 %v347, %v348
      %v350 = vsel %vm340, %v329, 0.0
      %v351 = vadd.f32 %v349, %v350
      %v352 = vsel %vm340, %v334, 0.0
      %v353 = vadd.f32 %v351, %v352
      %v354 = vsel %vm340, %v337, 0.0
      %v355 = vadd.f32 %v353, %v354
      %v356 = vrot.slane %v355, 4
      %v357 = vadd.f32 %v355, %v356
      %v358 = vrot.slane %v357, 2
      %v359 = vadd.f32 %v357, %v358
      %v360 = vrot.slane %v359, 1
      %v361 = vadd.f32 %v359, %v360
      %v362 = vrcp.pop 64.0
      %v363 = vmul.f32 %v361, %v362
      %v364 = vsub.f32 %v310, %v363
      %v365 = vsub.f32 %v313, %v363
      %v366 = vsub.f32 %v318, %v363
      %v367 = vsub.f32 %v321, %v363
      %v368 = vsub.f32 %v326, %v363
      %v369 = vsub.f32 %v329, %v363
      %v370 = vsub.f32 %v334, %v363
      %v371 = vsub.f32 %v337, %v363
      %v372 = vmul.f32 %v364, %v364
      %v373 = vmul.f32 %v365, %v365
      %v374 = vmul.f32 %v366, %v366
      %v375 = vmul.f32 %v367, %v367
      %v376 = vmul.f32 %v368, %v368
      %v377 = vmul.f32 %v369, %v369
      %v378 = vmul.f32 %v370, %v370
      %v379 = vmul.f32 %v371, %v371
      %v380 = vsel %vm340, %v372, 0.0
      %v381 = vsel %vm340, %v373, 0.0
      %v382 = vadd.f32 %v380, %v381
      %v383 = vsel %vm340, %v374, 0.0
      %v384 = vadd.f32 %v382, %v383
      %v385 = vsel %vm340, %v375, 0.0
      %v386 = vadd.f32 %v384, %v385
      %v387 = vsel %vm340, %v376, 0.0
      %v388 = vadd.f32 %v386, %v387
      %v389 = vsel %vm340, %v377, 0.0
      %v390 = vadd.f32 %v388, %v389
      %v391 = vsel %vm340, %v378, 0.0
      %v392 = vadd.f32 %v390, %v391
      %v393 = vsel %vm340, %v379, 0.0
      %v394 = vadd.f32 %v392, %v393
      %v395 = vrot.slane %v394, 4
      %v396 = vadd.f32 %v394, %v395
      %v397 = vrot.slane %v396, 2
      %v398 = vadd.f32 %v396, %v397
      %v399 = vrot.slane %v398, 1
      %v400 = vadd.f32 %v398, %v399
      %v401 = vmul.f32 %v400, %v362
      %v402 = vadd.f32 %v401, 1e-05
      %v403 = vrsqrt.pop %v402
      %v404 = vmul.f32 %v364, %v403
      %v405 = vmul.f32 %v365, %v403
      %v406 = vmul.f32 %v366, %v403
      %v407 = vmul.f32 %v367, %v403
      %v408 = vmul.f32 %v368, %v403
      %v409 = vmul.f32 %v369, %v403
      %v410 = vmul.f32 %v370, %v403
      %v411 = vmul.f32 %v371, %v403
      %vm412 = vcmp.ge.f32.partialorder %v404, 0.0
      %vm413 = vcmp.ge.f32.partialorder %v405, 0.0
      %vm414 = vcmp.ge.f32.partialorder %v406, 0.0
      %vm415 = vcmp.ge.f32.partialorder %v407, 0.0
      %vm416 = vcmp.ge.f32.partialorder %v408, 0.0
      %vm417 = vcmp.ge.f32.partialorder %v409, 0.0
      %vm418 = vcmp.ge.f32.partialorder %v410, 0.0
      %vm419 = vcmp.ge.f32.partialorder %v411, 0.0
      %v420 = vmul.f32 %v404, 0.2
      %v421 = vmul.f32 %v405, 0.2
      %v422 = vmul.f32 %v406, 0.2
      %v423 = vmul.f32 %v407, 0.2
      %v424 = vmul.f32 %v408, 0.2
      %v425 = vmul.f32 %v409, 0.2
      %v426 = vmul.f32 %v410, 0.2
      %v427 = vmul.f32 %v411, 0.2
      %v428 = vsel %vm412, %v404, %v420
      %v429 = vsel %vm413, %v405, %v421
      %v430 = vsel %vm414, %v406, %v422
      %v431 = vsel %vm415, %v407, %v423
      %v432 = vsel %vm416, %v408, %v424
      %v433 = vsel %vm417, %v409, %v425
      %v434 = vsel %vm418, %v410, %v426
      %v435 = vsel %vm419, %v411, %v427
      %v436 = vpack.c.bf16 %v429, %v428
      %v437 = vpack.c.bf16 %v431, %v430
      %v438 = vpack.c.bf16 %v433, %v432
      %v439 = vpack.c.bf16 %v435, %v434
      %v444 = vunpack.c.l.b16 %v436
      %v445 = vunpack.c.h.b16 %v436
      %v446 = vunpack.c.l.b16 %v437
      %v447 = vunpack.c.h.b16 %v437
      %v448 = vunpack.c.l.b16 %v438
      %v449 = vunpack.c.h.b16 %v438
      %v450 = vunpack.c.l.b16 %v439
      %v451 = vunpack.c.h.b16 %v439
      %v452 = vpack.c.b16 %v444, %v444
      %v453 = vpack.c.b16 %v445, %v445
      %v454 = vpack.c.b16 %v446, %v446
      %v455 = vpack.c.b16 %v447, %v447
      %v456 = vpack.c.b16 %v448, %v448
      %v457 = vpack.c.b16 %v449, %v449
      %v458 = vpack.c.b16 %v450, %v450
      %v459 = vpack.c.b16 %v451, %v451
      %vm468 = vcmask 125952
      %469 = vst.msk [vmem:[%s170] sm:$0xf] %vm468, %v452
      %470 = vst.msk [vmem:[%s170 + $0x4] sm:$0xf] %vm468, %v453
      %471 = vst.msk [vmem:[%s170 + $0x8] sm:$0xf] %vm468, %v454
      %472 = vst.msk [vmem:[%s170 + $0xc] sm:$0xf] %vm468, %v455
      %473 = vst.msk [vmem:[%s170 + $0x10] sm:$0xf] %vm468, %v456
      %474 = vst.msk [vmem:[%s170 + $0x14] sm:$0xf] %vm468, %v457
      %475 = vst.msk [vmem:[%s170 + $0x18] sm:$0xf] %vm468, %v458
      %476 = vst.msk [vmem:[%s170 + $0x1c] sm:$0xf] %vm468, %v459
      %p477 = scmp.lt.s32.totalorder %s14, 1
      %s478 = scalar_select %p477, %s14, 1
      %s479 = smul.addr %s478, 8
      %s480 = smul.addr %s479, 4
      %s481 = scalar_lea.vmem %s3, %s480
      // Predicated region
      $region33: #{image_encoder_forward.7} parent=31 // pred_check
        %p482 = pneg %p100
      $region34: #{image_encoder_forward.7} parent=31 // pred_check_branch
        %484 = sbr.rel (%p482) target = $region36
      $region35: #{image_encoder_forward.7} parent=31 // pred_region
        _
      $region36: #{image_encoder_forward.7} parent=31 // pred_fallthru
        _
    $region32: #{image_encoder_forward.7} parent=5 // pred_fallthru
      _
    %p485 = scmp.le.s32.totalorder 2, %s9
    // Predicated region
    $region37: #{image_encoder_forward.7} parent=5 // pred_check
      %p486 = pneg %p485
    $region38: #{image_encoder_forward.7} parent=5 // pred_check_branch
      %488 = sbr.rel (%p486) target = $region40
    $region39: #{image_encoder_forward.7} parent=5 // pred_region
      %s489 = ssub.s32 %s9, 2
      // Predicated region
      $region41: #{image_encoder_forward.7} parent=39 // pred_check
        %p490 = pneg %p106
      $region42: #{image_encoder_forward.7} parent=39 // pred_check_branch
        %492 = sbr.rel (%p490) target = $region44
      $region43: #{image_encoder_forward.7} parent=39 // pred_region
        %p493 = scmp.lt.s32.totalorder %s15, 1
        %s494 = scalar_select %p493, %s15, 1
        %s495 = smul.addr %s494, 8
        %s496 = smul.addr %s495, 4
        %s497 = scalar_lea.vmem %s3, %s496
      $region44: #{image_encoder_forward.7} parent=39 // pred_fallthru
        _
    $region40: #{image_encoder_forward.7} parent=5 // pred_fallthru
      _
  $region6: #{image_encoder_forward.7} parent=0 // loop_footer
    %s13 = sadd.s32 1, %s9
  $region7: #{image_encoder_forward.7} parent=0 // loop_footer_branch
    %8 = sbr.rel target = $region3
  $region8: #{image_encoder_forward.7} parent=0 // loop_exit
    _

// kernel: image_encoder_forward.8
$region0: #{image_encoder_forward.8}
  #allocation0 [shape = 'u32[]', space=smem, size = 0x4, offset = 0x4, fixed_abs, tag = 'smem constant byte address 0x4 - core index']
  #allocation1 [shape = 'u32[144,128]{1,0:T(1,128)}', space=vmem, size = 0x12000, scoped, tag = 'internal scratch']
  %s0 = inlined_call_operand.vmem [shape: bf16[2,16,256], index: 0, kind: input, shape index: {}]
  %s1 = inlined_call_operand.vmem [shape: bf16[256,32], index: 1, kind: input, shape index: {}]
  %s2 = inlined_call_operand.vmem [shape: f32[1,32], index: 2, kind: input, shape index: {}]
  %s3 = inlined_call_operand.vmem [shape: bf16[2,16,32], index: 3, kind: output, shape index: {}]
  %s4 = sld [smem:[#allocation0]]
  $region45: #{image_encoder_forward.8} parent=0
    _
  %s6 = ssub.s32 1, %s4
  %s7 = scalar_select 0, %s6, %s4
  loop: start=0, step=1, limit=4
  $region2: #{image_encoder_forward.8} parent=0 // loop_pre_header
    _
  $region3: #{image_encoder_forward.8} parent=0 // loop_header
    %s9 = sphi 0, %s13
    %p10 = scmp.ge.s32.totalorder %s9, 4
    %s19 = sphi 0, %s21
    %s22 = sphi 0, %s19
    %s23 = sphi 0, %s22
    %s39 = sphi 0, %s23
    %s43 = sphi 0, %s43
    %s45 = sphi 0, %s43
    %s46 = sphi 0, %s45
    %s60 = sphi 0, %s46
    %s64 = sphi 0, %s64
    %s66 = sphi 0, %s64
    %s67 = sphi 0, %s66
    %s81 = sphi 0, %s67
    %s87 = sphi 0, %s89
    %s90 = sphi 0, %s87
    %s91 = sphi 0, %s90
    %s107 = sphi 0, %s91
  $region4: #{image_encoder_forward.8} parent=0 // loop_header_branch
    %12 = sbr.rel (%p10) target = $region8
  $region5: #{image_encoder_forward.8} parent=0 // loop_body
    %s14 = ssub.s32 %s9, 1
    %s15 = ssub.s32 %s9, 2
    %s16 = sadd.s32 %s9, 1
    %s17 = ssub.s32 %s9, %s16
    %p18 = scmp.eq.s32.totalorder %s17, 0
    %s20 = sadd.s32 %s19, 1
    %s21 = scalar_select %p18, %s19, %s20
    %p24 = pneg %p18
    %p25 = scmp.eq.s32.totalorder %s9, 1
    %p26 = por %p24, %p25
    %p27 = scmp.ne.s32.totalorder %s19, %s22
    %p28 = scmp.eq.s32.totalorder %s9, 0
    %p29 = por %p27, %p28
    %p30 = scmp.ne.s32.totalorder %s19, %s22
    %p31 = scmp.eq.s32.totalorder %s14, 1
    %p32 = por %p30, %p31
    %p33 = scmp.ne.s32.totalorder %s22, %s23
    %p34 = scmp.eq.s32.totalorder %s14, 0
    %p35 = por %p33, %p34
    %p36 = scmp.ne.s32.totalorder %s22, %s23
    %p37 = scmp.eq.s32.totalorder %s15, 1
    %p38 = por %p36, %p37
    %p40 = scmp.ne.s32.totalorder %s23, %s39
    %p41 = scmp.eq.s32.totalorder %s15, 0
    %p42 = por %p40, %p41
    %s44 = sadd.s32 %s43, 1
    %p47 = scmp.eq.s32.totalorder %s9, 1
    %p48 = scmp.ne.s32.totalorder %s43, %s45
    %p49 = scmp.eq.s32.totalorder %s9, 0
    %p50 = por %p48, %p49
    %p51 = scmp.ne.s32.totalorder %s43, %s45
    %p52 = scmp.eq.s32.totalorder %s14, 1
    %p53 = por %p51, %p52
    %p54 = scmp.ne.s32.totalorder %s45, %s46
    %p55 = scmp.eq.s32.totalorder %s14, 0
    %p56 = por %p54, %p55
    %p57 = scmp.ne.s32.totalorder %s45, %s46
    %p58 = scmp.eq.s32.totalorder %s15, 1
    %p59 = por %p57, %p58
    %p61 = scmp.ne.s32.totalorder %s46, %s60
    %p62 = scmp.eq.s32.totalorder %s15, 0
    %p63 = por %p61, %p62
    %s65 = sadd.s32 %s64, 1
    %p68 = scmp.eq.s32.totalorder %s9, 1
    %p69 = scmp.ne.s32.totalorder %s64, %s66
    %p70 = scmp.eq.s32.totalorder %s9, 0
    %p71 = por %p69, %p70
    %p72 = scmp.ne.s32.totalorder %s64, %s66
    %p73 = scmp.eq.s32.totalorder %s14, 1
    %p74 = por %p72, %p73
    %p75 = scmp.ne.s32.totalorder %s66, %s67
    %p76 = scmp.eq.s32.totalorder %s14, 0
    %p77 = por %p75, %p76
    %p78 = scmp.ne.s32.totalorder %s66, %s67
    %p79 = scmp.eq.s32.totalorder %s15, 1
    %p80 = por %p78, %p79
    %p82 = scmp.ne.s32.totalorder %s67, %s81
    %p83 = scmp.eq.s32.totalorder %s15, 0
    %p84 = por %p82, %p83
    %s85 = ssub.s32 %s9, %s16
    %p86 = scmp.eq.s32.totalorder %s85, 0
    %s88 = sadd.s32 %s87, 1
    %s89 = scalar_select %p86, %s87, %s88
    %p92 = pneg %p86
    %p93 = scmp.eq.s32.totalorder %s9, 1
    %p94 = por %p92, %p93
    %p95 = scmp.ne.s32.totalorder %s87, %s90
    %p96 = scmp.eq.s32.totalorder %s9, 0
    %p97 = por %p95, %p96
    %p98 = scmp.ne.s32.totalorder %s87, %s90
    %p99 = scmp.eq.s32.totalorder %s14, 1
    %p100 = por %p98, %p99
    %p101 = scmp.ne.s32.totalorder %s90, %s91
    %p102 = scmp.eq.s32.totalorder %s14, 0
    %p103 = por %p101, %p102
    %p104 = scmp.ne.s32.totalorder %s90, %s91
    %p105 = scmp.eq.s32.totalorder %s15, 1
    %p106 = por %p104, %p105
    %p108 = scmp.ne.s32.totalorder %s91, %s107
    %p109 = scmp.eq.s32.totalorder %s15, 0
    %p110 = por %p108, %p109
    %p111 = scmp.le.s32.totalorder 1, %s9
    %p112 = scmp.lt.s32.totalorder %s9, 3
    %p113 = pnand %p111, %p112
    %p114 = pneg %p113
    // Predicated region
    $region9: #{image_encoder_forward.8} parent=5 // pred_check
      _
    $region10: #{image_encoder_forward.8} parent=5 // pred_check_branch
      %116 = sbr.rel (%p113) target = $region12
    $region11: #{image_encoder_forward.8} parent=5 // pred_region
      %s117 = ssub.s32 %s9, 1
      // Predicated region
      $region13: #{image_encoder_forward.8} parent=11 // pred_check
        %p118 = pneg %p56
      $region14: #{image_encoder_forward.8} parent=11 // pred_check_branch
        %120 = sbr.rel (%p118) target = $region16
      $region15: #{image_encoder_forward.8} parent=11 // pred_region
        _
      $region16: #{image_encoder_forward.8} parent=11 // pred_fallthru
        _
      // Predicated region
      $region17: #{image_encoder_forward.8} parent=11 // pred_check
        %p121 = pneg %p77
      $region18: #{image_encoder_forward.8} parent=11 // pred_check_branch
        %123 = sbr.rel (%p121) target = $region20
      $region19: #{image_encoder_forward.8} parent=11 // pred_region
        _
      $region20: #{image_encoder_forward.8} parent=11 // pred_fallthru
        _
    $region12: #{image_encoder_forward.8} parent=5 // pred_fallthru
      _
    %p124 = scmp.lt.s32.totalorder %s9, 2
    // Predicated region
    $region21: #{image_encoder_forward.8} parent=5 // pred_check
      %p125 = pneg %p124
    $region22: #{image_encoder_forward.8} parent=5 // pred_check_branch
      %127 = sbr.rel (%p125) target = $region24
    $region23: #{image_encoder_forward.8} parent=5 // pred_region
      // Predicated region
      $region25: #{image_encoder_forward.8} parent=23 // pred_check
        %p128 = pneg %p29
      $region26: #{image_encoder_forward.8} parent=23 // pred_check_branch
        %130 = sbr.rel (%p128) target = $region28
      $region27: #{image_encoder_forward.8} parent=23 // pred_region
        %p131 = scmp.lt.s32.totalorder %s9, 1
        %s132 = scalar_select %p131, %s9, 1
        %s133 = smul.addr %s132, 4
        %s134 = smul.addr %s133, 4
        %s135 = scalar_lea.vmem %s0, %s134
      $region28: #{image_encoder_forward.8} parent=23 // pred_fallthru
        _
    $region24: #{image_encoder_forward.8} parent=5 // pred_fallthru
      _
    %p136 = scmp.le.s32.totalorder 1, %s9
    %p137 = scmp.lt.s32.totalorder %s9, 3
    %p138 = pnand %p136, %p137
    %p139 = pneg %p138
    // Predicated region
    $region29: #{image_encoder_forward.8} parent=5 // pred_check
      _
    $region30: #{image_encoder_forward.8} parent=5 // pred_check_branch
      %141 = sbr.rel (%p138) target = $region32
    $region31: #{image_encoder_forward.8} parent=5 // pred_region
      %s142 = ssub.s32 %s9, 1
      %p143 = scmp.lt.s32.totalorder %s14, 1
      %s144 = scalar_select %p143, %s14, 1
      %s145 = smul.addr %s144, 4
      %s146 = smul.addr %s145, 4
      %s147 = scalar_lea.vmem %s0, %s146
      %p148 = pneg %p35
      %p149 = pneg %p32
      %p150 = pneg %p56
      %p151 = pneg %p53
      %p152 = pneg %p77
      %p153 = pneg %p74
      %p154 = pneg %p103
      %p155 = pneg %p100
      %p156 = scmp.lt.s32.totalorder %s14, 1
      %s157 = scalar_select %p156, %s14, 1
      %s158 = smul.addr %s157, 2
      %s159 = smul.addr %s158, 4
      %s160 = scalar_lea.vmem %s3, %s159
      %p161 = scmp.lt.s32.totalorder %s14, 1
      %s162 = scalar_select %p161, %s14, 1
      %s163 = smul.addr %s162, 4
      %s164 = smul.addr %s163, 4
      %s165 = scalar_lea.vmem %s0, %s164
      %p166 = scmp.lt.s32.totalorder %s14, 1
      %s167 = scalar_select %p166, %s14, 1
      %s168 = smul.addr %s167, 2
      %s169 = smul.addr %s168, 4
      %s170 = scalar_lea.vmem %s3, %s169
      %v172 = vld [vmem:[%s165] sm:$0xff]
      %v173 = vld [vmem:[%s165 + $0x8] sm:$0xff]
      %v174 = vld [vmem:[%s1] sm:$0xf]
      %v175 = vld [vmem:[%s1 + $0x4] sm:$0xf]
      %v176 = vld [vmem:[%s1 + $0x8] sm:$0xf]
      %v177 = vld [vmem:[%s1 + $0xc] sm:$0xf]
      %v178 = vld [vmem:[%s1 + $0x10] sm:$0xf]
      %v179 = vld [vmem:[%s1 + $0x14] sm:$0xf]
      %v180 = vld [vmem:[%s1 + $0x18] sm:$0xf]
      %v181 = vld [vmem:[%s1 + $0x1c] sm:$0xf]
      %v182 = vld [vmem:[%s1 + $0x20] sm:$0xf]
      %v183 = vld [vmem:[%s1 + $0x24] sm:$0xf]
      %v184 = vld [vmem:[%s1 + $0x28] sm:$0xf]
      %v185 = vld [vmem:[%s1 + $0x2c] sm:$0xf]
      %v186 = vld [vmem:[%s1 + $0x30] sm:$0xf]
      %v187 = vld [vmem:[%s1 + $0x34] sm:$0xf]
      %v188 = vld [vmem:[%s1 + $0x38] sm:$0xf]
      %v189 = vld [vmem:[%s1 + $0x3c] sm:$0xf]
      %v190 = vld [vmem:[%s1 + $0x40] sm:$0xf]
      %v191 = vld [vmem:[%s1 + $0x44] sm:$0xf]
      %v192 = vld [vmem:[%s1 + $0x48] sm:$0xf]
      %v193 = vld [vmem:[%s1 + $0x4c] sm:$0xf]
      %v194 = vld [vmem:[%s1 + $0x50] sm:$0xf]
      %v195 = vld [vmem:[%s1 + $0x54] sm:$0xf]
      %v196 = vld [vmem:[%s1 + $0x58] sm:$0xf]
      %v197 = vld [vmem:[%s1 + $0x5c] sm:$0xf]
      %v198 = vld [vmem:[%s1 + $0x60] sm:$0xf]
      %v199 = vld [vmem:[%s1 + $0x64] sm:$0xf]
      %v200 = vld [vmem:[%s1 + $0x68] sm:$0xf]
      %v201 = vld [vmem:[%s1 + $0x6c] sm:$0xf]
      %v202 = vld [vmem:[%s1 + $0x70] sm:$0xf]
      %v203 = vld [vmem:[%s1 + $0x74] sm:$0xf]
      %v204 = vld [vmem:[%s1 + $0x78] sm:$0xf]
      %v205 = vld [vmem:[%s1 + $0x7c] sm:$0xf]
      %v206 = vld [vmem:[%s2] sm:$0x1]
      %v208 = vlaneseq
      %v209 = vshrl.u32 %v208, 7
      %v210 = vsub.s32 0, %v209
      %v211 = vrot.slane %v206, %v210
      %v215 = vunpack.c.l.b16 %v172
      %v216 = vunpack.c.h.b16 %v172
      %v217 = vunpack.c.l.b16 %v173
      %v218 = vunpack.c.h.b16 %v173
      %v219 = vpack.c.b16 %v217, %v215
      %v220 = vpack.c.b16 %v218, %v216
      %v255 = vunpack.c.l.b16 %v174
      %v256 = vunpack.c.l.b16 %v175
      %v257 = vunpack.c.l.b16 %v176
      %v258 = vunpack.c.l.b16 %v177
      %v259 = vunpack.c.l.b16 %v178
      %v260 = vunpack.c.l.b16 %v179
      %v261 = vunpack.c.l.b16 %v180
      %v262 = vunpack.c.l.b16 %v181
      %v263 = vunpack.c.l.b16 %v182
      %v264 = vunpack.c.l.b16 %v183
      %v265 = vunpack.c.l.b16 %v184
      %v266 = vunpack.c.l.b16 %v185
      %v267 = vunpack.c.l.b16 %v186
      %v268 = vunpack.c.l.b16 %v187
      %v269 = vunpack.c.l.b16 %v188
      %v270 = vunpack.c.l.b16 %v189
      %v271 = vunpack.c.l.b16 %v190
      %v272 = vunpack.c.l.b16 %v191
      %v273 = vunpack.c.l.b16 %v192
      %v274 = vunpack.c.l.b16 %v193
      %v275 = vunpack.c.l.b16 %v194
      %v276 = vunpack.c.l.b16 %v195
      %v277 = vunpack.c.l.b16 %v196
      %v278 = vunpack.c.l.b16 %v197
      %v279 = vunpack.c.l.b16 %v198
      %v280 = vunpack.c.l.b16 %v199
      %v281 = vunpack.c.l.b16 %v200
      %v282 = vunpack.c.l.b16 %v201
      %v283 = vunpack.c.l.b16 %v202
      %v284 = vunpack.c.l.b16 %v203
      %v285 = vunpack.c.l.b16 %v204
      %v286 = vunpack.c.l.b16 %v205
      %v287 = vpack.c.b16 %v256, %v255
      %v288 = vpack.c.b16 %v258, %v257
      %v289 = vpack.c.b16 %v260, %v259
      %v290 = vpack.c.b16 %v262, %v261
      %v291 = vpack.c.b16 %v264, %v263
      %v292 = vpack.c.b16 %v266, %v265
      %v293 = vpack.c.b16 %v268, %v267
      %v294 = vpack.c.b16 %v270, %v269
      %v295 = vpack.c.b16 %v272, %v271
      %v296 = vpack.c.b16 %v274, %v273
      %v297 = vpack.c.b16 %v276, %v275
      %v298 = vpack.c.b16 %v278, %v277
      %v299 = vpack.c.b16 %v280, %v279
      %v300 = vpack.c.b16 %v282, %v281
      %v301 = vpack.c.b16 %v284, %v283
      %v302 = vpack.c.b16 %v286, %v285
      %319 = vmatprep.subr.bf16.mxu0 0
      %320 = vmatpush1.bf16.msra.mxu0 %v287
      %321 = vmatprep.subr.bf16.mxu0 0
      %322 = vmatpush1.bf16.msra.mxu0 %v288
      %323 = vmatprep.subr.bf16.mxu0 0
      %324 = vmatpush1.bf16.msra.mxu0 %v289
      %325 = vmatprep.subr.bf16.mxu0 0
      %326 = vmatpush1.bf16.msra.mxu0 %v290
      %327 = vmatprep.subr.bf16.mxu0 0
      %328 = vmatpush1.bf16.msra.mxu0 %v291
      %329 = vmatprep.subr.bf16.mxu0 0
      %330 = vmatpush1.bf16.msra.mxu0 %v292
      %331 = vmatprep.subr.bf16.mxu0 0
      %332 = vmatpush1.bf16.msra.mxu0 %v293
      %333 = vmatprep.subr.bf16.mxu0 0
      %334 = vmatpush1.bf16.msra.mxu0 %v294
      %335 = vmatprep.subr.bf16.mxu0 0
      %336 = vmatpush1.bf16.msra.mxu0 %v295
      %337 = vmatprep.subr.bf16.mxu0 0
      %338 = vmatpush1.bf16.msra.mxu0 %v296
      %339 = vmatprep.subr.bf16.mxu0 0
      %340 = vmatpush1.bf16.msra.mxu0 %v297
      %341 = vmatprep.subr.bf16.mxu0 0
      %342 = vmatpush1.bf16.msra.mxu0 %v298
      %343 = vmatprep.subr.bf16.mxu0 0
      %344 = vmatpush1.bf16.msra.mxu0 %v299
      %345 = vmatprep.subr.bf16.mxu0 0
      %346 = vmatpush1.bf16.msra.mxu0 %v300
      %347 = vmatprep.subr.bf16.mxu0 0
      %348 = vmatpush1.bf16.msra.mxu0 %v301
      %349 = vmatprep.subr.bf16.mxu0 0
      %350 = vmatpush1.bf16.msra.mxu0 %v302
      %351 = vmatprep.mubr.bf16.mxu0 %v220
      %352 = vmatmul.mubr.bf16.gmra.mrb[0].mxu0 %v219
      %v353 = vpop.f32.mrb[0].mxu0
      %v354 = vadd.f32 %v211, %v353
      %v355 = vpop.f32.mrb[0].mxu0
      %v356 = vpop.f32.mrb[0].mxu0
      %v357 = vadd.f32 %v211, %v356
      %v358 = vpop.f32.mrb[0].mxu0
      %359 = vdwg.mxu0
      %vm360 = vcmask 261120
      %v361 = vsel %vm360, %v354, 0.0
      %v362 = vsel %vm360, %v357, 0.0
      %v363 = vadd.f32 %v361, %v362
      %v364 = vrot.slane %v363, 4
      %v365 = vadd.f32 %v363, %v364
      %v366 = vrot.slane %v365, 2
      %v367 = vadd.f32 %v365, %v366
      %v368 = vrot.slane %v367, 1
      %v369 = vadd.f32 %v367, %v368
      %v370 = vrcp.pop 16.0
      %v371 = vmul.f32 %v369, %v370
      %v372 = vsub.f32 %v354, %v371
      %v373 = vsub.f32 %v357, %v371
      %v374 = vmul.f32 %v372, %v372
      %v375 = vmul.f32 %v373, %v373
      %v376 = vsel %vm360, %v374, 0.0
      %v377 = vsel %vm360, %v375, 0.0
      %v378 = vadd.f32 %v376, %v377
      %v379 = vrot.slane %v378, 4
      %v380 = vadd.f32 %v378, %v379
      %v381 = vrot.slane %v380, 2
      %v382 = vadd.f32 %v380, %v381
      %v383 = vrot.slane %v382, 1
      %v384 = vadd.f32 %v382, %v383
      %v385 = vmul.f32 %v384, %v370
      %v386 = vadd.f32 %v385, 1e-05
      %v387 = vrsqrt.pop %v386
      %v388 = vmul.f32 %v372, %v387
      %v389 = vmul.f32 %v373, %v387
      %vm390 = vcmp.ge.f32.partialorder %v388, 0.0
      %vm391 = vcmp.ge.f32.partialorder %v389, 0.0
      %v392 = vmul.f32 %v388, 0.2
      %v393 = vmul.f32 %v389, 0.2
      %v394 = vsel %vm390, %v388, %v392
      %v395 = vsel %vm391, %v389, %v393
      %v396 = vpack.c.bf16 %v395, %v394
      %v398 = vunpack.c.l.b16 %v396
      %v399 = vunpack.c.h.b16 %v396
      %v400 = vpack.c.b16 %v398, %v398
      %v401 = vpack.c.b16 %v399, %v399
      %vm404 = vcmask 257024
      %405 = vst.msk [vmem:[%s170] sm:$0xf] %vm404, %v400
      %406 = vst.msk [vmem:[%s170 + $0x4] sm:$0xf] %vm404, %v401
      %p407 = scmp.lt.s32.totalorder %s14, 1
      %s408 = scalar_select %p407, %s14, 1
      %s409 = smul.addr %s408, 2
      %s410 = smul.addr %s409, 4
      %s411 = scalar_lea.vmem %s3, %s410
      // Predicated region
      $region33: #{image_encoder_forward.8} parent=31 // pred_check
        %p412 = pneg %p100
      $region34: #{image_encoder_forward.8} parent=31 // pred_check_branch
        %414 = sbr.rel (%p412) target = $region36
      $region35: #{image_encoder_forward.8} parent=31 // pred_region
        _
      $region36: #{image_encoder_forward.8} parent=31 // pred_fallthru
        _
    $region32: #{image_encoder_forward.8} parent=5 // pred_fallthru
      _
    %p415 = scmp.le.s32.totalorder 2, %s9
    // Predicated region
    $region37: #{image_encoder_forward.8} parent=5 // pred_check
      %p416 = pneg %p415
    $region38: #{image_encoder_forward.8} parent=5 // pred_check_branch
      %418 = sbr.rel (%p416) target = $region40
    $region39: #{image_encoder_forward.8} parent=5 // pred_region
      %s419 = ssub.s32 %s9, 2
      // Predicated region
      $region41: #{image_encoder_forward.8} parent=39 // pred_check
        %p420 = pneg %p106
      $region42: #{image_encoder_forward.8} parent=39 // pred_check_branch
        %422 = sbr.rel (%p420) target = $region44
      $region43: #{image_encoder_forward.8} parent=39 // pred_region
        %p423 = scmp.lt.s32.totalorder %s15, 1
        %s424 = scalar_select %p423, %s15, 1
        %s425 = smul.addr %s424, 2
        %s426 = smul.addr %s425, 4
        %s427 = scalar_lea.vmem %s3, %s426
      $region44: #{image_encoder_forward.8} parent=39 // pred_fallthru
        _
    $region40: #{image_encoder_forward.8} parent=5 // pred_fallthru
      _
  $region6: #{image_encoder_forward.8} parent=0 // loop_footer
    %s13 = sadd.s32 1, %s9
  $region7: #{image_encoder_forward.8} parent=0 // loop_footer_branch
    %8 = sbr.rel target = $region3
  $region8: #{image_encoder_forward.8} parent=0 // loop_exit
    _

// kernel: image_encoder_forward.9
$region0: #{image_encoder_forward.9}
  #allocation0 [shape = 'u32[]', space=smem, size = 0x4, offset = 0x4, fixed_abs, tag = 'smem constant byte address 0x4 - core index']
  #allocation1 [shape = 'u32[144,128]{1,0:T(1,128)}', space=vmem, size = 0x12000, scoped, tag = 'internal scratch']
  %s0 = inlined_call_operand.vmem [shape: bf16[2,1,512], index: 0, kind: input, shape index: {}]
  %s1 = inlined_call_operand.vmem [shape: bf16[512,8], index: 1, kind: input, shape index: {}]
  %s2 = inlined_call_operand.vmem [shape: f32[1,8], index: 2, kind: input, shape index: {}]
  %s3 = inlined_call_operand.hbm [shape: f32[2,1,8], index: 3, kind: output, shape index: {}]
  %s4 = sld [smem:[#allocation0]]
  $region45: #{image_encoder_forward.9} parent=0
    _
  %s6 = ssub.s32 1, %s4
  %s7 = scalar_select 0, %s6, %s4
  $region1: #{image_encoder_forward.9} parent=0
    #allocation2 [shape = 'u8[1024]{0}', space=vmem, size = 0x400, scoped, tag = 'output window, operand 0']
    #allocation3 [shape = 's32[2]{0}', space=sflag, size = 0x8, scoped, tag = 'scoped memory for image_encoder_forward.9']
    %8 = vsyncpa [#allocation3], 0
    %s9 = scalar_lea.sflag [#allocation3], 1
    %10 = vsyncpa %s9, 0
    loop: start=0, step=1, limit=4
    $region2: #{image_encoder_forward.9} parent=1 // loop_pre_header
      _
    $region3: #{image_encoder_forward.9} parent=1 // loop_header
      %s12 = sphi 0, %s16
      %p13 = scmp.ge.s32.totalorder %s12, 4
      %s22 = sphi 0, %s24
      %s25 = sphi 0, %s22
      %s26 = sphi 0, %s25
      %s42 = sphi 0, %s26
      %s46 = sphi 0, %s46
      %s48 = sphi 0, %s46
      %s49 = sphi 0, %s48
      %s63 = sphi 0, %s49
      %s67 = sphi 0, %s67
      %s69 = sphi 0, %s67
      %s70 = sphi 0, %s69
      %s84 = sphi 0, %s70
      %s90 = sphi 0, %s92
      %s93 = sphi 0, %s90
      %s94 = sphi 0, %s93
      %s110 = sphi 0, %s94
    $region4: #{image_encoder_forward.9} parent=1 // loop_header_branch
      %15 = sbr.rel (%p13) target = $region8
    $region5: #{image_encoder_forward.9} parent=1 // loop_body
      %s17 = ssub.s32 %s12, 1
      %s18 = ssub.s32 %s12, 2
      %s19 = sadd.s32 %s12, 1
      %s20 = ssub.s32 %s12, %s19
      %p21 = scmp.eq.s32.totalorder %s20, 0
      %s23 = sadd.s32 %s22, 1
      %s24 = scalar_select %p21, %s22, %s23
      %p27 = pneg %p21
      %p28 = scmp.eq.s32.totalorder %s12, 1
      %p29 = por %p27, %p28
      %p30 = scmp.ne.s32.totalorder %s22, %s25
      %p31 = scmp.eq.s32.totalorder %s12, 0
      %p32 = por %p30, %p31
      %p33 = scmp.ne.s32.totalorder %s22, %s25
      %p34 = scmp.eq.s32.totalorder %s17, 1
      %p35 = por %p33, %p34
      %p36 = scmp.ne.s32.totalorder %s25, %s26
      %p37 = scmp.eq.s32.totalorder %s17, 0
      %p38 = por %p36, %p37
      %p39 = scmp.ne.s32.totalorder %s25, %s26
      %p40 = scmp.eq.s32.totalorder %s18, 1
      %p41 = por %p39, %p40
      %p43 = scmp.ne.s32.totalorder %s26, %s42
      %p44 = scmp.eq.s32.totalorder %s18, 0
      %p45 = por %p43, %p44
      %s47 = sadd.s32 %s46, 1
      %p50 = scmp.eq.s32.totalorder %s12, 1
      %p51 = scmp.ne.s32.totalorder %s46, %s48
      %p52 = scmp.eq.s32.totalorder %s12, 0
      %p53 = por %p51, %p52
      %p54 = scmp.ne.s32.totalorder %s46, %s48
      %p55 = scmp.eq.s32.totalorder %s17, 1
      %p56 = por %p54, %p55
      %p57 = scmp.ne.s32.totalorder %s48, %s49
      %p58 = scmp.eq.s32.totalorder %s17, 0
      %p59 = por %p57, %p58
      %p60 = scmp.ne.s32.totalorder %s48, %s49
      %p61 = scmp.eq.s32.totalorder %s18, 1
      %p62 = por %p60, %p61
      %p64 = scmp.ne.s32.totalorder %s49, %s63
      %p65 = scmp.eq.s32.totalorder %s18, 0
      %p66 = por %p64, %p65
      %s68 = sadd.s32 %s67, 1
      %p71 = scmp.eq.s32.totalorder %s12, 1
      %p72 = scmp.ne.s32.totalorder %s67, %s69
      %p73 = scmp.eq.s32.totalorder %s12, 0
      %p74 = por %p72, %p73
      %p75 = scmp.ne.s32.totalorder %s67, %s69
      %p76 = scmp.eq.s32.totalorder %s17, 1
      %p77 = por %p75, %p76
      %p78 = scmp.ne.s32.totalorder %s69, %s70
      %p79 = scmp.eq.s32.totalorder %s17, 0
      %p80 = por %p78, %p79
      %p81 = scmp.ne.s32.totalorder %s69, %s70
      %p82 = scmp.eq.s32.totalorder %s18, 1
      %p83 = por %p81, %p82
      %p85 = scmp.ne.s32.totalorder %s70, %s84
      %p86 = scmp.eq.s32.totalorder %s18, 0
      %p87 = por %p85, %p86
      %s88 = ssub.s32 %s12, %s19
      %p89 = scmp.eq.s32.totalorder %s88, 0
      %s91 = sadd.s32 %s90, 1
      %s92 = scalar_select %p89, %s90, %s91
      %p95 = pneg %p89
      %p96 = scmp.eq.s32.totalorder %s12, 1
      %p97 = por %p95, %p96
      %p98 = scmp.ne.s32.totalorder %s90, %s93
      %p99 = scmp.eq.s32.totalorder %s12, 0
      %p100 = por %p98, %p99
      %p101 = scmp.ne.s32.totalorder %s90, %s93
      %p102 = scmp.eq.s32.totalorder %s17, 1
      %p103 = por %p101, %p102
      %p104 = scmp.ne.s32.totalorder %s93, %s94
      %p105 = scmp.eq.s32.totalorder %s17, 0
      %p106 = por %p104, %p105
      %p107 = scmp.ne.s32.totalorder %s93, %s94
      %p108 = scmp.eq.s32.totalorder %s18, 1
      %p109 = por %p107, %p108
      %p111 = scmp.ne.s32.totalorder %s94, %s110
      %p112 = scmp.eq.s32.totalorder %s18, 0
      %p113 = por %p111, %p112
      %p114 = scmp.le.s32.totalorder 1, %s12
      %p115 = scmp.lt.s32.totalorder %s12, 3
      %p116 = pnand %p114, %p115
      %p117 = pneg %p116
      // Predicated region
      $region9: #{image_encoder_forward.9} parent=5 // pred_check
        _
      $region10: #{image_encoder_forward.9} parent=5 // pred_check_branch
        %119 = sbr.rel (%p116) target = $region12
      $region11: #{image_encoder_forward.9} parent=5 // pred_region
        %s120 = ssub.s32 %s12, 1
        // Predicated region
        $region13: #{image_encoder_forward.9} parent=11 // pred_check
          %p121 = pneg %p59
        $region14: #{image_encoder_forward.9} parent=11 // pred_check_branch
          %123 = sbr.rel (%p121) target = $region16
        $region15: #{image_encoder_forward.9} parent=11 // pred_region
          _
        $region16: #{image_encoder_forward.9} parent=11 // pred_fallthru
          _
        // Predicated region
        $region17: #{image_encoder_forward.9} parent=11 // pred_check
          %p124 = pneg %p80
        $region18: #{image_encoder_forward.9} parent=11 // pred_check_branch
          %126 = sbr.rel (%p124) target = $region20
        $region19: #{image_encoder_forward.9} parent=11 // pred_region
          _
        $region20: #{image_encoder_forward.9} parent=11 // pred_fallthru
          _
      $region12: #{image_encoder_forward.9} parent=5 // pred_fallthru
        _
      %p127 = scmp.lt.s32.totalorder %s12, 2
      // Predicated region
      $region21: #{image_encoder_forward.9} parent=5 // pred_check
        %p128 = pneg %p127
      $region22: #{image_encoder_forward.9} parent=5 // pred_check_branch
        %130 = sbr.rel (%p128) target = $region24
      $region23: #{image_encoder_forward.9} parent=5 // pred_region
        // Predicated region
        $region25: #{image_encoder_forward.9} parent=23 // pred_check
          %p131 = pneg %p32
        $region26: #{image_encoder_forward.9} parent=23 // pred_check_branch
          %133 = sbr.rel (%p131) target = $region28
        $region27: #{image_encoder_forward.9} parent=23 // pred_region
          %p134 = scmp.lt.s32.totalorder %s12, 1
          %s135 = scalar_select %p134, %s12, 1
          %s136 = smul.addr %s135, 4
          %s137 = scalar_lea.vmem %s0, %s136
        $region28: #{image_encoder_forward.9} parent=23 // pred_fallthru
          _
      $region24: #{image_encoder_forward.9} parent=5 // pred_fallthru
        _
      %p138 = scmp.le.s32.totalorder 1, %s12
      %p139 = scmp.lt.s32.totalorder %s12, 3
      %p140 = pnand %p138, %p139
      %p141 = pneg %p140
      // Predicated region
      $region29: #{image_encoder_forward.9} parent=5 // pred_check
        _
      $region30: #{image_encoder_forward.9} parent=5 // pred_check_branch
        %143 = sbr.rel (%p140) target = $region32
      $region31: #{image_encoder_forward.9} parent=5 // pred_region
        %s144 = ssub.s32 %s12, 1
        %p145 = scmp.lt.s32.totalorder %s17, 1
        %s146 = scalar_select %p145, %s17, 1
        %s147 = smul.addr %s146, 4
        %s148 = scalar_lea.vmem %s0, %s147
        %p149 = pneg %p38
        %p150 = pneg %p35
        %p151 = pneg %p59
        %p152 = pneg %p56
        %p153 = pneg %p80
        %p154 = pneg %p77
        %p155 = pneg %p106
        %p156 = pneg %p103
        %s157 = sand.u32 %s93, 1
        %s158 = scalar_lea.sflag [#allocation3], %s157
        %s159 = sand.u32 %s93, 1
        %s160 = scalar_lea.vmem [#allocation2], %s159
        %p161 = scmp.lt.s32.totalorder %s17, 1
        %s162 = scalar_select %p161, %s17, 1
        %s163 = smul.addr %s162, 4
        %s164 = scalar_lea.vmem %s0, %s163
        %v166 = vld [vmem:[%s164] sm:$0xf]
        %v167 = vld [vmem:[%s1] sm:$0xf]
        %v168 = vld [vmem:[%s1 + $0x4] sm:$0xf]
        %v169 = vld [vmem:[%s1 + $0x8] sm:$0xf]
        %v170 = vld [vmem:[%s1 + $0xc] sm:$0xf]
        %v171 = vld [vmem:[%s1 + $0x10] sm:$0xf]
        %v172 = vld [vmem:[%s1 + $0x14] sm:$0xf]
        %v173 = vld [vmem:[%s1 + $0x18] sm:$0xf]
        %v174 = vld [vmem:[%s1 + $0x1c] sm:$0xf]
        %v175 = vld [vmem:[%s1 + $0x20] sm:$0xf]
        %v176 = vld [vmem:[%s1 + $0x24] sm:$0xf]
        %v177 = vld [vmem:[%s1 + $0x28] sm:$0xf]
        %v178 = vld [vmem:[%s1 + $0x2c] sm:$0xf]
        %v179 = vld [vmem:[%s1 + $0x30] sm:$0xf]
        %v180 = vld [vmem:[%s1 + $0x34] sm:$0xf]
        %v181 = vld [vmem:[%s1 + $0x38] sm:$0xf]
        %v182 = vld [vmem:[%s1 + $0x3c] sm:$0xf]
        %v183 = vld [vmem:[%s1 + $0x40] sm:$0xf]
        %v184 = vld [vmem:[%s1 + $0x44] sm:$0xf]
        %v185 = vld [vmem:[%s1 + $0x48] sm:$0xf]
        %v186 = vld [vmem:[%s1 + $0x4c] sm:$0xf]
        %v187 = vld [vmem:[%s1 + $0x50] sm:$0xf]
        %v188 = vld [vmem:[%s1 + $0x54] sm:$0xf]
        %v189 = vld [vmem:[%s1 + $0x58] sm:$0xf]
        %v190 = vld [vmem:[%s1 + $0x5c] sm:$0xf]
        %v191 = vld [vmem:[%s1 + $0x60] sm:$0xf]
        %v192 = vld [vmem:[%s1 + $0x64] sm:$0xf]
        %v193 = vld [vmem:[%s1 + $0x68] sm:$0xf]
        %v194 = vld [vmem:[%s1 + $0x6c] sm:$0xf]
        %v195 = vld [vmem:[%s1 + $0x70] sm:$0xf]
        %v196 = vld [vmem:[%s1 + $0x74] sm:$0xf]
        %v197 = vld [vmem:[%s1 + $0x78] sm:$0xf]
        %v198 = vld [vmem:[%s1 + $0x7c] sm:$0xf]
        %v199 = vld [vmem:[%s1 + $0x80] sm:$0xf]
        %v200 = vld [vmem:[%s1 + $0x84] sm:$0xf]
        %v201 = vld [vmem:[%s1 + $0x88] sm:$0xf]
        %v202 = vld [vmem:[%s1 + $0x8c] sm:$0xf]
        %v203 = vld [vmem:[%s1 + $0x90] sm:$0xf]
        %v204 = vld [vmem:[%s1 + $0x94] sm:$0xf]
        %v205 = vld [vmem:[%s1 + $0x98] sm:$0xf]
        %v206 = vld [vmem:[%s1 + $0x9c] sm:$0xf]
        %v207 = vld [vmem:[%s1 + $0xa0] sm:$0xf]
        %v208 = vld [vmem:[%s1 + $0xa4] sm:$0xf]
        %v209 = vld [vmem:[%s1 + $0xa8] sm:$0xf]
        %v210 = vld [vmem:[%s1 + $0xac] sm:$0xf]
        %v211 = vld [vmem:[%s1 + $0xb0] sm:$0xf]
        %v212 = vld [vmem:[%s1 + $0xb4] sm:$0xf]
        %v213 = vld [vmem:[%s1 + $0xb8] sm:$0xf]
        %v214 = vld [vmem:[%s1 + $0xbc] sm:$0xf]
        %v215 = vld [vmem:[%s1 + $0xc0] sm:$0xf]
        %v216 = vld [vmem:[%s1 + $0xc4] sm:$0xf]
        %v217 = vld [vmem:[%s1 + $0xc8] sm:$0xf]
        %v218 = vld [vmem:[%s1 + $0xcc] sm:$0xf]
        %v219 = vld [vmem:[%s1 + $0xd0] sm:$0xf]
        %v220 = vld [vmem:[%s1 + $0xd4] sm:$0xf]
        %v221 = vld [vmem:[%s1 + $0xd8] sm:$0xf]
        %v222 = vld [vmem:[%s1 + $0xdc] sm:$0xf]
        %v223 = vld [vmem:[%s1 + $0xe0] sm:$0xf]
        %v224 = vld [vmem:[%s1 + $0xe4] sm:$0xf]
        %v225 = vld [vmem:[%s1 + $0xe8] sm:$0xf]
        %v226 = vld [vmem:[%s1 + $0xec] sm:$0xf]
        %v227 = vld [vmem:[%s1 + $0xf0] sm:$0xf]
        %v228 = vld [vmem:[%s1 + $0xf4] sm:$0xf]
        %v229 = vld [vmem:[%s1 + $0xf8] sm:$0xf]
        %v230 = vld [vmem:[%s1 + $0xfc] sm:$0xf]
        %v231 = vld [vmem:[%s2] sm:$0x1]
        %v234 = vunpack.c.l.s4 1966171168
        %v235 = vunpack.c.0.s8 %v234
        %v236 = vlaneseq
        %v237 = vshrl.u32 %v236, 7
        %v238 = vsub.s32 %v235, %v237
        %v239 = vrot.slane %v166, %v238
        %v240 = vcombine.high %v239, %v239
        %v242 = vunpack.c.l.s4 1966171168
        %v243 = vunpack.c.0.s8 %v242
        %v244 = vlaneseq
        %v245 = vshrl.u32 %v244, 7
        %v246 = vsub.s32 %v243, %v245
        %v247 = vrot.slane %v239, %v246
        %v249 = vunpack.c.l.s4 1966171168
        %v250 = vunpack.c.0.s8 %v249
        %v251 = vlaneseq
        %v252 = vshrl.u32 %v251, 7
        %v253 = vsub.s32 %v250, %v252
        %v254 = vrot.slane %v240, %v253
        %v255 = vcombine.high %v247, %v247
        %v256 = vcombine.high %v254, %v254
        %v325 = vunpack.c.l.b16 %v167
        %v326 = vunpack.c.l.b16 %v168
        %v327 = vunpack.c.l.b16 %v169
        %v328 = vunpack.c.l.b16 %v170
        %v329 = vunpack.c.l.b16 %v171
        %v330 = vunpack.c.l.b16 %v172
        %v331 = vunpack.c.l.b16 %v173
        %v332 = vunpack.c.l.b16 %v174
        %v333 = vunpack.c.l.b16 %v175
        %v334 = vunpack.c.l.b16 %v176
        %v335 = vunpack.c.l.b16 %v177
        %v336 = vunpack.c.l.b16 %v178
        %v337 = vunpack.c.l.b16 %v179
        %v338 = vunpack.c.l.b16 %v180
        %v339 = vunpack.c.l.b16 %v181
        %v340 = vunpack.c.l.b16 %v182
        %v341 = vunpack.c.l.b16 %v183
        %v342 = vunpack.c.l.b16 %v184
        %v343 = vunpack.c.l.b16 %v185
        %v344 = vunpack.c.l.b16 %v186
        %v345 = vunpack.c.l.b16 %v187
        %v346 = vunpack.c.l.b16 %v188
        %v347 = vunpack.c.l.b16 %v189
        %v348 = vunpack.c.l.b16 %v190
        %v349 = vunpack.c.l.b16 %v191
        %v350 = vunpack.c.l.b16 %v192
        %v351 = vunpack.c.l.b16 %v193
        %v352 = vunpack.c.l.b16 %v194
        %v353 = vunpack.c.l.b16 %v195
        %v354 = vunpack.c.l.b16 %v196
        %v355 = vunpack.c.l.b16 %v197
        %v356 = vunpack.c.l.b16 %v198
        %v357 = vunpack.c.l.b16 %v199
        %v358 = vunpack.c.l.b16 %v200
        %v359 = vunpack.c.l.b16 %v201
        %v360 = vunpack.c.l.b16 %v202
        %v361 = vunpack.c.l.b16 %v203
        %v362 = vunpack.c.l.b16 %v204
        %v363 = vunpack.c.l.b16 %v205
        %v364 = vunpack.c.l.b16 %v206
        %v365 = vunpack.c.l.b16 %v207
        %v366 = vunpack.c.l.b16 %v208
        %v367 = vunpack.c.l.b16 %v209
        %v368 = vunpack.c.l.b16 %v210
        %v369 = vunpack.c.l.b16 %v211
        %v370 = vunpack.c.l.b16 %v212
        %v371 = vunpack.c.l.b16 %v213
        %v372 = vunpack.c.l.b16 %v214
        %v373 = vunpack.c.l.b16 %v215
        %v374 = vunpack.c.l.b16 %v216
        %v375 = vunpack.c.l.b16 %v217
        %v376 = vunpack.c.l.b16 %v218
        %v377 = vunpack.c.l.b16 %v219
        %v378 = vunpack.c.l.b16 %v220
        %v379 = vunpack.c.l.b16 %v221
        %v380 = vunpack.c.l.b16 %v222
        %v381 = vunpack.c.l.b16 %v223
        %v382 = vunpack.c.l.b16 %v224
        %v383 = vunpack.c.l.b16 %v225
        %v384 = vunpack.c.l.b16 %v226
        %v385 = vunpack.c.l.b16 %v227
        %v386 = vunpack.c.l.b16 %v228
        %v387 = vunpack.c.l.b16 %v229
        %v388 = vunpack.c.l.b16 %v230
        %v389 = vpack.c.b16 %v326, %v325
        %v390 = vpack.c.b16 %v328, %v327
        %v391 = vpack.c.b16 %v330, %v329
        %v392 = vpack.c.b16 %v332, %v331
        %v393 = vpack.c.b16 %v334, %v333
        %v394 = vpack.c.b16 %v336, %v335
        %v395 = vpack.c.b16 %v338, %v337
        %v396 = vpack.c.b16 %v340, %v339
        %v397 = vpack.c.b16 %v342, %v341
        %v398 = vpack.c.b16 %v344, %v343
        %v399 = vpack.c.b16 %v346, %v345
        %v400 = vpack.c.b16 %v348, %v347
        %v401 = vpack.c.b16 %v350, %v349
        %v402 = vpack.c.b16 %v352, %v351
        %v403 = vpack.c.b16 %v354, %v353
        %v404 = vpack.c.b16 %v356, %v355
        %v405 = vpack.c.b16 %v358, %v357
        %v406 = vpack.c.b16 %v360, %v359
        %v407 = vpack.c.b16 %v362, %v361
        %v408 = vpack.c.b16 %v364, %v363
        %v409 = vpack.c.b16 %v366, %v365
        %v410 = vpack.c.b16 %v368, %v367
        %v411 = vpack.c.b16 %v370, %v369
        %v412 = vpack.c.b16 %v372, %v371
        %v413 = vpack.c.b16 %v374, %v373
        %v414 = vpack.c.b16 %v376, %v375
        %v415 = vpack.c.b16 %v378, %v377
        %v416 = vpack.c.b16 %v380, %v379
        %v417 = vpack.c.b16 %v382, %v381
        %v418 = vpack.c.b16 %v384, %v383
        %v419 = vpack.c.b16 %v386, %v385
        %v420 = vpack.c.b16 %v388, %v387
        %453 = vmatprep.subr.bf16.mxu0 0
        %454 = vmatpush1.bf16.msra.mxu0 %v389
        %455 = vmatprep.subr.bf16.mxu0 0
        %456 = vmatpush1.bf16.msra.mxu0 %v390
        %457 = vmatprep.subr.bf16.mxu0 0
        %458 = vmatpush1.bf16.msra.mxu0 %v391
        %459 = vmatprep.subr.bf16.mxu0 0
        %460 = vmatpush1.bf16.msra.mxu0 %v392
        %461 = vmatprep.subr.bf16.mxu0 0
        %462 = vmatpush1.bf16.msra.mxu0 %v393
        %463 = vmatprep.subr.bf16.mxu0 0
        %464 = vmatpush1.bf16.msra.mxu0 %v394
        %465 = vmatprep.subr.bf16.mxu0 0
        %466 = vmatpush1.bf16.msra.mxu0 %v395
        %467 = vmatprep.subr.bf16.mxu0 0
        %468 = vmatpush1.bf16.msra.mxu0 %v396
        %469 = vmatprep.subr.bf16.mxu0 0
        %470 = vmatpush1.bf16.msra.mxu0 %v397
        %471 = vmatprep.subr.bf16.mxu0 0
        %472 = vmatpush1.bf16.msra.mxu0 %v398
        %473 = vmatprep.subr.bf16.mxu0 0
        %474 = vmatpush1.bf16.msra.mxu0 %v399
        %475 = vmatprep.subr.bf16.mxu0 0
        %476 = vmatpush1.bf16.msra.mxu0 %v400
        %477 = vmatprep.subr.bf16.mxu0 0
        %478 = vmatpush1.bf16.msra.mxu0 %v401
        %479 = vmatprep.subr.bf16.mxu0 0
        %480 = vmatpush1.bf16.msra.mxu0 %v402
        %481 = vmatprep.subr.bf16.mxu0 0
        %482 = vmatpush1.bf16.msra.mxu0 %v403
        %483 = vmatprep.subr.bf16.mxu0 0
        %484 = vmatpush1.bf16.msra.mxu0 %v404
        %485 = vmatprep.mubr.bf16.mxu0 %v254
        %486 = vmatmul.mubr.bf16.gmra.mrb[0].mxu0 %v247
        %v487 = vpop.f32.mrb[0].mxu0
        %v488 = vadd.f32 %v231, %v487
        %v489 = vpop.f32.mrb[0].mxu0
        %v490 = vpop.f32.mrb[0].mxu0
        %v491 = vpop.f32.mrb[0].mxu0
        %492 = vdwg.mxu0
        %493 = vmatprep.subr.bf16.mxu0 0
        %494 = vmatpush1.bf16.msra.mxu0 %v405
        %495 = vmatprep.subr.bf16.mxu0 0
        %496 = vmatpush1.bf16.msra.mxu0 %v406
        %497 = vmatprep.subr.bf16.mxu0 0
        %498 = vmatpush1.bf16.msra.mxu0 %v407
        %499 = vmatprep.subr.bf16.mxu0 0
        %500 = vmatpush1.bf16.msra.mxu0 %v408
        %501 = vmatprep.subr.bf16.mxu0 0
        %502 = vmatpush1.bf16.msra.mxu0 %v409
        %503 = vmatprep.subr.bf16.mxu0 0
        %504 = vmatpush1.bf16.msra.mxu0 %v410
        %505 = vmatprep.subr.bf16.mxu0 0
        %506 = vmatpush1.bf16.msra.mxu0 %v411
        %507 = vmatprep.subr.bf16.mxu0 0
        %508 = vmatpush1.bf16.msra.mxu0 %v412
        %509 = vmatprep.subr.bf16.mxu0 0
        %510 = vmatpush1.bf16.msra.mxu0 %v413
        %511 = vmatprep.subr.bf16.mxu0 0
        %512 = vmatpush1.bf16.msra.mxu0 %v414
        %513 = vmatprep.subr.bf16.mxu0 0
        %514 = vmatpush1.bf16.msra.mxu0 %v415
        %515 = vmatprep.subr.bf16.mxu0 0
        %516 = vmatpush1.bf16.msra.mxu0 %v416
        %517 = vmatprep.subr.bf16.mxu0 0
        %518 = vmatpush1.bf16.msra.mxu0 %v417
        %519 = vmatprep.subr.bf16.mxu0 0
        %520 = vmatpush1.bf16.msra.mxu0 %v418
        %521 = vmatprep.subr.bf16.mxu0 0
        %522 = vmatpush1.bf16.msra.mxu0 %v419
        %523 = vmatprep.subr.bf16.mxu0 0
        %524 = vmatpush1.bf16.msra.mxu0 %v420
        %525 = vmatprep.mubr.bf16.mxu0 %v256
        %526 = vmatmul.mubr.bf16.gmra.mrb[0].mxu0 %v255
        %v527 = vpop.f32.mrb[0].mxu0
        %v528 = vadd.f32 %v488, %v527
        %v529 = vpop.f32.mrb[0].mxu0
        %v530 = vpop.f32.mrb[0].mxu0
        %v531 = vpop.f32.mrb[0].mxu0
        %532 = vdwg.mxu0
        %vm533 = vcmask 57344
        %534 = vst.msk [vmem:[%s160] sm:$0x1] %vm533, %v528
        %s535 = sand.u32 %s93, 1
        %s536 = scalar_lea.sflag [#allocation3], %s535
        %s537 = sand.u32 %s93, 1
        %s538 = scalar_lea.vmem [#allocation2], %s537
        // Predicated region
        $region33: #{image_encoder_forward.9} parent=31 // pred_check
          %p539 = pneg %p103
        $region34: #{image_encoder_forward.9} parent=31 // pred_check_branch
          %541 = sbr.rel (%p539) target = $region36
        $region35: #{image_encoder_forward.9} parent=31 // pred_region
          %s543 = ssub.s32 16, 16
          %544 = vsyncadd %s536, %s543
          %s545 = smul.addr %s17, 16
          %s546 = scalar_lea.hbm %s3, %s545
          %s548 = sshll.u32 %s538, 4
          %s549 = int_to_ptr.vmem [resolvable:$true] %s548
          %551 = dma.vmem_to_hbm [thread:$0]  %s549, 16, %s546, %s536
        $region36: #{image_encoder_forward.9} parent=31 // pred_fallthru
          _
      $region32: #{image_encoder_forward.9} parent=5 // pred_fallthru
        _
      %p552 = scmp.le.s32.totalorder 2, %s12
      // Predicated region
      $region37: #{image_encoder_forward.9} parent=5 // pred_check
        %p553 = pneg %p552
      $region38: #{image_encoder_forward.9} parent=5 // pred_check_branch
        %555 = sbr.rel (%p553) target = $region40
      $region39: #{image_encoder_forward.9} parent=5 // pred_region
        %s556 = ssub.s32 %s12, 2
        // Predicated region
        $region41: #{image_encoder_forward.9} parent=39 // pred_check
          %p557 = pneg %p109
        $region42: #{image_encoder_forward.9} parent=39 // pred_check_branch
          %559 = sbr.rel (%p557) target = $region44
        $region43: #{image_encoder_forward.9} parent=39 // pred_region
          %s560 = sand.u32 %s94, 1
          %s561 = scalar_lea.sflag [#allocation3], %s560
          %s562 = sand.u32 %s94, 1
          %s563 = scalar_lea.vmem [#allocation2], %s562
          %564 = dma.done %s561, 16
        $region44: #{image_encoder_forward.9} parent=39 // pred_fallthru
          _
      $region40: #{image_encoder_forward.9} parent=5 // pred_fallthru
        _
    $region6: #{image_encoder_forward.9} parent=1 // loop_footer
      %s16 = sadd.s32 1, %s12
    $region7: #{image_encoder_forward.9} parent=1 // loop_footer_branch
      %11 = sbr.rel target = $region3
    $region8: #{image_encoder_forward.9} parent=1 // loop_exit
      _
    %565 = vsyncpa [#allocation3], 1
    %s566 = scalar_lea.sflag [#allocation3], 1
    %567 = vsyncpa %s566, 1

</llo_original>
